<compile_context>
chip_gen: v6e
topology: v6e:2x2x1
jax: 0.10.0
libtpu: 0.0.40
codegen_flags: <defaults>
</compile_context>

<pallas_src>
import functools

import jax
import jax.numpy as jnp
from jax import lax
from jax.experimental import pallas as pl
from jax.experimental.pallas import tpu as pltpu

F32 = jnp.float32


# --------------------------------------------------------------------------- kernel

def _cbam_kernel(x_ref, w1_ref, w2_ref, wplane_ref, o_ref, pad_ref, *,
                 K, Wseg, inv_hw, inv_c):
    """Fully fused CBAM forward for one image.

    x_ref:      (1, H, W, C)   input tile (any float dtype; compute is f32)
    w1_ref:     (C, C//r)      MLP conv1 weight (f32)
    w2_ref:     (C//r, C)      MLP conv2 weight (f32)
    wplane_ref: (K*K, 2*Wseg)  per-tap lane weight rows: [max-tap | mean-tap] segments
    o_ref:      (1, H, W, C)   output tile (same dtype as x)
    pad_ref:    (H+2P, 2*Wseg) VMEM scratch: zero-padded, lane-packed [max-map | mean-map]
    """
    _, H, W, C = x_ref.shape
    P = K // 2
    lane = 2 * Wseg

    x = x_ref[0].astype(F32)                       # cast rides the VPU under the DMA

    # ---- channel attention: global max/avg pool + shared MLP + sigmoid -----------------
    xf = x.reshape(H * W, C)
    pooled = jnp.concatenate(
        [jnp.max(xf, axis=0, keepdims=True),
         jnp.sum(xf, axis=0, keepdims=True) * inv_hw], axis=0)            # (2, C)
    hid = jnp.maximum(
        jnp.dot(pooled, w1_ref[...], preferred_element_type=F32,
                precision=lax.Precision.HIGHEST), 0.0)
    y = jnp.dot(hid, w2_ref[...], preferred_element_type=F32,
                precision=lax.Precision.HIGHEST)                          # (2, C)
    cs = jax.nn.sigmoid(y[0:1, :] + y[1:2, :])                            # (1, C)

    xc = x * cs                                                           # (H, W, C)

    # ---- spatial statistics, zero-padded and packed side by side along lanes -----------
    smx = jnp.max(xc, axis=-1)                                            # (H, W)
    sav = jnp.sum(xc, axis=-1) * inv_c                                    # (H, W)

    pieces = []
    for m in (smx, sav):
        if P:
            pieces.append(jnp.zeros((H, P), F32))
        pieces.append(m)
        if Wseg - P - W:
            pieces.append(jnp.zeros((H, Wseg - P - W), F32))
    mid = jnp.concatenate(pieces, axis=1)                                 # (H, 2*Wseg)
    if P:
        zrow = jnp.zeros((P, lane), F32)
        pad_ref[...] = jnp.concatenate([zrow, mid, zrow], axis=0)
    else:
        pad_ref[...] = mid

    # ---- KxK (2 -> 1) conv on the packed maps -------------------------------------------
    # Inner ky loop: row-addressed loads from the scratch ref (cheap) FMA'd against the
    # per-tap 2-segment lane weight row (one FMA covers both conv input channels).
    # Outer kx loop: a single lane rotation of the per-kx partial sum (6 rotations total).
    acc = jnp.zeros((H, lane), F32)
    for kx in range(K):
        a_kx = jnp.zeros((H, lane), F32)
        for ky in range(K):
            wv = wplane_ref[pl.ds(ky * K + kx, 1), :]                     # (1, 2*Wseg)
            a_kx = a_kx + wv * pad_ref[pl.ds(ky, H), :]
        if kx:
            # roll left by kx along lanes: rolled[:, c] = a_kx[:, c + kx]
            a_kx = jnp.concatenate([a_kx[:, kx:], a_kx[:, :kx]], axis=1)
        acc = acc + a_kx
    conv = acc[:, 0:W] + acc[:, Wseg:Wseg + W]                            # (H, W)

    sp = jax.nn.sigmoid(conv)                                             # spatial attention
    o_ref[0] = (xc * sp[:, :, None]).astype(o_ref.dtype)


# --------------------------------------------------------------------------- wrapper

def _round_up(v, m):
    return (v + m - 1) // m * m


@jax.jit
def cbam(x, w1, w2, wsp):
    """CBAMLayer.forward.

    x:   (N, H, W, C)  NHWC activations (f32 or bf16; output matches x.dtype)
    w1:  (C, C//reduction)   first 1x1 conv of the shared MLP (no bias)
    w2:  (C//reduction, C)   second 1x1 conv of the shared MLP (no bias)
    wsp: (K, K, 2)           spatial conv weight, input channels ordered (max, mean)
    """
    N, H, W, C = x.shape
    Cr = w1.shape[1]
    K = wsp.shape[0]
    P = K // 2

    # Lane packing for the spatial maps: [max-map | mean-map], each segment Wseg lanes,
    # total lane width a multiple of 128 (lane-dense rows -> row-addressed loads are free).
    Wseg = 64 if (W + 2 * P) <= 64 else _round_up(W + 2 * P, 128)
    lane = 2 * Wseg

    w1f = w1.astype(F32)
    w2f = w2.astype(F32)
    wm = wsp[..., 0].astype(F32).reshape(K * K, 1)
    wa = wsp[..., 1].astype(F32).reshape(K * K, 1)
    wplane = jnp.concatenate([jnp.broadcast_to(wm, (K * K, Wseg)),
                              jnp.broadcast_to(wa, (K * K, Wseg))], axis=1)   # (K*K, lane)

    blk_bytes = H * W * C * 4
    cost = pl.CostEstimate(
        flops=int(N * (10 * H * W * C + 4 * K * K * H * Wseg + 4 * C * Cr)),
        transcendentals=int(N * (C + H * W)),
        bytes_accessed=int(2 * x.size * x.dtype.itemsize
                           + (w1f.size + w2f.size + wplane.size) * 4),
    )

    kernel = functools.partial(_cbam_kernel, K=K, Wseg=Wseg,
                               inv_hw=1.0 / float(H * W), inv_c=1.0 / float(C))

    return pl.pallas_call(
        kernel,
        out_shape=jax.ShapeDtypeStruct((N, H, W, C), x.dtype),
        grid=(N,),
        in_specs=[
            pl.BlockSpec((1, H, W, C), lambda n: (n, 0, 0, 0)),
            pl.BlockSpec((C, Cr), lambda n: (0, 0)),
            pl.BlockSpec((Cr, C), lambda n: (0, 0)),
            pl.BlockSpec((K * K, lane), lambda n: (0, 0)),
        ],
        out_specs=pl.BlockSpec((1, H, W, C), lambda n: (n, 0, 0, 0)),
        scratch_shapes=[pltpu.VMEM((H + 2 * P, lane), F32)],
        compiler_params=pltpu.CompilerParams(
            dimension_semantics=("parallel",),
            vmem_limit_bytes=int(min(64 * 2**20, max(16 * 2**20, 6 * blk_bytes))),
        ),
        cost_estimate=cost,
    )(x, w1f, w2f, wplane)


# --------------------------------------------------------------------------- reference

@jax.jit
def cbam_reference(x, w1, w2, wsp):
    """Pure-JAX (non-Pallas) reference of CBAMLayer.forward in NHWC, f32 HIGHEST precision."""
    K = wsp.shape[0]
    P = K // 2
    mx = jnp.max(x, axis=(1, 2))
    av = jnp.mean(x, axis=(1, 2))

    def mlp(v):
        h = jnp.maximum(jnp.dot(v, w1, precision=lax.Precision.HIGHEST), 0.0)
        return jnp.dot(h, w2, precision=lax.Precision.HIGHEST)

    cs = jax.nn.sigmoid(mlp(mx) + mlp(av))                                    # (N, C)
    xc = x * cs[:, None, None, :]
    stats = jnp.stack([jnp.max(xc, axis=-1), jnp.mean(xc, axis=-1)], axis=-1)  # (N, H, W, 2)
    sp = lax.conv_general_dilated(
        stats, wsp.reshape(K, K, 2, 1), window_strides=(1, 1),
        padding=[(P, P), (P, P)], dimension_numbers=("NHWC", "HWIO", "NHWC"),
        precision=lax.Precision.HIGHEST)
    return xc * jax.nn.sigmoid(sp)


# --------------------------------------------------------------------------- main

if __name__ == "__main__":
    key = jax.random.PRNGKey(0)
    kx_, k1, k2, k3 = jax.random.split(key, 4)

    N, H, W, C = 2, 32, 32, 64
    reduction, K = 8, 7
    Cr = C // reduction

    x = jax.random.normal(kx_, (N, H, W, C), F32)
    w1 = jax.random.normal(k1, (C, Cr), F32) / jnp.sqrt(float(C))
    w2 = jax.random.normal(k2, (Cr, C), F32) / jnp.sqrt(float(Cr))
    wsp = jax.random.normal(k3, (K, K, 2), F32) / jnp.sqrt(2.0 * K * K)

    out = cbam(x, w1, w2, wsp)
    jax.block_until_ready(out)

    ref = cbam_reference(x, w1, w2, wsp)
    jax.block_until_ready(ref)

    assert out.shape == (N, H, W, C)
    err = float(jnp.max(jnp.abs(out - ref)))
    assert err < 1e-3, f"max abs err {err}"
    print("KERNEL_OK")
</pallas_src>

<mosaic_0001>
module attributes {stable_mosaic.version = 11 : i64} {
  func.func @_cbam_kernel(%arg0: i32, %arg1: memref<1x32x32x64xf32, #tpu.memory_space<vmem>>, %arg2: memref<64x8xf32, #tpu.memory_space<vmem>>, %arg3: memref<8x64xf32, #tpu.memory_space<vmem>>, %arg4: memref<49x128xf32, #tpu.memory_space<vmem>>, %arg5: memref<1x32x32x64xf32, #tpu.memory_space<vmem>>, %arg6: memref<38x128xf32, #tpu.memory_space<vmem>>) attributes {dimension_semantics = [#tpu.dimension_semantics<parallel>], iteration_bounds = array<i64: 2>, scalar_prefetch = 0 : i64, scratch_operands = 1 : i64, tpu.core_type = #tpu.core_type<tc>, window_params = [{transform_indices = @transform_0, window_bounds = array<i64: 1, 32, 32, 64>}, {pipeline_mode = #tpu.pipeline_mode<synchronous>, transform_indices = @transform_1, window_bounds = array<i64: 64, 8>}, {pipeline_mode = #tpu.pipeline_mode<synchronous>, transform_indices = @transform_2, window_bounds = array<i64: 8, 64>}, {pipeline_mode = #tpu.pipeline_mode<synchronous>, transform_indices = @transform_3, window_bounds = array<i64: 49, 128>}, {transform_indices = @transform_4, window_bounds = array<i64: 1, 32, 32, 64>}]} {
    %c0 = arith.constant 0 : index
    %c0_0 = arith.constant 0 : index
    %c0_1 = arith.constant 0 : index
    %c0_2 = arith.constant 0 : index
    %0 = vector.load %arg1[%c0, %c0_0, %c0_1, %c0_2] : memref<1x32x32x64xf32, #tpu.memory_space<vmem>>, vector<1x32x32x64xf32>
    %1 = vector.shape_cast %0 : vector<1x32x32x64xf32> to vector<32x32x64xf32>
    %2 = vector.shape_cast %1 : vector<32x32x64xf32> to vector<1024x64xf32>
    %cst = arith.constant dense<0xFF800000> : vector<64xf32>
    %3 = vector.multi_reduction <maximumf>, %2, %cst [0] : vector<1024x64xf32> to vector<64xf32>
    %4 = vector.shape_cast %3 : vector<64xf32> to vector<1x64xf32>
    %cst_3 = arith.constant dense<0.000000e+00> : vector<64xf32>
    %5 = vector.multi_reduction <add>, %2, %cst_3 [0] : vector<1024x64xf32> to vector<64xf32>
    %6 = vector.shape_cast %5 : vector<64xf32> to vector<1x64xf32>
    %cst_4 = arith.constant 9.765625E-4 : f32
    %7 = vector.broadcast %cst_4 : f32 to vector<1x64xf32>
    %8 = arith.mulf %6, %7 : vector<1x64xf32>
    %9 = tpu.concatenate %4, %8 in 0 : vector<1x64xf32>, vector<1x64xf32> -> vector<2x64xf32>
    %c0_5 = arith.constant 0 : index
    %c0_6 = arith.constant 0 : index
    %10 = vector.load %arg2[%c0_5, %c0_6] : memref<64x8xf32, #tpu.memory_space<vmem>>, vector<64x8xf32>
    %cst_7 = arith.constant dense<0.000000e+00> : vector<2x8xf32>
    %11 = tpu.matmul %9, %10, %cst_7 {dimension_numbers = #tpu.dot_dimension_numbers<[1], [0], [0], [1], [0, 0, 1, 1], [], []>, precision = #tpu.contract_precision<fp32>} : vector<2x64xf32>, vector<64x8xf32>, vector<2x8xf32> -> vector<2x8xf32>
    %cst_8 = arith.constant 0.000000e+00 : f32
    %12 = vector.broadcast %cst_8 : f32 to vector<2x8xf32>
    %13 = arith.maximumf %11, %12 : vector<2x8xf32>
    %c0_9 = arith.constant 0 : index
    %c0_10 = arith.constant 0 : index
    %14 = vector.load %arg3[%c0_9, %c0_10] : memref<8x64xf32, #tpu.memory_space<vmem>>, vector<8x64xf32>
    %cst_11 = arith.constant dense<0.000000e+00> : vector<2x64xf32>
    %15 = tpu.matmul %13, %14, %cst_11 {dimension_numbers = #tpu.dot_dimension_numbers<[1], [0], [0], [1], [0, 0, 1, 1], [], []>, precision = #tpu.contract_precision<fp32>} : vector<2x8xf32>, vector<8x64xf32>, vector<2x64xf32> -> vector<2x64xf32>
    %16 = vector.extract_strided_slice %15 {offsets = [0, 0], sizes = [1, 64], strides = [1, 1]} : vector<2x64xf32> to vector<1x64xf32>
    %17 = vector.extract_strided_slice %15 {offsets = [1, 0], sizes = [1, 64], strides = [1, 1]} : vector<2x64xf32> to vector<1x64xf32>
    %18 = arith.addf %16, %17 : vector<1x64xf32>
    %19 = arith.negf %18 : vector<1x64xf32>
    %20 = math.exp %19 : vector<1x64xf32>
    %cst_12 = arith.constant 1.000000e+00 : f32
    %21 = vector.broadcast %cst_12 : f32 to vector<1x64xf32>
    %22 = arith.addf %21, %20 : vector<1x64xf32>
    %23 = arith.divf %21, %22 : vector<1x64xf32>
    %24 = vector.shape_cast %23 : vector<1x64xf32> to vector<1x1x64xf32>
    %25 = vector.broadcast %24 : vector<1x1x64xf32> to vector<32x32x64xf32>
    %26 = arith.mulf %1, %25 : vector<32x32x64xf32>
    %cst_13 = arith.constant dense<0xFF800000> : vector<32x32xf32>
    %27 = vector.multi_reduction <maximumf>, %26, %cst_13 [2] : vector<32x32x64xf32> to vector<32x32xf32>
    %cst_14 = arith.constant dense<0.000000e+00> : vector<32x32xf32>
    %28 = vector.multi_reduction <add>, %26, %cst_14 [2] : vector<32x32x64xf32> to vector<32x32xf32>
    %cst_15 = arith.constant 1.562500e-02 : f32
    %29 = vector.broadcast %cst_15 : f32 to vector<32x32xf32>
    %30 = arith.mulf %28, %29 : vector<32x32xf32>
    %cst_16 = arith.constant 0.000000e+00 : f32
    %31 = vector.broadcast %cst_16 : f32 to vector<32x3xf32>
    %cst_17 = arith.constant 0.000000e+00 : f32
    %32 = vector.broadcast %cst_17 : f32 to vector<32x29xf32>
    %cst_18 = arith.constant 0.000000e+00 : f32
    %33 = vector.broadcast %cst_18 : f32 to vector<32x3xf32>
    %cst_19 = arith.constant 0.000000e+00 : f32
    %34 = vector.broadcast %cst_19 : f32 to vector<32x29xf32>
    %35 = tpu.concatenate %31, %27, %32, %33, %30, %34 in 1 : vector<32x3xf32>, vector<32x32xf32>, vector<32x29xf32>, vector<32x3xf32>, vector<32x32xf32>, vector<32x29xf32> -> vector<32x128xf32>
    %cst_20 = arith.constant 0.000000e+00 : f32
    %36 = vector.broadcast %cst_20 : f32 to vector<3x128xf32>
    %37 = tpu.concatenate %36, %35, %36 in 0 : vector<3x128xf32>, vector<32x128xf32>, vector<3x128xf32> -> vector<38x128xf32>
    %c0_21 = arith.constant 0 : index
    %c0_22 = arith.constant 0 : index
    %38 = vector.load %arg6[%c0_21, %c0_22] : memref<38x128xf32, #tpu.memory_space<vmem>>, vector<38x128xf32>
    tpu.vector_store %arg6[%c0_21, %c0_22], %37 {strides = array<i32>} : memref<38x128xf32, #tpu.memory_space<vmem>>, vector<38x128xf32>,
    %cst_23 = arith.constant 0.000000e+00 : f32
    %39 = vector.broadcast %cst_23 : f32 to vector<32x128xf32>
    %cst_24 = arith.constant 0.000000e+00 : f32
    %40 = vector.broadcast %cst_24 : f32 to vector<32x128xf32>
    %c0_25 = arith.constant 0 : index
    %c0_26 = arith.constant 0 : index
    %41 = vector.load %arg4[%c0_25, %c0_26] : memref<49x128xf32, #tpu.memory_space<vmem>>, vector<1x128xf32>
    %c0_27 = arith.constant 0 : index
    %c0_28 = arith.constant 0 : index
    %42 = vector.load %arg6[%c0_27, %c0_28] : memref<38x128xf32, #tpu.memory_space<vmem>>, vector<32x128xf32>
    %43 = vector.broadcast %41 : vector<1x128xf32> to vector<32x128xf32>
    %44 = arith.mulf %43, %42 : vector<32x128xf32>
    %45 = arith.addf %40, %44 : vector<32x128xf32>
    %c7 = arith.constant 7 : index
    %c0_29 = arith.constant 0 : index
    %46 = vector.load %arg4[%c7, %c0_29] : memref<49x128xf32, #tpu.memory_space<vmem>>, vector<1x128xf32>
    %c1 = arith.constant 1 : index
    %c0_30 = arith.constant 0 : index
    %47 = vector.load %arg6[%c1, %c0_30] : memref<38x128xf32, #tpu.memory_space<vmem>>, vector<32x128xf32>
    %48 = vector.broadcast %46 : vector<1x128xf32> to vector<32x128xf32>
    %49 = arith.mulf %48, %47 : vector<32x128xf32>
    %50 = arith.addf %45, %49 : vector<32x128xf32>
    %c14 = arith.constant 14 : index
    %c0_31 = arith.constant 0 : index
    %51 = vector.load %arg4[%c14, %c0_31] : memref<49x128xf32, #tpu.memory_space<vmem>>, vector<1x128xf32>
    %c2 = arith.constant 2 : index
    %c0_32 = arith.constant 0 : index
    %52 = vector.load %arg6[%c2, %c0_32] : memref<38x128xf32, #tpu.memory_space<vmem>>, vector<32x128xf32>
    %53 = vector.broadcast %51 : vector<1x128xf32> to vector<32x128xf32>
    %54 = arith.mulf %53, %52 : vector<32x128xf32>
    %55 = arith.addf %50, %54 : vector<32x128xf32>
    %c21 = arith.constant 21 : index
    %c0_33 = arith.constant 0 : index
    %56 = vector.load %arg4[%c21, %c0_33] : memref<49x128xf32, #tpu.memory_space<vmem>>, vector<1x128xf32>
    %c3 = arith.constant 3 : index
    %c0_34 = arith.constant 0 : index
    %57 = vector.load %arg6[%c3, %c0_34] : memref<38x128xf32, #tpu.memory_space<vmem>>, vector<32x128xf32>
    %58 = vector.broadcast %56 : vector<1x128xf32> to vector<32x128xf32>
    %59 = arith.mulf %58, %57 : vector<32x128xf32>
    %60 = arith.addf %55, %59 : vector<32x128xf32>
    %c28 = arith.constant 28 : index
    %c0_35 = arith.constant 0 : index
    %61 = vector.load %arg4[%c28, %c0_35] : memref<49x128xf32, #tpu.memory_space<vmem>>, vector<1x128xf32>
    %c4 = arith.constant 4 : index
    %c0_36 = arith.constant 0 : index
    %62 = vector.load %arg6[%c4, %c0_36] : memref<38x128xf32, #tpu.memory_space<vmem>>, vector<32x128xf32>
    %63 = vector.broadcast %61 : vector<1x128xf32> to vector<32x128xf32>
    %64 = arith.mulf %63, %62 : vector<32x128xf32>
    %65 = arith.addf %60, %64 : vector<32x128xf32>
    %c35 = arith.constant 35 : index
    %c0_37 = arith.constant 0 : index
    %66 = vector.load %arg4[%c35, %c0_37] : memref<49x128xf32, #tpu.memory_space<vmem>>, vector<1x128xf32>
    %c5 = arith.constant 5 : index
    %c0_38 = arith.constant 0 : index
    %67 = vector.load %arg6[%c5, %c0_38] : memref<38x128xf32, #tpu.memory_space<vmem>>, vector<32x128xf32>
    %68 = vector.broadcast %66 : vector<1x128xf32> to vector<32x128xf32>
    %69 = arith.mulf %68, %67 : vector<32x128xf32>
    %70 = arith.addf %65, %69 : vector<32x128xf32>
    %c42 = arith.constant 42 : index
    %c0_39 = arith.constant 0 : index
    %71 = vector.load %arg4[%c42, %c0_39] : memref<49x128xf32, #tpu.memory_space<vmem>>, vector<1x128xf32>
    %c6 = arith.constant 6 : index
    %c0_40 = arith.constant 0 : index
    %72 = vector.load %arg6[%c6, %c0_40] : memref<38x128xf32, #tpu.memory_space<vmem>>, vector<32x128xf32>
    %73 = vector.broadcast %71 : vector<1x128xf32> to vector<32x128xf32>
    %74 = arith.mulf %73, %72 : vector<32x128xf32>
    %75 = arith.addf %70, %74 : vector<32x128xf32>
    %76 = arith.addf %39, %75 : vector<32x128xf32>
    %cst_41 = arith.constant 0.000000e+00 : f32
    %77 = vector.broadcast %cst_41 : f32 to vector<32x128xf32>
    %c1_42 = arith.constant 1 : index
    %c0_43 = arith.constant 0 : index
    %78 = vector.load %arg4[%c1_42, %c0_43] : memref<49x128xf32, #tpu.memory_space<vmem>>, vector<1x128xf32>
    %c0_44 = arith.constant 0 : index
    %c0_45 = arith.constant 0 : index
    %79 = vector.load %arg6[%c0_44, %c0_45] : memref<38x128xf32, #tpu.memory_space<vmem>>, vector<32x128xf32>
    %80 = vector.broadcast %78 : vector<1x128xf32> to vector<32x128xf32>
    %81 = arith.mulf %80, %79 : vector<32x128xf32>
    %82 = arith.addf %77, %81 : vector<32x128xf32>
    %c8 = arith.constant 8 : index
    %c0_46 = arith.constant 0 : index
    %83 = vector.load %arg4[%c8, %c0_46] : memref<49x128xf32, #tpu.memory_space<vmem>>, vector<1x128xf32>
    %c1_47 = arith.constant 1 : index
    %c0_48 = arith.constant 0 : index
    %84 = vector.load %arg6[%c1_47, %c0_48] : memref<38x128xf32, #tpu.memory_space<vmem>>, vector<32x128xf32>
    %85 = vector.broadcast %83 : vector<1x128xf32> to vector<32x128xf32>
    %86 = arith.mulf %85, %84 : vector<32x128xf32>
    %87 = arith.addf %82, %86 : vector<32x128xf32>
    %c15 = arith.constant 15 : index
    %c0_49 = arith.constant 0 : index
    %88 = vector.load %arg4[%c15, %c0_49] : memref<49x128xf32, #tpu.memory_space<vmem>>, vector<1x128xf32>
    %c2_50 = arith.constant 2 : index
    %c0_51 = arith.constant 0 : index
    %89 = vector.load %arg6[%c2_50, %c0_51] : memref<38x128xf32, #tpu.memory_space<vmem>>, vector<32x128xf32>
    %90 = vector.broadcast %88 : vector<1x128xf32> to vector<32x128xf32>
    %91 = arith.mulf %90, %89 : vector<32x128xf32>
    %92 = arith.addf %87, %91 : vector<32x128xf32>
    %c22 = arith.constant 22 : index
    %c0_52 = arith.constant 0 : index
    %93 = vector.load %arg4[%c22, %c0_52] : memref<49x128xf32, #tpu.memory_space<vmem>>, vector<1x128xf32>
    %c3_53 = arith.constant 3 : index
    %c0_54 = arith.constant 0 : index
    %94 = vector.load %arg6[%c3_53, %c0_54] : memref<38x128xf32, #tpu.memory_space<vmem>>, vector<32x128xf32>
    %95 = vector.broadcast %93 : vector<1x128xf32> to vector<32x128xf32>
    %96 = arith.mulf %95, %94 : vector<32x128xf32>
    %97 = arith.addf %92, %96 : vector<32x128xf32>
    %c29 = arith.constant 29 : index
    %c0_55 = arith.constant 0 : index
    %98 = vector.load %arg4[%c29, %c0_55] : memref<49x128xf32, #tpu.memory_space<vmem>>, vector<1x128xf32>
    %c4_56 = arith.constant 4 : index
    %c0_57 = arith.constant 0 : index
    %99 = vector.load %arg6[%c4_56, %c0_57] : memref<38x128xf32, #tpu.memory_space<vmem>>, vector<32x128xf32>
    %100 = vector.broadcast %98 : vector<1x128xf32> to vector<32x128xf32>
    %101 = arith.mulf %100, %99 : vector<32x128xf32>
    %102 = arith.addf %97, %101 : vector<32x128xf32>
    %c36 = arith.constant 36 : index
    %c0_58 = arith.constant 0 : index
    %103 = vector.load %arg4[%c36, %c0_58] : memref<49x128xf32, #tpu.memory_space<vmem>>, vector<1x128xf32>
    %c5_59 = arith.constant 5 : index
    %c0_60 = arith.constant 0 : index
    %104 = vector.load %arg6[%c5_59, %c0_60] : memref<38x128xf32, #tpu.memory_space<vmem>>, vector<32x128xf32>
    %105 = vector.broadcast %103 : vector<1x128xf32> to vector<32x128xf32>
    %106 = arith.mulf %105, %104 : vector<32x128xf32>
    %107 = arith.addf %102, %106 : vector<32x128xf32>
    %c43 = arith.constant 43 : index
    %c0_61 = arith.constant 0 : index
    %108 = vector.load %arg4[%c43, %c0_61] : memref<49x128xf32, #tpu.memory_space<vmem>>, vector<1x128xf32>
    %c6_62 = arith.constant 6 : index
    %c0_63 = arith.constant 0 : index
    %109 = vector.load %arg6[%c6_62, %c0_63] : memref<38x128xf32, #tpu.memory_space<vmem>>, vector<32x128xf32>
    %110 = vector.broadcast %108 : vector<1x128xf32> to vector<32x128xf32>
    %111 = arith.mulf %110, %109 : vector<32x128xf32>
    %112 = arith.addf %107, %111 : vector<32x128xf32>
    %113 = vector.extract_strided_slice %112 {offsets = [0, 1], sizes = [32, 127], strides = [1, 1]} : vector<32x128xf32> to vector<32x127xf32>
    %114 = vector.extract_strided_slice %112 {offsets = [0, 0], sizes = [32, 1], strides = [1, 1]} : vector<32x128xf32> to vector<32x1xf32>
    %115 = tpu.concatenate %113, %114 in 1 : vector<32x127xf32>, vector<32x1xf32> -> vector<32x128xf32>
    %116 = arith.addf %76, %115 : vector<32x128xf32>
    %cst_64 = arith.constant 0.000000e+00 : f32
    %117 = vector.broadcast %cst_64 : f32 to vector<32x128xf32>
    %c2_65 = arith.constant 2 : index
    %c0_66 = arith.constant 0 : index
    %118 = vector.load %arg4[%c2_65, %c0_66] : memref<49x128xf32, #tpu.memory_space<vmem>>, vector<1x128xf32>
    %c0_67 = arith.constant 0 : index
    %c0_68 = arith.constant 0 : index
    %119 = vector.load %arg6[%c0_67, %c0_68] : memref<38x128xf32, #tpu.memory_space<vmem>>, vector<32x128xf32>
    %120 = vector.broadcast %118 : vector<1x128xf32> to vector<32x128xf32>
    %121 = arith.mulf %120, %119 : vector<32x128xf32>
    %122 = arith.addf %117, %121 : vector<32x128xf32>
    %c9 = arith.constant 9 : index
    %c0_69 = arith.constant 0 : index
    %123 = vector.load %arg4[%c9, %c0_69] : memref<49x128xf32, #tpu.memory_space<vmem>>, vector<1x128xf32>
    %c1_70 = arith.constant 1 : index
    %c0_71 = arith.constant 0 : index
    %124 = vector.load %arg6[%c1_70, %c0_71] : memref<38x128xf32, #tpu.memory_space<vmem>>, vector<32x128xf32>
    %125 = vector.broadcast %123 : vector<1x128xf32> to vector<32x128xf32>
    %126 = arith.mulf %125, %124 : vector<32x128xf32>
    %127 = arith.addf %122, %126 : vector<32x128xf32>
    %c16 = arith.constant 16 : index
    %c0_72 = arith.constant 0 : index
    %128 = vector.load %arg4[%c16, %c0_72] : memref<49x128xf32, #tpu.memory_space<vmem>>, vector<1x128xf32>
    %c2_73 = arith.constant 2 : index
    %c0_74 = arith.constant 0 : index
    %129 = vector.load %arg6[%c2_73, %c0_74] : memref<38x128xf32, #tpu.memory_space<vmem>>, vector<32x128xf32>
    %130 = vector.broadcast %128 : vector<1x128xf32> to vector<32x128xf32>
    %131 = arith.mulf %130, %129 : vector<32x128xf32>
    %132 = arith.addf %127, %131 : vector<32x128xf32>
    %c23 = arith.constant 23 : index
    %c0_75 = arith.constant 0 : index
    %133 = vector.load %arg4[%c23, %c0_75] : memref<49x128xf32, #tpu.memory_space<vmem>>, vector<1x128xf32>
    %c3_76 = arith.constant 3 : index
    %c0_77 = arith.constant 0 : index
    %134 = vector.load %arg6[%c3_76, %c0_77] : memref<38x128xf32, #tpu.memory_space<vmem>>, vector<32x128xf32>
    %135 = vector.broadcast %133 : vector<1x128xf32> to vector<32x128xf32>
    %136 = arith.mulf %135, %134 : vector<32x128xf32>
    %137 = arith.addf %132, %136 : vector<32x128xf32>
    %c30 = arith.constant 30 : index
    %c0_78 = arith.constant 0 : index
    %138 = vector.load %arg4[%c30, %c0_78] : memref<49x128xf32, #tpu.memory_space<vmem>>, vector<1x128xf32>
    %c4_79 = arith.constant 4 : index
    %c0_80 = arith.constant 0 : index
    %139 = vector.load %arg6[%c4_79, %c0_80] : memref<38x128xf32, #tpu.memory_space<vmem>>, vector<32x128xf32>
    %140 = vector.broadcast %138 : vector<1x128xf32> to vector<32x128xf32>
    %141 = arith.mulf %140, %139 : vector<32x128xf32>
    %142 = arith.addf %137, %141 : vector<32x128xf32>
    %c37 = arith.constant 37 : index
    %c0_81 = arith.constant 0 : index
    %143 = vector.load %arg4[%c37, %c0_81] : memref<49x128xf32, #tpu.memory_space<vmem>>, vector<1x128xf32>
    %c5_82 = arith.constant 5 : index
    %c0_83 = arith.constant 0 : index
    %144 = vector.load %arg6[%c5_82, %c0_83] : memref<38x128xf32, #tpu.memory_space<vmem>>, vector<32x128xf32>
    %145 = vector.broadcast %143 : vector<1x128xf32> to vector<32x128xf32>
    %146 = arith.mulf %145, %144 : vector<32x128xf32>
    %147 = arith.addf %142, %146 : vector<32x128xf32>
    %c44 = arith.constant 44 : index
    %c0_84 = arith.constant 0 : index
    %148 = vector.load %arg4[%c44, %c0_84] : memref<49x128xf32, #tpu.memory_space<vmem>>, vector<1x128xf32>
    %c6_85 = arith.constant 6 : index
    %c0_86 = arith.constant 0 : index
    %149 = vector.load %arg6[%c6_85, %c0_86] : memref<38x128xf32, #tpu.memory_space<vmem>>, vector<32x128xf32>
    %150 = vector.broadcast %148 : vector<1x128xf32> to vector<32x128xf32>
    %151 = arith.mulf %150, %149 : vector<32x128xf32>
    %152 = arith.addf %147, %151 : vector<32x128xf32>
    %153 = vector.extract_strided_slice %152 {offsets = [0, 2], sizes = [32, 126], strides = [1, 1]} : vector<32x128xf32> to vector<32x126xf32>
    %154 = vector.extract_strided_slice %152 {offsets = [0, 0], sizes = [32, 2], strides = [1, 1]} : vector<32x128xf32> to vector<32x2xf32>
    %155 = tpu.concatenate %153, %154 in 1 : vector<32x126xf32>, vector<32x2xf32> -> vector<32x128xf32>
    %156 = arith.addf %116, %155 : vector<32x128xf32>
    %cst_87 = arith.constant 0.000000e+00 : f32
    %157 = vector.broadcast %cst_87 : f32 to vector<32x128xf32>
    %c3_88 = arith.constant 3 : index
    %c0_89 = arith.constant 0 : index
    %158 = vector.load %arg4[%c3_88, %c0_89] : memref<49x128xf32, #tpu.memory_space<vmem>>, vector<1x128xf32>
    %c0_90 = arith.constant 0 : index
    %c0_91 = arith.constant 0 : index
    %159 = vector.load %arg6[%c0_90, %c0_91] : memref<38x128xf32, #tpu.memory_space<vmem>>, vector<32x128xf32>
    %160 = vector.broadcast %158 : vector<1x128xf32> to vector<32x128xf32>
    %161 = arith.mulf %160, %159 : vector<32x128xf32>
    %162 = arith.addf %157, %161 : vector<32x128xf32>
    %c10 = arith.constant 10 : index
    %c0_92 = arith.constant 0 : index
    %163 = vector.load %arg4[%c10, %c0_92] : memref<49x128xf32, #tpu.memory_space<vmem>>, vector<1x128xf32>
    %c1_93 = arith.constant 1 : index
    %c0_94 = arith.constant 0 : index
    %164 = vector.load %arg6[%c1_93, %c0_94] : memref<38x128xf32, #tpu.memory_space<vmem>>, vector<32x128xf32>
    %165 = vector.broadcast %163 : vector<1x128xf32> to vector<32x128xf32>
    %166 = arith.mulf %165, %164 : vector<32x128xf32>
    %167 = arith.addf %162, %166 : vector<32x128xf32>
    %c17 = arith.constant 17 : index
    %c0_95 = arith.constant 0 : index
    %168 = vector.load %arg4[%c17, %c0_95] : memref<49x128xf32, #tpu.memory_space<vmem>>, vector<1x128xf32>
    %c2_96 = arith.constant 2 : index
    %c0_97 = arith.constant 0 : index
    %169 = vector.load %arg6[%c2_96, %c0_97] : memref<38x128xf32, #tpu.memory_space<vmem>>, vector<32x128xf32>
    %170 = vector.broadcast %168 : vector<1x128xf32> to vector<32x128xf32>
    %171 = arith.mulf %170, %169 : vector<32x128xf32>
    %172 = arith.addf %167, %171 : vector<32x128xf32>
    %c24 = arith.constant 24 : index
    %c0_98 = arith.constant 0 : index
    %173 = vector.load %arg4[%c24, %c0_98] : memref<49x128xf32, #tpu.memory_space<vmem>>, vector<1x128xf32>
    %c3_99 = arith.constant 3 : index
    %c0_100 = arith.constant 0 : index
    %174 = vector.load %arg6[%c3_99, %c0_100] : memref<38x128xf32, #tpu.memory_space<vmem>>, vector<32x128xf32>
    %175 = vector.broadcast %173 : vector<1x128xf32> to vector<32x128xf32>
    %176 = arith.mulf %175, %174 : vector<32x128xf32>
    %177 = arith.addf %172, %176 : vector<32x128xf32>
    %c31 = arith.constant 31 : index
    %c0_101 = arith.constant 0 : index
    %178 = vector.load %arg4[%c31, %c0_101] : memref<49x128xf32, #tpu.memory_space<vmem>>, vector<1x128xf32>
    %c4_102 = arith.constant 4 : index
    %c0_103 = arith.constant 0 : index
    %179 = vector.load %arg6[%c4_102, %c0_103] : memref<38x128xf32, #tpu.memory_space<vmem>>, vector<32x128xf32>
    %180 = vector.broadcast %178 : vector<1x128xf32> to vector<32x128xf32>
    %181 = arith.mulf %180, %179 : vector<32x128xf32>
    %182 = arith.addf %177, %181 : vector<32x128xf32>
    %c38 = arith.constant 38 : index
    %c0_104 = arith.constant 0 : index
    %183 = vector.load %arg4[%c38, %c0_104] : memref<49x128xf32, #tpu.memory_space<vmem>>, vector<1x128xf32>
    %c5_105 = arith.constant 5 : index
    %c0_106 = arith.constant 0 : index
    %184 = vector.load %arg6[%c5_105, %c0_106] : memref<38x128xf32, #tpu.memory_space<vmem>>, vector<32x128xf32>
    %185 = vector.broadcast %183 : vector<1x128xf32> to vector<32x128xf32>
    %186 = arith.mulf %185, %184 : vector<32x128xf32>
    %187 = arith.addf %182, %186 : vector<32x128xf32>
    %c45 = arith.constant 45 : index
    %c0_107 = arith.constant 0 : index
    %188 = vector.load %arg4[%c45, %c0_107] : memref<49x128xf32, #tpu.memory_space<vmem>>, vector<1x128xf32>
    %c6_108 = arith.constant 6 : index
    %c0_109 = arith.constant 0 : index
    %189 = vector.load %arg6[%c6_108, %c0_109] : memref<38x128xf32, #tpu.memory_space<vmem>>, vector<32x128xf32>
    %190 = vector.broadcast %188 : vector<1x128xf32> to vector<32x128xf32>
    %191 = arith.mulf %190, %189 : vector<32x128xf32>
    %192 = arith.addf %187, %191 : vector<32x128xf32>
    %193 = vector.extract_strided_slice %192 {offsets = [0, 3], sizes = [32, 125], strides = [1, 1]} : vector<32x128xf32> to vector<32x125xf32>
    %194 = vector.extract_strided_slice %192 {offsets = [0, 0], sizes = [32, 3], strides = [1, 1]} : vector<32x128xf32> to vector<32x3xf32>
    %195 = tpu.concatenate %193, %194 in 1 : vector<32x125xf32>, vector<32x3xf32> -> vector<32x128xf32>
    %196 = arith.addf %156, %195 : vector<32x128xf32>
    %cst_110 = arith.constant 0.000000e+00 : f32
    %197 = vector.broadcast %cst_110 : f32 to vector<32x128xf32>
    %c4_111 = arith.constant 4 : index
    %c0_112 = arith.constant 0 : index
    %198 = vector.load %arg4[%c4_111, %c0_112] : memref<49x128xf32, #tpu.memory_space<vmem>>, vector<1x128xf32>
    %c0_113 = arith.constant 0 : index
    %c0_114 = arith.constant 0 : index
    %199 = vector.load %arg6[%c0_113, %c0_114] : memref<38x128xf32, #tpu.memory_space<vmem>>, vector<32x128xf32>
    %200 = vector.broadcast %198 : vector<1x128xf32> to vector<32x128xf32>
    %201 = arith.mulf %200, %199 : vector<32x128xf32>
    %202 = arith.addf %197, %201 : vector<32x128xf32>
    %c11 = arith.constant 11 : index
    %c0_115 = arith.constant 0 : index
    %203 = vector.load %arg4[%c11, %c0_115] : memref<49x128xf32, #tpu.memory_space<vmem>>, vector<1x128xf32>
    %c1_116 = arith.constant 1 : index
    %c0_117 = arith.constant 0 : index
    %204 = vector.load %arg6[%c1_116, %c0_117] : memref<38x128xf32, #tpu.memory_space<vmem>>, vector<32x128xf32>
    %205 = vector.broadcast %203 : vector<1x128xf32> to vector<32x128xf32>
    %206 = arith.mulf %205, %204 : vector<32x128xf32>
    %207 = arith.addf %202, %206 : vector<32x128xf32>
    %c18 = arith.constant 18 : index
    %c0_118 = arith.constant 0 : index
    %208 = vector.load %arg4[%c18, %c0_118] : memref<49x128xf32, #tpu.memory_space<vmem>>, vector<1x128xf32>
    %c2_119 = arith.constant 2 : index
    %c0_120 = arith.constant 0 : index
    %209 = vector.load %arg6[%c2_119, %c0_120] : memref<38x128xf32, #tpu.memory_space<vmem>>, vector<32x128xf32>
    %210 = vector.broadcast %208 : vector<1x128xf32> to vector<32x128xf32>
    %211 = arith.mulf %210, %209 : vector<32x128xf32>
    %212 = arith.addf %207, %211 : vector<32x128xf32>
    %c25 = arith.constant 25 : index
    %c0_121 = arith.constant 0 : index
    %213 = vector.load %arg4[%c25, %c0_121] : memref<49x128xf32, #tpu.memory_space<vmem>>, vector<1x128xf32>
    %c3_122 = arith.constant 3 : index
    %c0_123 = arith.constant 0 : index
    %214 = vector.load %arg6[%c3_122, %c0_123] : memref<38x128xf32, #tpu.memory_space<vmem>>, vector<32x128xf32>
    %215 = vector.broadcast %213 : vector<1x128xf32> to vector<32x128xf32>
    %216 = arith.mulf %215, %214 : vector<32x128xf32>
    %217 = arith.addf %212, %216 : vector<32x128xf32>
    %c32 = arith.constant 32 : index
    %c0_124 = arith.constant 0 : index
    %218 = vector.load %arg4[%c32, %c0_124] : memref<49x128xf32, #tpu.memory_space<vmem>>, vector<1x128xf32>
    %c4_125 = arith.constant 4 : index
    %c0_126 = arith.constant 0 : index
    %219 = vector.load %arg6[%c4_125, %c0_126] : memref<38x128xf32, #tpu.memory_space<vmem>>, vector<32x128xf32>
    %220 = vector.broadcast %218 : vector<1x128xf32> to vector<32x128xf32>
    %221 = arith.mulf %220, %219 : vector<32x128xf32>
    %222 = arith.addf %217, %221 : vector<32x128xf32>
    %c39 = arith.constant 39 : index
    %c0_127 = arith.constant 0 : index
    %223 = vector.load %arg4[%c39, %c0_127] : memref<49x128xf32, #tpu.memory_space<vmem>>, vector<1x128xf32>
    %c5_128 = arith.constant 5 : index
    %c0_129 = arith.constant 0 : index
    %224 = vector.load %arg6[%c5_128, %c0_129] : memref<38x128xf32, #tpu.memory_space<vmem>>, vector<32x128xf32>
    %225 = vector.broadcast %223 : vector<1x128xf32> to vector<32x128xf32>
    %226 = arith.mulf %225, %224 : vector<32x128xf32>
    %227 = arith.addf %222, %226 : vector<32x128xf32>
    %c46 = arith.constant 46 : index
    %c0_130 = arith.constant 0 : index
    %228 = vector.load %arg4[%c46, %c0_130] : memref<49x128xf32, #tpu.memory_space<vmem>>, vector<1x128xf32>
    %c6_131 = arith.constant 6 : index
    %c0_132 = arith.constant 0 : index
    %229 = vector.load %arg6[%c6_131, %c0_132] : memref<38x128xf32, #tpu.memory_space<vmem>>, vector<32x128xf32>
    %230 = vector.broadcast %228 : vector<1x128xf32> to vector<32x128xf32>
    %231 = arith.mulf %230, %229 : vector<32x128xf32>
    %232 = arith.addf %227, %231 : vector<32x128xf32>
    %233 = vector.extract_strided_slice %232 {offsets = [0, 4], sizes = [32, 124], strides = [1, 1]} : vector<32x128xf32> to vector<32x124xf32>
    %234 = vector.extract_strided_slice %232 {offsets = [0, 0], sizes = [32, 4], strides = [1, 1]} : vector<32x128xf32> to vector<32x4xf32>
    %235 = tpu.concatenate %233, %234 in 1 : vector<32x124xf32>, vector<32x4xf32> -> vector<32x128xf32>
    %236 = arith.addf %196, %235 : vector<32x128xf32>
    %cst_133 = arith.constant 0.000000e+00 : f32
    %237 = vector.broadcast %cst_133 : f32 to vector<32x128xf32>
    %c5_134 = arith.constant 5 : index
    %c0_135 = arith.constant 0 : index
    %238 = vector.load %arg4[%c5_134, %c0_135] : memref<49x128xf32, #tpu.memory_space<vmem>>, vector<1x128xf32>
    %c0_136 = arith.constant 0 : index
    %c0_137 = arith.constant 0 : index
    %239 = vector.load %arg6[%c0_136, %c0_137] : memref<38x128xf32, #tpu.memory_space<vmem>>, vector<32x128xf32>
    %240 = vector.broadcast %238 : vector<1x128xf32> to vector<32x128xf32>
    %241 = arith.mulf %240, %239 : vector<32x128xf32>
    %242 = arith.addf %237, %241 : vector<32x128xf32>
    %c12 = arith.constant 12 : index
    %c0_138 = arith.constant 0 : index
    %243 = vector.load %arg4[%c12, %c0_138] : memref<49x128xf32, #tpu.memory_space<vmem>>, vector<1x128xf32>
    %c1_139 = arith.constant 1 : index
    %c0_140 = arith.constant 0 : index
    %244 = vector.load %arg6[%c1_139, %c0_140] : memref<38x128xf32, #tpu.memory_space<vmem>>, vector<32x128xf32>
    %245 = vector.broadcast %243 : vector<1x128xf32> to vector<32x128xf32>
    %246 = arith.mulf %245, %244 : vector<32x128xf32>
    %247 = arith.addf %242, %246 : vector<32x128xf32>
    %c19 = arith.constant 19 : index
    %c0_141 = arith.constant 0 : index
    %248 = vector.load %arg4[%c19, %c0_141] : memref<49x128xf32, #tpu.memory_space<vmem>>, vector<1x128xf32>
    %c2_142 = arith.constant 2 : index
    %c0_143 = arith.constant 0 : index
    %249 = vector.load %arg6[%c2_142, %c0_143] : memref<38x128xf32, #tpu.memory_space<vmem>>, vector<32x128xf32>
    %250 = vector.broadcast %248 : vector<1x128xf32> to vector<32x128xf32>
    %251 = arith.mulf %250, %249 : vector<32x128xf32>
    %252 = arith.addf %247, %251 : vector<32x128xf32>
    %c26 = arith.constant 26 : index
    %c0_144 = arith.constant 0 : index
    %253 = vector.load %arg4[%c26, %c0_144] : memref<49x128xf32, #tpu.memory_space<vmem>>, vector<1x128xf32>
    %c3_145 = arith.constant 3 : index
    %c0_146 = arith.constant 0 : index
    %254 = vector.load %arg6[%c3_145, %c0_146] : memref<38x128xf32, #tpu.memory_space<vmem>>, vector<32x128xf32>
    %255 = vector.broadcast %253 : vector<1x128xf32> to vector<32x128xf32>
    %256 = arith.mulf %255, %254 : vector<32x128xf32>
    %257 = arith.addf %252, %256 : vector<32x128xf32>
    %c33 = arith.constant 33 : index
    %c0_147 = arith.constant 0 : index
    %258 = vector.load %arg4[%c33, %c0_147] : memref<49x128xf32, #tpu.memory_space<vmem>>, vector<1x128xf32>
    %c4_148 = arith.constant 4 : index
    %c0_149 = arith.constant 0 : index
    %259 = vector.load %arg6[%c4_148, %c0_149] : memref<38x128xf32, #tpu.memory_space<vmem>>, vector<32x128xf32>
    %260 = vector.broadcast %258 : vector<1x128xf32> to vector<32x128xf32>
    %261 = arith.mulf %260, %259 : vector<32x128xf32>
    %262 = arith.addf %257, %261 : vector<32x128xf32>
    %c40 = arith.constant 40 : index
    %c0_150 = arith.constant 0 : index
    %263 = vector.load %arg4[%c40, %c0_150] : memref<49x128xf32, #tpu.memory_space<vmem>>, vector<1x128xf32>
    %c5_151 = arith.constant 5 : index
    %c0_152 = arith.constant 0 : index
    %264 = vector.load %arg6[%c5_151, %c0_152] : memref<38x128xf32, #tpu.memory_space<vmem>>, vector<32x128xf32>
    %265 = vector.broadcast %263 : vector<1x128xf32> to vector<32x128xf32>
    %266 = arith.mulf %265, %264 : vector<32x128xf32>
    %267 = arith.addf %262, %266 : vector<32x128xf32>
    %c47 = arith.constant 47 : index
    %c0_153 = arith.constant 0 : index
    %268 = vector.load %arg4[%c47, %c0_153] : memref<49x128xf32, #tpu.memory_space<vmem>>, vector<1x128xf32>
    %c6_154 = arith.constant 6 : index
    %c0_155 = arith.constant 0 : index
    %269 = vector.load %arg6[%c6_154, %c0_155] : memref<38x128xf32, #tpu.memory_space<vmem>>, vector<32x128xf32>
    %270 = vector.broadcast %268 : vector<1x128xf32> to vector<32x128xf32>
    %271 = arith.mulf %270, %269 : vector<32x128xf32>
    %272 = arith.addf %267, %271 : vector<32x128xf32>
    %273 = vector.extract_strided_slice %272 {offsets = [0, 5], sizes = [32, 123], strides = [1, 1]} : vector<32x128xf32> to vector<32x123xf32>
    %274 = vector.extract_strided_slice %272 {offsets = [0, 0], sizes = [32, 5], strides = [1, 1]} : vector<32x128xf32> to vector<32x5xf32>
    %275 = tpu.concatenate %273, %274 in 1 : vector<32x123xf32>, vector<32x5xf32> -> vector<32x128xf32>
    %276 = arith.addf %236, %275 : vector<32x128xf32>
    %cst_156 = arith.constant 0.000000e+00 : f32
    %277 = vector.broadcast %cst_156 : f32 to vector<32x128xf32>
    %c6_157 = arith.constant 6 : index
    %c0_158 = arith.constant 0 : index
    %278 = vector.load %arg4[%c6_157, %c0_158] : memref<49x128xf32, #tpu.memory_space<vmem>>, vector<1x128xf32>
    %c0_159 = arith.constant 0 : index
    %c0_160 = arith.constant 0 : index
    %279 = vector.load %arg6[%c0_159, %c0_160] : memref<38x128xf32, #tpu.memory_space<vmem>>, vector<32x128xf32>
    %280 = vector.broadcast %278 : vector<1x128xf32> to vector<32x128xf32>
    %281 = arith.mulf %280, %279 : vector<32x128xf32>
    %282 = arith.addf %277, %281 : vector<32x128xf32>
    %c13 = arith.constant 13 : index
    %c0_161 = arith.constant 0 : index
    %283 = vector.load %arg4[%c13, %c0_161] : memref<49x128xf32, #tpu.memory_space<vmem>>, vector<1x128xf32>
    %c1_162 = arith.constant 1 : index
    %c0_163 = arith.constant 0 : index
    %284 = vector.load %arg6[%c1_162, %c0_163] : memref<38x128xf32, #tpu.memory_space<vmem>>, vector<32x128xf32>
    %285 = vector.broadcast %283 : vector<1x128xf32> to vector<32x128xf32>
    %286 = arith.mulf %285, %284 : vector<32x128xf32>
    %287 = arith.addf %282, %286 : vector<32x128xf32>
    %c20 = arith.constant 20 : index
    %c0_164 = arith.constant 0 : index
    %288 = vector.load %arg4[%c20, %c0_164] : memref<49x128xf32, #tpu.memory_space<vmem>>, vector<1x128xf32>
    %c2_165 = arith.constant 2 : index
    %c0_166 = arith.constant 0 : index
    %289 = vector.load %arg6[%c2_165, %c0_166] : memref<38x128xf32, #tpu.memory_space<vmem>>, vector<32x128xf32>
    %290 = vector.broadcast %288 : vector<1x128xf32> to vector<32x128xf32>
    %291 = arith.mulf %290, %289 : vector<32x128xf32>
    %292 = arith.addf %287, %291 : vector<32x128xf32>
    %c27 = arith.constant 27 : index
    %c0_167 = arith.constant 0 : index
    %293 = vector.load %arg4[%c27, %c0_167] : memref<49x128xf32, #tpu.memory_space<vmem>>, vector<1x128xf32>
    %c3_168 = arith.constant 3 : index
    %c0_169 = arith.constant 0 : index
    %294 = vector.load %arg6[%c3_168, %c0_169] : memref<38x128xf32, #tpu.memory_space<vmem>>, vector<32x128xf32>
    %295 = vector.broadcast %293 : vector<1x128xf32> to vector<32x128xf32>
    %296 = arith.mulf %295, %294 : vector<32x128xf32>
    %297 = arith.addf %292, %296 : vector<32x128xf32>
    %c34 = arith.constant 34 : index
    %c0_170 = arith.constant 0 : index
    %298 = vector.load %arg4[%c34, %c0_170] : memref<49x128xf32, #tpu.memory_space<vmem>>, vector<1x128xf32>
    %c4_171 = arith.constant 4 : index
    %c0_172 = arith.constant 0 : index
    %299 = vector.load %arg6[%c4_171, %c0_172] : memref<38x128xf32, #tpu.memory_space<vmem>>, vector<32x128xf32>
    %300 = vector.broadcast %298 : vector<1x128xf32> to vector<32x128xf32>
    %301 = arith.mulf %300, %299 : vector<32x128xf32>
    %302 = arith.addf %297, %301 : vector<32x128xf32>
    %c41 = arith.constant 41 : index
    %c0_173 = arith.constant 0 : index
    %303 = vector.load %arg4[%c41, %c0_173] : memref<49x128xf32, #tpu.memory_space<vmem>>, vector<1x128xf32>
    %c5_174 = arith.constant 5 : index
    %c0_175 = arith.constant 0 : index
    %304 = vector.load %arg6[%c5_174, %c0_175] : memref<38x128xf32, #tpu.memory_space<vmem>>, vector<32x128xf32>
    %305 = vector.broadcast %303 : vector<1x128xf32> to vector<32x128xf32>
    %306 = arith.mulf %305, %304 : vector<32x128xf32>
    %307 = arith.addf %302, %306 : vector<32x128xf32>
    %c48 = arith.constant 48 : index
    %c0_176 = arith.constant 0 : index
    %308 = vector.load %arg4[%c48, %c0_176] : memref<49x128xf32, #tpu.memory_space<vmem>>, vector<1x128xf32>
    %c6_177 = arith.constant 6 : index
    %c0_178 = arith.constant 0 : index
    %309 = vector.load %arg6[%c6_177, %c0_178] : memref<38x128xf32, #tpu.memory_space<vmem>>, vector<32x128xf32>
    %310 = vector.broadcast %308 : vector<1x128xf32> to vector<32x128xf32>
    %311 = arith.mulf %310, %309 : vector<32x128xf32>
    %312 = arith.addf %307, %311 : vector<32x128xf32>
    %313 = vector.extract_strided_slice %312 {offsets = [0, 6], sizes = [32, 122], strides = [1, 1]} : vector<32x128xf32> to vector<32x122xf32>
    %314 = vector.extract_strided_slice %312 {offsets = [0, 0], sizes = [32, 6], strides = [1, 1]} : vector<32x128xf32> to vector<32x6xf32>
    %315 = tpu.concatenate %313, %314 in 1 : vector<32x122xf32>, vector<32x6xf32> -> vector<32x128xf32>
    %316 = arith.addf %276, %315 : vector<32x128xf32>
    %317 = vector.extract_strided_slice %316 {offsets = [0, 0], sizes = [32, 32], strides = [1, 1]} : vector<32x128xf32> to vector<32x32xf32>
    %318 = vector.extract_strided_slice %316 {offsets = [0, 64], sizes = [32, 32], strides = [1, 1]} : vector<32x128xf32> to vector<32x32xf32>
    %319 = arith.addf %317, %318 : vector<32x32xf32>
    %320 = arith.negf %319 : vector<32x32xf32>
    %321 = math.exp %320 : vector<32x32xf32>
    %cst_179 = arith.constant 1.000000e+00 : f32
    %322 = vector.broadcast %cst_179 : f32 to vector<32x32xf32>
    %323 = arith.addf %322, %321 : vector<32x32xf32>
    %324 = arith.divf %322, %323 : vector<32x32xf32>
    %325 = vector.shape_cast %324 : vector<32x32xf32> to vector<32x32x1xf32>
    %326 = vector.broadcast %325 : vector<32x32x1xf32> to vector<32x32x64xf32>
    %327 = arith.mulf %26, %326 : vector<32x32x64xf32>
    %c0_180 = arith.constant 0 : index
    %c0_181 = arith.constant 0 : index
    %c0_182 = arith.constant 0 : index
    %c0_183 = arith.constant 0 : index
    %328 = vector.load %arg5[%c0_180, %c0_181, %c0_182, %c0_183] : memref<1x32x32x64xf32, #tpu.memory_space<vmem>>, vector<1x32x32x64xf32>
    %329 = vector.shape_cast %328 : vector<1x32x32x64xf32> to vector<32x32x64xf32>
    %330 = vector.shape_cast %327 : vector<32x32x64xf32> to vector<1x32x32x64xf32>
    tpu.vector_store %arg5[%c0_180, %c0_181, %c0_182, %c0_183], %330 {strides = array<i32>} : memref<1x32x32x64xf32, #tpu.memory_space<vmem>>, vector<1x32x32x64xf32>,
    return
  }
  func.func @transform_0(%arg0: i32) -> (i32, i32, i32, i32) {
    %c0_i32 = arith.constant 0 : i32
    %c0_i32_0 = arith.constant 0 : i32
    %c0_i32_1 = arith.constant 0 : i32
    %c0_i32_2 = arith.constant 0 : i32
    return %arg0, %c0_i32, %c0_i32_0, %c0_i32_1 : i32, i32, i32, i32
  }
  func.func @transform_1(%arg0: i32) -> (i32, i32) {
    %c0_i32 = arith.constant 0 : i32
    %c0_i32_0 = arith.constant 0 : i32
    %c0_i32_1 = arith.constant 0 : i32
    return %c0_i32, %c0_i32_0 : i32, i32
  }
  func.func @transform_2(%arg0: i32) -> (i32, i32) {
    %c0_i32 = arith.constant 0 : i32
    %c0_i32_0 = arith.constant 0 : i32
    %c0_i32_1 = arith.constant 0 : i32
    return %c0_i32, %c0_i32_0 : i32, i32
  }
  func.func @transform_3(%arg0: i32) -> (i32, i32) {
    %c0_i32 = arith.constant 0 : i32
    %c0_i32_0 = arith.constant 0 : i32
    %c0_i32_1 = arith.constant 0 : i32
    return %c0_i32, %c0_i32_0 : i32, i32
  }
  func.func @transform_4(%arg0: i32) -> (i32, i32, i32, i32) {
    %c0_i32 = arith.constant 0 : i32
    %c0_i32_0 = arith.constant 0 : i32
    %c0_i32_1 = arith.constant 0 : i32
    %c0_i32_2 = arith.constant 0 : i32
    return %arg0, %c0_i32, %c0_i32_0, %c0_i32_1 : i32, i32, i32, i32
  }
}

</mosaic_0001>

<llo_original>
// kernel: cbam.1
$region0: #{cbam.1}
  #allocation0 [shape = 'u32[]', space=smem, size = 0x4, offset = 0x4, fixed_abs, tag = 'smem constant byte address 0x4 - core index']
  #allocation1 [shape = 'u32[144,128]{1,0:T(1,128)}', space=vmem, size = 0x12000, scoped, tag = 'internal scratch']
  #allocation2 [shape = 'f32[38,128]{1,0:T(8,128)}', space=vmem, size = 0x5000, scoped, tag = 'scratch operand']
  %s0 = inlined_call_operand.hbm [shape: f32[2,32,32,64], index: 0, kind: input, shape index: {}]
  %s1 = inlined_call_operand.vmem [shape: f32[64,8], index: 1, kind: input, shape index: {}]
  %s2 = inlined_call_operand.vmem [shape: f32[8,64], index: 2, kind: input, shape index: {}]
  %s3 = inlined_call_operand.vmem [shape: f32[49,128], index: 3, kind: input, shape index: {}]
  %s4 = inlined_call_operand.hbm [shape: f32[2,32,32,64], index: 4, kind: output, shape index: {}]
  %s5 = sld [smem:[#allocation0]]
  $region53: #{cbam.1} parent=0
    _
  %s7 = ssub.s32 1, %s5
  %s8 = scalar_select 0, %s7, %s5
  $region1: #{cbam.1} parent=0
    #allocation3 [shape = 'u8[1048576]{0}', space=vmem, size = 0x100000, scoped, tag = 'input window, operand 0']
    #allocation4 [shape = 's32[2]{0}', space=sflag, size = 0x8, scoped, tag = 'scoped memory for cbam.1']
    #allocation5 [shape = 's32[2]{0}', space=sflag, size = 0x8, scoped, tag = 'scoped memory for cbam.1']
    #allocation6 [shape = 'u8[1048576]{0}', space=vmem, size = 0x100000, scoped, tag = 'output window, operand 0']
    %9 = vsyncpa [#allocation4], 0
    %s10 = scalar_lea.sflag [#allocation4], 1
    %11 = vsyncpa %s10, 0
    %12 = vsyncpa [#allocation5], 0
    %s13 = scalar_lea.sflag [#allocation5], 1
    %14 = vsyncpa %s13, 0
    loop: start=0, step=1, limit=4
    $region2: #{cbam.1} parent=1 // loop_pre_header
      _
    $region3: #{cbam.1} parent=1 // loop_header
      %s16 = sphi 0, %s20
      %p17 = scmp.ge.s32.totalorder %s16, 4
      %s26 = sphi 0, %s28
      %s29 = sphi 0, %s26
      %s30 = sphi 0, %s29
      %s46 = sphi 0, %s30
      %s50 = sphi 0, %s50
      %s52 = sphi 0, %s50
      %s53 = sphi 0, %s52
      %s67 = sphi 0, %s53
      %s71 = sphi 0, %s71
      %s73 = sphi 0, %s71
      %s74 = sphi 0, %s73
      %s88 = sphi 0, %s74
      %s92 = sphi 0, %s92
      %s94 = sphi 0, %s92
      %s95 = sphi 0, %s94
      %s109 = sphi 0, %s95
      %s115 = sphi 0, %s117
      %s118 = sphi 0, %s115
      %s119 = sphi 0, %s118
      %s135 = sphi 0, %s119
    $region4: #{cbam.1} parent=1 // loop_header_branch
      %19 = sbr.rel (%p17) target = $region8
    $region5: #{cbam.1} parent=1 // loop_body
      %s21 = ssub.s32 %s16, 1
      %s22 = ssub.s32 %s16, 2
      %s23 = sadd.s32 %s16, 1
      %s24 = ssub.s32 %s16, %s23
      %p25 = scmp.eq.s32.totalorder %s24, 0
      %s27 = sadd.s32 %s26, 1
      %s28 = scalar_select %p25, %s26, %s27
      %p31 = pneg %p25
      %p32 = scmp.eq.s32.totalorder %s16, 1
      %p33 = por %p31, %p32
      %p34 = scmp.ne.s32.totalorder %s26, %s29
      %p35 = scmp.eq.s32.totalorder %s16, 0
      %p36 = por %p34, %p35
      %p37 = scmp.ne.s32.totalorder %s26, %s29
      %p38 = scmp.eq.s32.totalorder %s21, 1
      %p39 = por %p37, %p38
      %p40 = scmp.ne.s32.totalorder %s29, %s30
      %p41 = scmp.eq.s32.totalorder %s21, 0
      %p42 = por %p40, %p41
      %p43 = scmp.ne.s32.totalorder %s29, %s30
      %p44 = scmp.eq.s32.totalorder %s22, 1
      %p45 = por %p43, %p44
      %p47 = scmp.ne.s32.totalorder %s30, %s46
      %p48 = scmp.eq.s32.totalorder %s22, 0
      %p49 = por %p47, %p48
      %s51 = sadd.s32 %s50, 1
      %p54 = scmp.eq.s32.totalorder %s16, 1
      %p55 = scmp.ne.s32.totalorder %s50, %s52
      %p56 = scmp.eq.s32.totalorder %s16, 0
      %p57 = por %p55, %p56
      %p58 = scmp.ne.s32.totalorder %s50, %s52
      %p59 = scmp.eq.s32.totalorder %s21, 1
      %p60 = por %p58, %p59
      %p61 = scmp.ne.s32.totalorder %s52, %s53
      %p62 = scmp.eq.s32.totalorder %s21, 0
      %p63 = por %p61, %p62
      %p64 = scmp.ne.s32.totalorder %s52, %s53
      %p65 = scmp.eq.s32.totalorder %s22, 1
      %p66 = por %p64, %p65
      %p68 = scmp.ne.s32.totalorder %s53, %s67
      %p69 = scmp.eq.s32.totalorder %s22, 0
      %p70 = por %p68, %p69
      %s72 = sadd.s32 %s71, 1
      %p75 = scmp.eq.s32.totalorder %s16, 1
      %p76 = scmp.ne.s32.totalorder %s71, %s73
      %p77 = scmp.eq.s32.totalorder %s16, 0
      %p78 = por %p76, %p77
      %p79 = scmp.ne.s32.totalorder %s71, %s73
      %p80 = scmp.eq.s32.totalorder %s21, 1
      %p81 = por %p79, %p80
      %p82 = scmp.ne.s32.totalorder %s73, %s74
      %p83 = scmp.eq.s32.totalorder %s21, 0
      %p84 = por %p82, %p83
      %p85 = scmp.ne.s32.totalorder %s73, %s74
      %p86 = scmp.eq.s32.totalorder %s22, 1
      %p87 = por %p85, %p86
      %p89 = scmp.ne.s32.totalorder %s74, %s88
      %p90 = scmp.eq.s32.totalorder %s22, 0
      %p91 = por %p89, %p90
      %s93 = sadd.s32 %s92, 1
      %p96 = scmp.eq.s32.totalorder %s16, 1
      %p97 = scmp.ne.s32.totalorder %s92, %s94
      %p98 = scmp.eq.s32.totalorder %s16, 0
      %p99 = por %p97, %p98
      %p100 = scmp.ne.s32.totalorder %s92, %s94
      %p101 = scmp.eq.s32.totalorder %s21, 1
      %p102 = por %p100, %p101
      %p103 = scmp.ne.s32.totalorder %s94, %s95
      %p104 = scmp.eq.s32.totalorder %s21, 0
      %p105 = por %p103, %p104
      %p106 = scmp.ne.s32.totalorder %s94, %s95
      %p107 = scmp.eq.s32.totalorder %s22, 1
      %p108 = por %p106, %p107
      %p110 = scmp.ne.s32.totalorder %s95, %s109
      %p111 = scmp.eq.s32.totalorder %s22, 0
      %p112 = por %p110, %p111
      %s113 = ssub.s32 %s16, %s23
      %p114 = scmp.eq.s32.totalorder %s113, 0
      %s116 = sadd.s32 %s115, 1
      %s117 = scalar_select %p114, %s115, %s116
      %p120 = pneg %p114
      %p121 = scmp.eq.s32.totalorder %s16, 1
      %p122 = por %p120, %p121
      %p123 = scmp.ne.s32.totalorder %s115, %s118
      %p124 = scmp.eq.s32.totalorder %s16, 0
      %p125 = por %p123, %p124
      %p126 = scmp.ne.s32.totalorder %s115, %s118
      %p127 = scmp.eq.s32.totalorder %s21, 1
      %p128 = por %p126, %p127
      %p129 = scmp.ne.s32.totalorder %s118, %s119
      %p130 = scmp.eq.s32.totalorder %s21, 0
      %p131 = por %p129, %p130
      %p132 = scmp.ne.s32.totalorder %s118, %s119
      %p133 = scmp.eq.s32.totalorder %s22, 1
      %p134 = por %p132, %p133
      %p136 = scmp.ne.s32.totalorder %s119, %s135
      %p137 = scmp.eq.s32.totalorder %s22, 0
      %p138 = por %p136, %p137
      %p139 = scmp.le.s32.totalorder 1, %s16
      %p140 = scmp.lt.s32.totalorder %s16, 3
      %p141 = pnand %p139, %p140
      %p142 = pneg %p141
      // Predicated region
      $region9: #{cbam.1} parent=5 // pred_check
        _
      $region10: #{cbam.1} parent=5 // pred_check_branch
        %144 = sbr.rel (%p141) target = $region12
      $region11: #{cbam.1} parent=5 // pred_region
        %s145 = ssub.s32 %s16, 1
        // Predicated region
        $region13: #{cbam.1} parent=11 // pred_check
          %p146 = pneg %p63
        $region14: #{cbam.1} parent=11 // pred_check_branch
          %148 = sbr.rel (%p146) target = $region16
        $region15: #{cbam.1} parent=11 // pred_region
          _
        $region16: #{cbam.1} parent=11 // pred_fallthru
          _
        // Predicated region
        $region17: #{cbam.1} parent=11 // pred_check
          %p149 = pneg %p84
        $region18: #{cbam.1} parent=11 // pred_check_branch
          %151 = sbr.rel (%p149) target = $region20
        $region19: #{cbam.1} parent=11 // pred_region
          _
        $region20: #{cbam.1} parent=11 // pred_fallthru
          _
        // Predicated region
        $region21: #{cbam.1} parent=11 // pred_check
          %p152 = pneg %p105
        $region22: #{cbam.1} parent=11 // pred_check_branch
          %154 = sbr.rel (%p152) target = $region24
        $region23: #{cbam.1} parent=11 // pred_region
          _
        $region24: #{cbam.1} parent=11 // pred_fallthru
          _
      $region12: #{cbam.1} parent=5 // pred_fallthru
        _
      %p155 = scmp.lt.s32.totalorder %s16, 2
      // Predicated region
      $region25: #{cbam.1} parent=5 // pred_check
        %p156 = pneg %p155
      $region26: #{cbam.1} parent=5 // pred_check_branch
        %158 = sbr.rel (%p156) target = $region28
      $region27: #{cbam.1} parent=5 // pred_region
        // Predicated region
        $region29: #{cbam.1} parent=27 // pred_check
          %p159 = pneg %p36
        $region30: #{cbam.1} parent=27 // pred_check_branch
          %161 = sbr.rel (%p159) target = $region32
        $region31: #{cbam.1} parent=27 // pred_region
          %s162 = sand.u32 %s26, 1
          %s163 = scalar_lea.sflag [#allocation4], %s162
          %s164 = sand.u32 %s26, 1
          %s165 = smul.addr %s164, 1024
          %s166 = scalar_lea.vmem [#allocation3], %s165
          %s168 = ssub.s32 16384, 16384
          %169 = vsyncadd %s163, %s168
          %s170 = smul.addr %s16, 128
          %s171 = smul.addr %s170, 128
          %s172 = scalar_lea.hbm %s0, %s171
          %s173 = sshll.u32 %s166, 4
          %s174 = int_to_ptr.vmem [resolvable:$true] %s173
          %179 = dma.hbm_to_vmem [thread:$0]  %s172, 16384, %s174, %s163, 128, 128, 8
        $region32: #{cbam.1} parent=27 // pred_fallthru
          _
      $region28: #{cbam.1} parent=5 // pred_fallthru
        _
      %p180 = scmp.le.s32.totalorder 1, %s16
      %p181 = scmp.lt.s32.totalorder %s16, 3
      %p182 = pnand %p180, %p181
      %p183 = pneg %p182
      // Predicated region
      $region33: #{cbam.1} parent=5 // pred_check
        _
      $region34: #{cbam.1} parent=5 // pred_check_branch
        %185 = sbr.rel (%p182) target = $region36
      $region35: #{cbam.1} parent=5 // pred_region
        %s186 = ssub.s32 %s16, 1
        %s187 = sand.u32 %s29, 1
        %s188 = scalar_lea.sflag [#allocation4], %s187
        %s189 = sand.u32 %s29, 1
        %s190 = smul.addr %s189, 1024
        %s191 = scalar_lea.vmem [#allocation3], %s190
        // Predicated region
        $region37: #{cbam.1} parent=35 // pred_check
          %p192 = pneg %p42
        $region38: #{cbam.1} parent=35 // pred_check_branch
          %194 = sbr.rel (%p192) target = $region40
        $region39: #{cbam.1} parent=35 // pred_region
          %195 = dma.done %s188, 16384
        $region40: #{cbam.1} parent=35 // pred_fallthru
          _
        %s196 = sand.u32 %s29, 1
        %s197 = scalar_lea.sflag [#allocation4], %s196
        %s198 = sand.u32 %s29, 1
        %s199 = smul.addr %s198, 1024
        %s200 = scalar_lea.vmem [#allocation3], %s199
        %p201 = pneg %p42
        %p202 = pneg %p39
        %p203 = pneg %p63
        %p204 = pneg %p60
        %p205 = pneg %p84
        %p206 = pneg %p81
        %p207 = pneg %p105
        %p208 = pneg %p102
        %p209 = pneg %p131
        %p210 = pneg %p128
        %s211 = sand.u32 %s118, 1
        %s212 = scalar_lea.sflag [#allocation5], %s211
        %s213 = sand.u32 %s118, 1
        %s214 = smul.addr %s213, 1024
        %s215 = scalar_lea.vmem [#allocation6], %s214
        %v216 = vld [vmem:[%s191] sm:$0xff]
        %v217 = vld [vmem:[%s191 + $0x8] sm:$0xff]
        %v218 = vld [vmem:[%s191 + $0x10] sm:$0xff]
        %v219 = vld [vmem:[%s191 + $0x18] sm:$0xff]
        %v220 = vld [vmem:[%s191 + $0x20] sm:$0xff]
        %v221 = vld [vmem:[%s191 + $0x28] sm:$0xff]
        %v222 = vld [vmem:[%s191 + $0x30] sm:$0xff]
        %v223 = vld [vmem:[%s191 + $0x38] sm:$0xff]
        %v224 = vld [vmem:[%s191 + $0x40] sm:$0xff]
        %v225 = vld [vmem:[%s191 + $0x48] sm:$0xff]
        %v226 = vld [vmem:[%s191 + $0x50] sm:$0xff]
        %v227 = vld [vmem:[%s191 + $0x58] sm:$0xff]
        %v228 = vld [vmem:[%s191 + $0x60] sm:$0xff]
        %v229 = vld [vmem:[%s191 + $0x68] sm:$0xff]
        %v230 = vld [vmem:[%s191 + $0x70] sm:$0xff]
        %v231 = vld [vmem:[%s191 + $0x78] sm:$0xff]
        %v232 = vld [vmem:[%s191 + $0x80] sm:$0xff]
        %v233 = vld [vmem:[%s191 + $0x88] sm:$0xff]
        %v234 = vld [vmem:[%s191 + $0x90] sm:$0xff]
        %v235 = vld [vmem:[%s191 + $0x98] sm:$0xff]
        %v236 = vld [vmem:[%s191 + $0xa0] sm:$0xff]
        %v237 = vld [vmem:[%s191 + $0xa8] sm:$0xff]
        %v238 = vld [vmem:[%s191 + $0xb0] sm:$0xff]
        %v239 = vld [vmem:[%s191 + $0xb8] sm:$0xff]
        %v240 = vld [vmem:[%s191 + $0xc0] sm:$0xff]
        %v241 = vld [vmem:[%s191 + $0xc8] sm:$0xff]
        %v242 = vld [vmem:[%s191 + $0xd0] sm:$0xff]
        %v243 = vld [vmem:[%s191 + $0xd8] sm:$0xff]
        %v244 = vld [vmem:[%s191 + $0xe0] sm:$0xff]
        %v245 = vld [vmem:[%s191 + $0xe8] sm:$0xff]
        %v246 = vld [vmem:[%s191 + $0xf0] sm:$0xff]
        %v247 = vld [vmem:[%s191 + $0xf8] sm:$0xff]
        %v248 = vld [vmem:[%s191 + $0x100] sm:$0xff]
        %v249 = vld [vmem:[%s191 + $0x108] sm:$0xff]
        %v250 = vld [vmem:[%s191 + $0x110] sm:$0xff]
        %v251 = vld [vmem:[%s191 + $0x118] sm:$0xff]
        %v252 = vld [vmem:[%s191 + $0x120] sm:$0xff]
        %v253 = vld [vmem:[%s191 + $0x128] sm:$0xff]
        %v254 = vld [vmem:[%s191 + $0x130] sm:$0xff]
        %v255 = vld [vmem:[%s191 + $0x138] sm:$0xff]
        %v256 = vld [vmem:[%s191 + $0x140] sm:$0xff]
        %v257 = vld [vmem:[%s191 + $0x148] sm:$0xff]
        %v258 = vld [vmem:[%s191 + $0x150] sm:$0xff]
        %v259 = vld [vmem:[%s191 + $0x158] sm:$0xff]
        %v260 = vld [vmem:[%s191 + $0x160] sm:$0xff]
        %v261 = vld [vmem:[%s191 + $0x168] sm:$0xff]
        %v262 = vld [vmem:[%s191 + $0x170] sm:$0xff]
        %v263 = vld [vmem:[%s191 + $0x178] sm:$0xff]
        %v264 = vld [vmem:[%s191 + $0x180] sm:$0xff]
        %v265 = vld [vmem:[%s191 + $0x188] sm:$0xff]
        %v266 = vld [vmem:[%s191 + $0x190] sm:$0xff]
        %v267 = vld [vmem:[%s191 + $0x198] sm:$0xff]
        %v268 = vld [vmem:[%s191 + $0x1a0] sm:$0xff]
        %v269 = vld [vmem:[%s191 + $0x1a8] sm:$0xff]
        %v270 = vld [vmem:[%s191 + $0x1b0] sm:$0xff]
        %v271 = vld [vmem:[%s191 + $0x1b8] sm:$0xff]
        %v272 = vld [vmem:[%s191 + $0x1c0] sm:$0xff]
        %v273 = vld [vmem:[%s191 + $0x1c8] sm:$0xff]
        %v274 = vld [vmem:[%s191 + $0x1d0] sm:$0xff]
        %v275 = vld [vmem:[%s191 + $0x1d8] sm:$0xff]
        %v276 = vld [vmem:[%s191 + $0x1e0] sm:$0xff]
        %v277 = vld [vmem:[%s191 + $0x1e8] sm:$0xff]
        %v278 = vld [vmem:[%s191 + $0x1f0] sm:$0xff]
        %v279 = vld [vmem:[%s191 + $0x1f8] sm:$0xff]
        %v280 = vld [vmem:[%s191 + $0x200] sm:$0xff]
        %v281 = vld [vmem:[%s191 + $0x208] sm:$0xff]
        %v282 = vld [vmem:[%s191 + $0x210] sm:$0xff]
        %v283 = vld [vmem:[%s191 + $0x218] sm:$0xff]
        %v284 = vld [vmem:[%s191 + $0x220] sm:$0xff]
        %v285 = vld [vmem:[%s191 + $0x228] sm:$0xff]
        %v286 = vld [vmem:[%s191 + $0x230] sm:$0xff]
        %v287 = vld [vmem:[%s191 + $0x238] sm:$0xff]
        %v288 = vld [vmem:[%s191 + $0x240] sm:$0xff]
        %v289 = vld [vmem:[%s191 + $0x248] sm:$0xff]
        %v290 = vld [vmem:[%s191 + $0x250] sm:$0xff]
        %v291 = vld [vmem:[%s191 + $0x258] sm:$0xff]
        %v292 = vld [vmem:[%s191 + $0x260] sm:$0xff]
        %v293 = vld [vmem:[%s191 + $0x268] sm:$0xff]
        %v294 = vld [vmem:[%s191 + $0x270] sm:$0xff]
        %v295 = vld [vmem:[%s191 + $0x278] sm:$0xff]
        %v296 = vld [vmem:[%s191 + $0x280] sm:$0xff]
        %v297 = vld [vmem:[%s191 + $0x288] sm:$0xff]
        %v298 = vld [vmem:[%s191 + $0x290] sm:$0xff]
        %v299 = vld [vmem:[%s191 + $0x298] sm:$0xff]
        %v300 = vld [vmem:[%s191 + $0x2a0] sm:$0xff]
        %v301 = vld [vmem:[%s191 + $0x2a8] sm:$0xff]
        %v302 = vld [vmem:[%s191 + $0x2b0] sm:$0xff]
        %v303 = vld [vmem:[%s191 + $0x2b8] sm:$0xff]
        %v304 = vld [vmem:[%s191 + $0x2c0] sm:$0xff]
        %v305 = vld [vmem:[%s191 + $0x2c8] sm:$0xff]
        %v306 = vld [vmem:[%s191 + $0x2d0] sm:$0xff]
        %v307 = vld [vmem:[%s191 + $0x2d8] sm:$0xff]
        %v308 = vld [vmem:[%s191 + $0x2e0] sm:$0xff]
        %v309 = vld [vmem:[%s191 + $0x2e8] sm:$0xff]
        %v310 = vld [vmem:[%s191 + $0x2f0] sm:$0xff]
        %v311 = vld [vmem:[%s191 + $0x2f8] sm:$0xff]
        %v312 = vld [vmem:[%s191 + $0x300] sm:$0xff]
        %v313 = vld [vmem:[%s191 + $0x308] sm:$0xff]
        %v314 = vld [vmem:[%s191 + $0x310] sm:$0xff]
        %v315 = vld [vmem:[%s191 + $0x318] sm:$0xff]
        %v316 = vld [vmem:[%s191 + $0x320] sm:$0xff]
        %v317 = vld [vmem:[%s191 + $0x328] sm:$0xff]
        %v318 = vld [vmem:[%s191 + $0x330] sm:$0xff]
        %v319 = vld [vmem:[%s191 + $0x338] sm:$0xff]
        %v320 = vld [vmem:[%s191 + $0x340] sm:$0xff]
        %v321 = vld [vmem:[%s191 + $0x348] sm:$0xff]
        %v322 = vld [vmem:[%s191 + $0x350] sm:$0xff]
        %v323 = vld [vmem:[%s191 + $0x358] sm:$0xff]
        %v324 = vld [vmem:[%s191 + $0x360] sm:$0xff]
        %v325 = vld [vmem:[%s191 + $0x368] sm:$0xff]
        %v326 = vld [vmem:[%s191 + $0x370] sm:$0xff]
        %v327 = vld [vmem:[%s191 + $0x378] sm:$0xff]
        %v328 = vld [vmem:[%s191 + $0x380] sm:$0xff]
        %v329 = vld [vmem:[%s191 + $0x388] sm:$0xff]
        %v330 = vld [vmem:[%s191 + $0x390] sm:$0xff]
        %v331 = vld [vmem:[%s191 + $0x398] sm:$0xff]
        %v332 = vld [vmem:[%s191 + $0x3a0] sm:$0xff]
        %v333 = vld [vmem:[%s191 + $0x3a8] sm:$0xff]
        %v334 = vld [vmem:[%s191 + $0x3b0] sm:$0xff]
        %v335 = vld [vmem:[%s191 + $0x3b8] sm:$0xff]
        %v336 = vld [vmem:[%s191 + $0x3c0] sm:$0xff]
        %v337 = vld [vmem:[%s191 + $0x3c8] sm:$0xff]
        %v338 = vld [vmem:[%s191 + $0x3d0] sm:$0xff]
        %v339 = vld [vmem:[%s191 + $0x3d8] sm:$0xff]
        %v340 = vld [vmem:[%s191 + $0x3e0] sm:$0xff]
        %v341 = vld [vmem:[%s191 + $0x3e8] sm:$0xff]
        %v342 = vld [vmem:[%s191 + $0x3f0] sm:$0xff]
        %v343 = vld [vmem:[%s191 + $0x3f8] sm:$0xff]
        %vm344 = vcmask 523264
        %v345 = vsel %vm344, %v216, -inf
        %v346 = vsel %vm344, %v217, -inf
        %v347 = vsel %vm344, %v218, -inf
        %v348 = vsel %vm344, %v219, -inf
        %v349 = vsel %vm344, %v220, -inf
        %v350 = vmax.f32 %v345, %v349
        %v351 = vsel %vm344, %v221, -inf
        %v352 = vmax.f32 %v346, %v351
        %v353 = vsel %vm344, %v222, -inf
        %v354 = vmax.f32 %v347, %v353
        %v355 = vsel %vm344, %v223, -inf
        %v356 = vmax.f32 %v348, %v355
        %v357 = vsel %vm344, %v224, -inf
        %v358 = vmax.f32 %v350, %v357
        %v359 = vsel %vm344, %v225, -inf
        %v360 = vmax.f32 %v352, %v359
        %v361 = vsel %vm344, %v226, -inf
        %v362 = vmax.f32 %v354, %v361
        %v363 = vsel %vm344, %v227, -inf
        %v364 = vmax.f32 %v356, %v363
        %v365 = vsel %vm344, %v228, -inf
        %v366 = vmax.f32 %v358, %v365
        %v367 = vsel %vm344, %v229, -inf
        %v368 = vmax.f32 %v360, %v367
        %v369 = vsel %vm344, %v230, -inf
        %v370 = vmax.f32 %v362, %v369
        %v371 = vsel %vm344, %v231, -inf
        %v372 = vmax.f32 %v364, %v371
        %v373 = vsel %vm344, %v232, -inf
        %v374 = vmax.f32 %v366, %v373
        %v375 = vsel %vm344, %v233, -inf
        %v376 = vmax.f32 %v368, %v375
        %v377 = vsel %vm344, %v234, -inf
        %v378 = vmax.f32 %v370, %v377
        %v379 = vsel %vm344, %v235, -inf
        %v380 = vmax.f32 %v372, %v379
        %v381 = vsel %vm344, %v236, -inf
        %v382 = vmax.f32 %v374, %v381
        %v383 = vsel %vm344, %v237, -inf
        %v384 = vmax.f32 %v376, %v383
        %v385 = vsel %vm344, %v238, -inf
        %v386 = vmax.f32 %v378, %v385
        %v387 = vsel %vm344, %v239, -inf
        %v388 = vmax.f32 %v380, %v387
        %v389 = vsel %vm344, %v240, -inf
        %v390 = vmax.f32 %v382, %v389
        %v391 = vsel %vm344, %v241, -inf
        %v392 = vmax.f32 %v384, %v391
        %v393 = vsel %vm344, %v242, -inf
        %v394 = vmax.f32 %v386, %v393
        %v395 = vsel %vm344, %v243, -inf
        %v396 = vmax.f32 %v388, %v395
        %v397 = vsel %vm344, %v244, -inf
        %v398 = vmax.f32 %v390, %v397
        %v399 = vsel %vm344, %v245, -inf
        %v400 = vmax.f32 %v392, %v399
        %v401 = vsel %vm344, %v246, -inf
        %v402 = vmax.f32 %v394, %v401
        %v403 = vsel %vm344, %v247, -inf
        %v404 = vmax.f32 %v396, %v403
        %v405 = vsel %vm344, %v248, -inf
        %v406 = vmax.f32 %v398, %v405
        %v407 = vsel %vm344, %v249, -inf
        %v408 = vmax.f32 %v400, %v407
        %v409 = vsel %vm344, %v250, -inf
        %v410 = vmax.f32 %v402, %v409
        %v411 = vsel %vm344, %v251, -inf
        %v412 = vmax.f32 %v404, %v411
        %v413 = vsel %vm344, %v252, -inf
        %v414 = vmax.f32 %v406, %v413
        %v415 = vsel %vm344, %v253, -inf
        %v416 = vmax.f32 %v408, %v415
        %v417 = vsel %vm344, %v254, -inf
        %v418 = vmax.f32 %v410, %v417
        %v419 = vsel %vm344, %v255, -inf
        %v420 = vmax.f32 %v412, %v419
        %v421 = vsel %vm344, %v256, -inf
        %v422 = vmax.f32 %v414, %v421
        %v423 = vsel %vm344, %v257, -inf
        %v424 = vmax.f32 %v416, %v423
        %v425 = vsel %vm344, %v258, -inf
        %v426 = vmax.f32 %v418, %v425
        %v427 = vsel %vm344, %v259, -inf
        %v428 = vmax.f32 %v420, %v427
        %v429 = vsel %vm344, %v260, -inf
        %v430 = vmax.f32 %v422, %v429
        %v431 = vsel %vm344, %v261, -inf
        %v432 = vmax.f32 %v424, %v431
        %v433 = vsel %vm344, %v262, -inf
        %v434 = vmax.f32 %v426, %v433
        %v435 = vsel %vm344, %v263, -inf
        %v436 = vmax.f32 %v428, %v435
        %v437 = vsel %vm344, %v264, -inf
        %v438 = vmax.f32 %v430, %v437
        %v439 = vsel %vm344, %v265, -inf
        %v440 = vmax.f32 %v432, %v439
        %v441 = vsel %vm344, %v266, -inf
        %v442 = vmax.f32 %v434, %v441
        %v443 = vsel %vm344, %v267, -inf
        %v444 = vmax.f32 %v436, %v443
        %v445 = vsel %vm344, %v268, -inf
        %v446 = vmax.f32 %v438, %v445
        %v447 = vsel %vm344, %v269, -inf
        %v448 = vmax.f32 %v440, %v447
        %v449 = vsel %vm344, %v270, -inf
        %v450 = vmax.f32 %v442, %v449
        %v451 = vsel %vm344, %v271, -inf
        %v452 = vmax.f32 %v444, %v451
        %v453 = vsel %vm344, %v272, -inf
        %v454 = vmax.f32 %v446, %v453
        %v455 = vsel %vm344, %v273, -inf
        %v456 = vmax.f32 %v448, %v455
        %v457 = vsel %vm344, %v274, -inf
        %v458 = vmax.f32 %v450, %v457
        %v459 = vsel %vm344, %v275, -inf
        %v460 = vmax.f32 %v452, %v459
        %v461 = vsel %vm344, %v276, -inf
        %v462 = vmax.f32 %v454, %v461
        %v463 = vsel %vm344, %v277, -inf
        %v464 = vmax.f32 %v456, %v463
        %v465 = vsel %vm344, %v278, -inf
        %v466 = vmax.f32 %v458, %v465
        %v467 = vsel %vm344, %v279, -inf
        %v468 = vmax.f32 %v460, %v467
        %v469 = vsel %vm344, %v280, -inf
        %v470 = vmax.f32 %v462, %v469
        %v471 = vsel %vm344, %v281, -inf
        %v472 = vmax.f32 %v464, %v471
        %v473 = vsel %vm344, %v282, -inf
        %v474 = vmax.f32 %v466, %v473
        %v475 = vsel %vm344, %v283, -inf
        %v476 = vmax.f32 %v468, %v475
        %v477 = vsel %vm344, %v284, -inf
        %v478 = vmax.f32 %v470, %v477
        %v479 = vsel %vm344, %v285, -inf
        %v480 = vmax.f32 %v472, %v479
        %v481 = vsel %vm344, %v286, -inf
        %v482 = vmax.f32 %v474, %v481
        %v483 = vsel %vm344, %v287, -inf
        %v484 = vmax.f32 %v476, %v483
        %v485 = vsel %vm344, %v288, -inf
        %v486 = vmax.f32 %v478, %v485
        %v487 = vsel %vm344, %v289, -inf
        %v488 = vmax.f32 %v480, %v487
        %v489 = vsel %vm344, %v290, -inf
        %v490 = vmax.f32 %v482, %v489
        %v491 = vsel %vm344, %v291, -inf
        %v492 = vmax.f32 %v484, %v491
        %v493 = vsel %vm344, %v292, -inf
        %v494 = vmax.f32 %v486, %v493
        %v495 = vsel %vm344, %v293, -inf
        %v496 = vmax.f32 %v488, %v495
        %v497 = vsel %vm344, %v294, -inf
        %v498 = vmax.f32 %v490, %v497
        %v499 = vsel %vm344, %v295, -inf
        %v500 = vmax.f32 %v492, %v499
        %v501 = vsel %vm344, %v296, -inf
        %v502 = vmax.f32 %v494, %v501
        %v503 = vsel %vm344, %v297, -inf
        %v504 = vmax.f32 %v496, %v503
        %v505 = vsel %vm344, %v298, -inf
        %v506 = vmax.f32 %v498, %v505
        %v507 = vsel %vm344, %v299, -inf
        %v508 = vmax.f32 %v500, %v507
        %v509 = vsel %vm344, %v300, -inf
        %v510 = vmax.f32 %v502, %v509
        %v511 = vsel %vm344, %v301, -inf
        %v512 = vmax.f32 %v504, %v511
        %v513 = vsel %vm344, %v302, -inf
        %v514 = vmax.f32 %v506, %v513
        %v515 = vsel %vm344, %v303, -inf
        %v516 = vmax.f32 %v508, %v515
        %v517 = vsel %vm344, %v304, -inf
        %v518 = vmax.f32 %v510, %v517
        %v519 = vsel %vm344, %v305, -inf
        %v520 = vmax.f32 %v512, %v519
        %v521 = vsel %vm344, %v306, -inf
        %v522 = vmax.f32 %v514, %v521
        %v523 = vsel %vm344, %v307, -inf
        %v524 = vmax.f32 %v516, %v523
        %v525 = vsel %vm344, %v308, -inf
        %v526 = vmax.f32 %v518, %v525
        %v527 = vsel %vm344, %v309, -inf
        %v528 = vmax.f32 %v520, %v527
        %v529 = vsel %vm344, %v310, -inf
        %v530 = vmax.f32 %v522, %v529
        %v531 = vsel %vm344, %v311, -inf
        %v532 = vmax.f32 %v524, %v531
        %v533 = vsel %vm344, %v312, -inf
        %v534 = vmax.f32 %v526, %v533
        %v535 = vsel %vm344, %v313, -inf
        %v536 = vmax.f32 %v528, %v535
        %v537 = vsel %vm344, %v314, -inf
        %v538 = vmax.f32 %v530, %v537
        %v539 = vsel %vm344, %v315, -inf
        %v540 = vmax.f32 %v532, %v539
        %v541 = vsel %vm344, %v316, -inf
        %v542 = vmax.f32 %v534, %v541
        %v543 = vsel %vm344, %v317, -inf
        %v544 = vmax.f32 %v536, %v543
        %v545 = vsel %vm344, %v318, -inf
        %v546 = vmax.f32 %v538, %v545
        %v547 = vsel %vm344, %v319, -inf
        %v548 = vmax.f32 %v540, %v547
        %v549 = vsel %vm344, %v320, -inf
        %v550 = vmax.f32 %v542, %v549
        %v551 = vsel %vm344, %v321, -inf
        %v552 = vmax.f32 %v544, %v551
        %v553 = vsel %vm344, %v322, -inf
        %v554 = vmax.f32 %v546, %v553
        %v555 = vsel %vm344, %v323, -inf
        %v556 = vmax.f32 %v548, %v555
        %v557 = vsel %vm344, %v324, -inf
        %v558 = vmax.f32 %v550, %v557
        %v559 = vsel %vm344, %v325, -inf
        %v560 = vmax.f32 %v552, %v559
        %v561 = vsel %vm344, %v326, -inf
        %v562 = vmax.f32 %v554, %v561
        %v563 = vsel %vm344, %v327, -inf
        %v564 = vmax.f32 %v556, %v563
        %v565 = vsel %vm344, %v328, -inf
        %v566 = vmax.f32 %v558, %v565
        %v567 = vsel %vm344, %v329, -inf
        %v568 = vmax.f32 %v560, %v567
        %v569 = vsel %vm344, %v330, -inf
        %v570 = vmax.f32 %v562, %v569
        %v571 = vsel %vm344, %v331, -inf
        %v572 = vmax.f32 %v564, %v571
        %v573 = vsel %vm344, %v332, -inf
        %v574 = vmax.f32 %v566, %v573
        %v575 = vsel %vm344, %v333, -inf
        %v576 = vmax.f32 %v568, %v575
        %v577 = vsel %vm344, %v334, -inf
        %v578 = vmax.f32 %v570, %v577
        %v579 = vsel %vm344, %v335, -inf
        %v580 = vmax.f32 %v572, %v579
        %v581 = vsel %vm344, %v336, -inf
        %v582 = vmax.f32 %v574, %v581
        %v583 = vsel %vm344, %v337, -inf
        %v584 = vmax.f32 %v576, %v583
        %v585 = vsel %vm344, %v338, -inf
        %v586 = vmax.f32 %v578, %v585
        %v587 = vsel %vm344, %v339, -inf
        %v588 = vmax.f32 %v580, %v587
        %v589 = vsel %vm344, %v340, -inf
        %v590 = vmax.f32 %v582, %v589
        %v591 = vsel %vm344, %v341, -inf
        %v592 = vmax.f32 %v584, %v591
        %v593 = vsel %vm344, %v342, -inf
        %v594 = vmax.f32 %v586, %v593
        %v595 = vsel %vm344, %v343, -inf
        %v596 = vmax.f32 %v588, %v595
        %v597 = vmax.f32 %v590, %v592
        %v598 = vmax.f32 %v594, %v596
        %v599 = vmax.f32 %v597, %v598
        %v600 = vrot.slane %v599, 4
        %v601 = vmax.f32 %v599, %v600
        %v602 = vrot.slane %v601, 2
        %v603 = vmax.f32 %v601, %v602
        %v604 = vrot.slane %v603, 1
        %v605 = vmax.f32 %v603, %v604
        %v606 = vsel %vm344, %v216, 0.0
        %v607 = vsel %vm344, %v217, 0.0
        %v608 = vadd.f32 %v606, %v607
        %v609 = vsel %vm344, %v218, 0.0
        %v610 = vadd.f32 %v608, %v609
        %v611 = vsel %vm344, %v219, 0.0
        %v612 = vadd.f32 %v610, %v611
        %v613 = vsel %vm344, %v220, 0.0
        %v614 = vadd.f32 %v612, %v613
        %v615 = vsel %vm344, %v221, 0.0
        %v616 = vadd.f32 %v614, %v615
        %v617 = vsel %vm344, %v222, 0.0
        %v618 = vadd.f32 %v616, %v617
        %v619 = vsel %vm344, %v223, 0.0
        %v620 = vadd.f32 %v618, %v619
        %v621 = vsel %vm344, %v224, 0.0
        %v622 = vadd.f32 %v620, %v621
        %v623 = vsel %vm344, %v225, 0.0
        %v624 = vadd.f32 %v622, %v623
        %v625 = vsel %vm344, %v226, 0.0
        %v626 = vadd.f32 %v624, %v625
        %v627 = vsel %vm344, %v227, 0.0
        %v628 = vadd.f32 %v626, %v627
        %v629 = vsel %vm344, %v228, 0.0
        %v630 = vadd.f32 %v628, %v629
        %v631 = vsel %vm344, %v229, 0.0
        %v632 = vadd.f32 %v630, %v631
        %v633 = vsel %vm344, %v230, 0.0
        %v634 = vadd.f32 %v632, %v633
        %v635 = vsel %vm344, %v231, 0.0
        %v636 = vadd.f32 %v634, %v635
        %v637 = vsel %vm344, %v232, 0.0
        %v638 = vadd.f32 %v636, %v637
        %v639 = vsel %vm344, %v233, 0.0
        %v640 = vadd.f32 %v638, %v639
        %v641 = vsel %vm344, %v234, 0.0
        %v642 = vadd.f32 %v640, %v641
        %v643 = vsel %vm344, %v235, 0.0
        %v644 = vadd.f32 %v642, %v643
        %v645 = vsel %vm344, %v236, 0.0
        %v646 = vadd.f32 %v644, %v645
        %v647 = vsel %vm344, %v237, 0.0
        %v648 = vadd.f32 %v646, %v647
        %v649 = vsel %vm344, %v238, 0.0
        %v650 = vadd.f32 %v648, %v649
        %v651 = vsel %vm344, %v239, 0.0
        %v652 = vadd.f32 %v650, %v651
        %v653 = vsel %vm344, %v240, 0.0
        %v654 = vadd.f32 %v652, %v653
        %v655 = vsel %vm344, %v241, 0.0
        %v656 = vadd.f32 %v654, %v655
        %v657 = vsel %vm344, %v242, 0.0
        %v658 = vadd.f32 %v656, %v657
        %v659 = vsel %vm344, %v243, 0.0
        %v660 = vadd.f32 %v658, %v659
        %v661 = vsel %vm344, %v244, 0.0
        %v662 = vadd.f32 %v660, %v661
        %v663 = vsel %vm344, %v245, 0.0
        %v664 = vadd.f32 %v662, %v663
        %v665 = vsel %vm344, %v246, 0.0
        %v666 = vadd.f32 %v664, %v665
        %v667 = vsel %vm344, %v247, 0.0
        %v668 = vadd.f32 %v666, %v667
        %v669 = vsel %vm344, %v248, 0.0
        %v670 = vadd.f32 %v668, %v669
        %v671 = vsel %vm344, %v249, 0.0
        %v672 = vadd.f32 %v670, %v671
        %v673 = vsel %vm344, %v250, 0.0
        %v674 = vadd.f32 %v672, %v673
        %v675 = vsel %vm344, %v251, 0.0
        %v676 = vadd.f32 %v674, %v675
        %v677 = vsel %vm344, %v252, 0.0
        %v678 = vadd.f32 %v676, %v677
        %v679 = vsel %vm344, %v253, 0.0
        %v680 = vadd.f32 %v678, %v679
        %v681 = vsel %vm344, %v254, 0.0
        %v682 = vadd.f32 %v680, %v681
        %v683 = vsel %vm344, %v255, 0.0
        %v684 = vadd.f32 %v682, %v683
        %v685 = vsel %vm344, %v256, 0.0
        %v686 = vadd.f32 %v684, %v685
        %v687 = vsel %vm344, %v257, 0.0
        %v688 = vadd.f32 %v686, %v687
        %v689 = vsel %vm344, %v258, 0.0
        %v690 = vadd.f32 %v688, %v689
        %v691 = vsel %vm344, %v259, 0.0
        %v692 = vadd.f32 %v690, %v691
        %v693 = vsel %vm344, %v260, 0.0
        %v694 = vadd.f32 %v692, %v693
        %v695 = vsel %vm344, %v261, 0.0
        %v696 = vadd.f32 %v694, %v695
        %v697 = vsel %vm344, %v262, 0.0
        %v698 = vadd.f32 %v696, %v697
        %v699 = vsel %vm344, %v263, 0.0
        %v700 = vadd.f32 %v698, %v699
        %v701 = vsel %vm344, %v264, 0.0
        %v702 = vadd.f32 %v700, %v701
        %v703 = vsel %vm344, %v265, 0.0
        %v704 = vadd.f32 %v702, %v703
        %v705 = vsel %vm344, %v266, 0.0
        %v706 = vadd.f32 %v704, %v705
        %v707 = vsel %vm344, %v267, 0.0
        %v708 = vadd.f32 %v706, %v707
        %v709 = vsel %vm344, %v268, 0.0
        %v710 = vadd.f32 %v708, %v709
        %v711 = vsel %vm344, %v269, 0.0
        %v712 = vadd.f32 %v710, %v711
        %v713 = vsel %vm344, %v270, 0.0
        %v714 = vadd.f32 %v712, %v713
        %v715 = vsel %vm344, %v271, 0.0
        %v716 = vadd.f32 %v714, %v715
        %v717 = vsel %vm344, %v272, 0.0
        %v718 = vadd.f32 %v716, %v717
        %v719 = vsel %vm344, %v273, 0.0
        %v720 = vadd.f32 %v718, %v719
        %v721 = vsel %vm344, %v274, 0.0
        %v722 = vadd.f32 %v720, %v721
        %v723 = vsel %vm344, %v275, 0.0
        %v724 = vadd.f32 %v722, %v723
        %v725 = vsel %vm344, %v276, 0.0
        %v726 = vadd.f32 %v724, %v725
        %v727 = vsel %vm344, %v277, 0.0
        %v728 = vadd.f32 %v726, %v727
        %v729 = vsel %vm344, %v278, 0.0
        %v730 = vadd.f32 %v728, %v729
        %v731 = vsel %vm344, %v279, 0.0
        %v732 = vadd.f32 %v730, %v731
        %v733 = vsel %vm344, %v280, 0.0
        %v734 = vadd.f32 %v732, %v733
        %v735 = vsel %vm344, %v281, 0.0
        %v736 = vadd.f32 %v734, %v735
        %v737 = vsel %vm344, %v282, 0.0
        %v738 = vadd.f32 %v736, %v737
        %v739 = vsel %vm344, %v283, 0.0
        %v740 = vadd.f32 %v738, %v739
        %v741 = vsel %vm344, %v284, 0.0
        %v742 = vadd.f32 %v740, %v741
        %v743 = vsel %vm344, %v285, 0.0
        %v744 = vadd.f32 %v742, %v743
        %v745 = vsel %vm344, %v286, 0.0
        %v746 = vadd.f32 %v744, %v745
        %v747 = vsel %vm344, %v287, 0.0
        %v748 = vadd.f32 %v746, %v747
        %v749 = vsel %vm344, %v288, 0.0
        %v750 = vadd.f32 %v748, %v749
        %v751 = vsel %vm344, %v289, 0.0
        %v752 = vadd.f32 %v750, %v751
        %v753 = vsel %vm344, %v290, 0.0
        %v754 = vadd.f32 %v752, %v753
        %v755 = vsel %vm344, %v291, 0.0
        %v756 = vadd.f32 %v754, %v755
        %v757 = vsel %vm344, %v292, 0.0
        %v758 = vadd.f32 %v756, %v757
        %v759 = vsel %vm344, %v293, 0.0
        %v760 = vadd.f32 %v758, %v759
        %v761 = vsel %vm344, %v294, 0.0
        %v762 = vadd.f32 %v760, %v761
        %v763 = vsel %vm344, %v295, 0.0
        %v764 = vadd.f32 %v762, %v763
        %v765 = vsel %vm344, %v296, 0.0
        %v766 = vadd.f32 %v764, %v765
        %v767 = vsel %vm344, %v297, 0.0
        %v768 = vadd.f32 %v766, %v767
        %v769 = vsel %vm344, %v298, 0.0
        %v770 = vadd.f32 %v768, %v769
        %v771 = vsel %vm344, %v299, 0.0
        %v772 = vadd.f32 %v770, %v771
        %v773 = vsel %vm344, %v300, 0.0
        %v774 = vadd.f32 %v772, %v773
        %v775 = vsel %vm344, %v301, 0.0
        %v776 = vadd.f32 %v774, %v775
        %v777 = vsel %vm344, %v302, 0.0
        %v778 = vadd.f32 %v776, %v777
        %v779 = vsel %vm344, %v303, 0.0
        %v780 = vadd.f32 %v778, %v779
        %v781 = vsel %vm344, %v304, 0.0
        %v782 = vadd.f32 %v780, %v781
        %v783 = vsel %vm344, %v305, 0.0
        %v784 = vadd.f32 %v782, %v783
        %v785 = vsel %vm344, %v306, 0.0
        %v786 = vadd.f32 %v784, %v785
        %v787 = vsel %vm344, %v307, 0.0
        %v788 = vadd.f32 %v786, %v787
        %v789 = vsel %vm344, %v308, 0.0
        %v790 = vadd.f32 %v788, %v789
        %v791 = vsel %vm344, %v309, 0.0
        %v792 = vadd.f32 %v790, %v791
        %v793 = vsel %vm344, %v310, 0.0
        %v794 = vadd.f32 %v792, %v793
        %v795 = vsel %vm344, %v311, 0.0
        %v796 = vadd.f32 %v794, %v795
        %v797 = vsel %vm344, %v312, 0.0
        %v798 = vadd.f32 %v796, %v797
        %v799 = vsel %vm344, %v313, 0.0
        %v800 = vadd.f32 %v798, %v799
        %v801 = vsel %vm344, %v314, 0.0
        %v802 = vadd.f32 %v800, %v801
        %v803 = vsel %vm344, %v315, 0.0
        %v804 = vadd.f32 %v802, %v803
        %v805 = vsel %vm344, %v316, 0.0
        %v806 = vadd.f32 %v804, %v805
        %v807 = vsel %vm344, %v317, 0.0
        %v808 = vadd.f32 %v806, %v807
        %v809 = vsel %vm344, %v318, 0.0
        %v810 = vadd.f32 %v808, %v809
        %v811 = vsel %vm344, %v319, 0.0
        %v812 = vadd.f32 %v810, %v811
        %v813 = vsel %vm344, %v320, 0.0
        %v814 = vadd.f32 %v812, %v813
        %v815 = vsel %vm344, %v321, 0.0
        %v816 = vadd.f32 %v814, %v815
        %v817 = vsel %vm344, %v322, 0.0
        %v818 = vadd.f32 %v816, %v817
        %v819 = vsel %vm344, %v323, 0.0
        %v820 = vadd.f32 %v818, %v819
        %v821 = vsel %vm344, %v324, 0.0
        %v822 = vadd.f32 %v820, %v821
        %v823 = vsel %vm344, %v325, 0.0
        %v824 = vadd.f32 %v822, %v823
        %v825 = vsel %vm344, %v326, 0.0
        %v826 = vadd.f32 %v824, %v825
        %v827 = vsel %vm344, %v327, 0.0
        %v828 = vadd.f32 %v826, %v827
        %v829 = vsel %vm344, %v328, 0.0
        %v830 = vadd.f32 %v828, %v829
        %v831 = vsel %vm344, %v329, 0.0
        %v832 = vadd.f32 %v830, %v831
        %v833 = vsel %vm344, %v330, 0.0
        %v834 = vadd.f32 %v832, %v833
        %v835 = vsel %vm344, %v331, 0.0
        %v836 = vadd.f32 %v834, %v835
        %v837 = vsel %vm344, %v332, 0.0
        %v838 = vadd.f32 %v836, %v837
        %v839 = vsel %vm344, %v333, 0.0
        %v840 = vadd.f32 %v838, %v839
        %v841 = vsel %vm344, %v334, 0.0
        %v842 = vadd.f32 %v840, %v841
        %v843 = vsel %vm344, %v335, 0.0
        %v844 = vadd.f32 %v842, %v843
        %v845 = vsel %vm344, %v336, 0.0
        %v846 = vadd.f32 %v844, %v845
        %v847 = vsel %vm344, %v337, 0.0
        %v848 = vadd.f32 %v846, %v847
        %v849 = vsel %vm344, %v338, 0.0
        %v850 = vadd.f32 %v848, %v849
        %v851 = vsel %vm344, %v339, 0.0
        %v852 = vadd.f32 %v850, %v851
        %v853 = vsel %vm344, %v340, 0.0
        %v854 = vadd.f32 %v852, %v853
        %v855 = vsel %vm344, %v341, 0.0
        %v856 = vadd.f32 %v854, %v855
        %v857 = vsel %vm344, %v342, 0.0
        %v858 = vadd.f32 %v856, %v857
        %v859 = vsel %vm344, %v343, 0.0
        %v860 = vadd.f32 %v858, %v859
        %v861 = vrot.slane %v860, 4
        %v862 = vadd.f32 %v860, %v861
        %v863 = vrot.slane %v862, 2
        %v864 = vadd.f32 %v862, %v863
        %v865 = vrot.slane %v864, 1
        %v866 = vadd.f32 %v864, %v865
        %v867 = vmul.f32 %v866, 0.0009765625
        %vm868 = vcmask 1040384
        %v869 = vsel %vm868, %v605, %v867
        %v870 = vld [vmem:[%s1] sm:$0xff]
        %v871 = vld [vmem:[%s1 + $0x8] sm:$0xff]
        %v872 = vld [vmem:[%s1 + $0x10] sm:$0xff]
        %v873 = vld [vmem:[%s1 + $0x18] sm:$0xff]
        %v874 = vld [vmem:[%s1 + $0x20] sm:$0xff]
        %v875 = vld [vmem:[%s1 + $0x28] sm:$0xff]
        %v876 = vld [vmem:[%s1 + $0x30] sm:$0xff]
        %v877 = vld [vmem:[%s1 + $0x38] sm:$0xff]
        %v879 = vsel %vm344, %v869, 0
        %881 = vmatprep.subr.mxu0 0.0
        %882 = vmatpush1.msra.mxu0 0.0
        %883 = vmatprep.subr.mxu0 0.0
        %884 = vmatpush1.msra.mxu0 0.0
        %885 = vmatprep.subr.mxu0 0.0
        %886 = vmatpush1.msra.mxu0 0.0
        %887 = vmatprep.subr.mxu0 0.0
        %888 = vmatpush1.msra.mxu0 0.0
        %889 = vmatprep.subr.mxu0 0.0
        %890 = vmatpush1.msra.mxu0 0.0
        %891 = vmatprep.subr.mxu0 0.0
        %892 = vmatpush1.msra.mxu0 0.0
        %893 = vmatprep.subr.mxu0 0.0
        %894 = vmatpush1.msra.mxu0 0.0
        %895 = vmatprep.subr.mxu0 0.0
        %896 = vmatpush1.msra.mxu0 0.0
        %897 = vmatprep.subr.mxu0 0.0
        %v898 = vand.u32 %v877, 4294901760
        %899 = vmatpush1.msra.mxu0 %v898
        %900 = vmatprep.subr.mxu0 0.0
        %v901 = vand.u32 %v876, 4294901760
        %902 = vmatpush1.msra.mxu0 %v901
        %903 = vmatprep.subr.mxu0 0.0
        %v904 = vand.u32 %v875, 4294901760
        %905 = vmatpush1.msra.mxu0 %v904
        %906 = vmatprep.subr.mxu0 0.0
        %v907 = vand.u32 %v874, 4294901760
        %908 = vmatpush1.msra.mxu0 %v907
        %909 = vmatprep.subr.mxu0 0.0
        %v910 = vand.u32 %v873, 4294901760
        %911 = vmatpush1.msra.mxu0 %v910
        %912 = vmatprep.subr.mxu0 0.0
        %v913 = vand.u32 %v872, 4294901760
        %914 = vmatpush1.msra.mxu0 %v913
        %915 = vmatprep.subr.mxu0 0.0
        %v916 = vand.u32 %v871, 4294901760
        %917 = vmatpush1.msra.mxu0 %v916
        %918 = vmatprep.subr.mxu0 0.0
        %v919 = vand.u32 %v870, 4294901760
        %920 = vmatpush1.msra.mxu0 %v919
        %921 = vmatprep.subr.mxu0 0.0
        %922 = vmatpush2.msra.mxu0 0.0
        %923 = vmatprep.subr.mxu0 0.0
        %924 = vmatpush2.msra.mxu0 0.0
        %925 = vmatprep.subr.mxu0 0.0
        %926 = vmatpush2.msra.mxu0 0.0
        %927 = vmatprep.subr.mxu0 0.0
        %928 = vmatpush2.msra.mxu0 0.0
        %929 = vmatprep.subr.mxu0 0.0
        %930 = vmatpush2.msra.mxu0 0.0
        %931 = vmatprep.subr.mxu0 0.0
        %932 = vmatpush2.msra.mxu0 0.0
        %933 = vmatprep.subr.mxu0 0.0
        %934 = vmatpush2.msra.mxu0 0.0
        %935 = vmatprep.subr.mxu0 0.0
        %936 = vmatpush2.msra.mxu0 0.0
        %937 = vmatprep.subr.mxu0 0.0
        %938 = vmatpush2.msra.mxu0 0.0
        %939 = vmatprep.subr.mxu0 0.0
        %940 = vmatpush2.msra.mxu0 0.0
        %941 = vmatprep.subr.mxu0 0.0
        %942 = vmatpush2.msra.mxu0 0.0
        %943 = vmatprep.subr.mxu0 0.0
        %944 = vmatpush2.msra.mxu0 0.0
        %945 = vmatprep.subr.mxu0 0.0
        %946 = vmatpush2.msra.mxu0 0.0
        %947 = vmatprep.subr.mxu0 0.0
        %948 = vmatpush2.msra.mxu0 0.0
        %949 = vmatprep.subr.mxu0 0.0
        %950 = vmatpush2.msra.mxu0 0.0
        %951 = vmatprep.subr.mxu0 0.0
        %952 = vmatpush2.msra.mxu0 0.0
        %953 = vmatprep.mubr.f32.mxu0 0.0
        %v954 = vand.u32 %v879, 4294901760
        %v955 = vsub.f32 %v879, %v954
        %v956 = vand.u32 %v955, 4294901760
        %v957 = vsub.f32 %v955, %v956
        %v958 = vand.u32 %v957, 4294901760
        %959 = vmatmul.mubr.f32.gmra.mxu0 %v958
        %v960 = vpop.f32.mrf.mxu0
        %v961 = vadd.f32 0.0, %v960
        %v962 = vpop.f32.mrf.mxu0
        %963 = vdwg.mxu0
        %964 = vmatprep.subr.mxu0 0.0
        %965 = vmatpush1.msra.mxu0 0.0
        %966 = vmatprep.subr.mxu0 0.0
        %967 = vmatpush1.msra.mxu0 0.0
        %968 = vmatprep.subr.mxu0 0.0
        %969 = vmatpush1.msra.mxu0 0.0
        %970 = vmatprep.subr.mxu0 0.0
        %971 = vmatpush1.msra.mxu0 0.0
        %972 = vmatprep.subr.mxu0 0.0
        %973 = vmatpush1.msra.mxu0 0.0
        %974 = vmatprep.subr.mxu0 0.0
        %975 = vmatpush1.msra.mxu0 0.0
        %976 = vmatprep.subr.mxu0 0.0
        %977 = vmatpush1.msra.mxu0 0.0
        %978 = vmatprep.subr.mxu0 0.0
        %979 = vmatpush1.msra.mxu0 0.0
        %980 = vmatprep.subr.mxu0 0.0
        %v981 = vand.u32 %v877, 4294901760
        %v982 = vsub.f32 %v877, %v981
        %v983 = vand.u32 %v982, 4294901760
        %v984 = vsub.f32 %v982, %v983
        %v985 = vand.u32 %v984, 4294901760
        %986 = vmatpush1.msra.mxu0 %v985
        %987 = vmatprep.subr.mxu0 0.0
        %v988 = vand.u32 %v876, 4294901760
        %v989 = vsub.f32 %v876, %v988
        %v990 = vand.u32 %v989, 4294901760
        %v991 = vsub.f32 %v989, %v990
        %v992 = vand.u32 %v991, 4294901760
        %993 = vmatpush1.msra.mxu0 %v992
        %994 = vmatprep.subr.mxu0 0.0
        %v995 = vand.u32 %v875, 4294901760
        %v996 = vsub.f32 %v875, %v995
        %v997 = vand.u32 %v996, 4294901760
        %v998 = vsub.f32 %v996, %v997
        %v999 = vand.u32 %v998, 4294901760
        %1000 = vmatpush1.msra.mxu0 %v999
        %1001 = vmatprep.subr.mxu0 0.0
        %v1002 = vand.u32 %v874, 4294901760
        %v1003 = vsub.f32 %v874, %v1002
        %v1004 = vand.u32 %v1003, 4294901760
        %v1005 = vsub.f32 %v1003, %v1004
        %v1006 = vand.u32 %v1005, 4294901760
        %1007 = vmatpush1.msra.mxu0 %v1006
        %1008 = vmatprep.subr.mxu0 0.0
        %v1009 = vand.u32 %v873, 4294901760
        %v1010 = vsub.f32 %v873, %v1009
        %v1011 = vand.u32 %v1010, 4294901760
        %v1012 = vsub.f32 %v1010, %v1011
        %v1013 = vand.u32 %v1012, 4294901760
        %1014 = vmatpush1.msra.mxu0 %v1013
        %1015 = vmatprep.subr.mxu0 0.0
        %v1016 = vand.u32 %v872, 4294901760
        %v1017 = vsub.f32 %v872, %v1016
        %v1018 = vand.u32 %v1017, 4294901760
        %v1019 = vsub.f32 %v1017, %v1018
        %v1020 = vand.u32 %v1019, 4294901760
        %1021 = vmatpush1.msra.mxu0 %v1020
        %1022 = vmatprep.subr.mxu0 0.0
        %v1023 = vand.u32 %v871, 4294901760
        %v1024 = vsub.f32 %v871, %v1023
        %v1025 = vand.u32 %v1024, 4294901760
        %v1026 = vsub.f32 %v1024, %v1025
        %v1027 = vand.u32 %v1026, 4294901760
        %1028 = vmatpush1.msra.mxu0 %v1027
        %1029 = vmatprep.subr.mxu0 0.0
        %v1030 = vand.u32 %v870, 4294901760
        %v1031 = vsub.f32 %v870, %v1030
        %v1032 = vand.u32 %v1031, 4294901760
        %v1033 = vsub.f32 %v1031, %v1032
        %v1034 = vand.u32 %v1033, 4294901760
        %1035 = vmatpush1.msra.mxu0 %v1034
        %1036 = vmatprep.subr.mxu0 0.0
        %1037 = vmatpush2.msra.mxu0 0.0
        %1038 = vmatprep.subr.mxu0 0.0
        %1039 = vmatpush2.msra.mxu0 0.0
        %1040 = vmatprep.subr.mxu0 0.0
        %1041 = vmatpush2.msra.mxu0 0.0
        %1042 = vmatprep.subr.mxu0 0.0
        %1043 = vmatpush2.msra.mxu0 0.0
        %1044 = vmatprep.subr.mxu0 0.0
        %1045 = vmatpush2.msra.mxu0 0.0
        %1046 = vmatprep.subr.mxu0 0.0
        %1047 = vmatpush2.msra.mxu0 0.0
        %1048 = vmatprep.subr.mxu0 0.0
        %1049 = vmatpush2.msra.mxu0 0.0
        %1050 = vmatprep.subr.mxu0 0.0
        %1051 = vmatpush2.msra.mxu0 0.0
        %1052 = vmatprep.subr.mxu0 0.0
        %1053 = vmatpush2.msra.mxu0 0.0
        %1054 = vmatprep.subr.mxu0 0.0
        %1055 = vmatpush2.msra.mxu0 0.0
        %1056 = vmatprep.subr.mxu0 0.0
        %1057 = vmatpush2.msra.mxu0 0.0
        %1058 = vmatprep.subr.mxu0 0.0
        %1059 = vmatpush2.msra.mxu0 0.0
        %1060 = vmatprep.subr.mxu0 0.0
        %1061 = vmatpush2.msra.mxu0 0.0
        %1062 = vmatprep.subr.mxu0 0.0
        %1063 = vmatpush2.msra.mxu0 0.0
        %1064 = vmatprep.subr.mxu0 0.0
        %1065 = vmatpush2.msra.mxu0 0.0
        %1066 = vmatprep.subr.mxu0 0.0
        %1067 = vmatpush2.msra.mxu0 0.0
        %1068 = vmatprep.mubr.f32.mxu0 0.0
        %v1069 = vand.u32 %v879, 4294901760
        %1070 = vmatmul.mubr.f32.gmra.mxu0 %v1069
        %v1071 = vpop.f32.mrf.mxu0
        %v1072 = vadd.f32 %v961, %v1071
        %v1073 = vpop.f32.mrf.mxu0
        %1074 = vdwg.mxu0
        %1075 = vmatprep.subr.mxu0 0.0
        %1076 = vmatpush1.msra.mxu0 0.0
        %1077 = vmatprep.subr.mxu0 0.0
        %1078 = vmatpush1.msra.mxu0 0.0
        %1079 = vmatprep.subr.mxu0 0.0
        %1080 = vmatpush1.msra.mxu0 0.0
        %1081 = vmatprep.subr.mxu0 0.0
        %1082 = vmatpush1.msra.mxu0 0.0
        %1083 = vmatprep.subr.mxu0 0.0
        %1084 = vmatpush1.msra.mxu0 0.0
        %1085 = vmatprep.subr.mxu0 0.0
        %1086 = vmatpush1.msra.mxu0 0.0
        %1087 = vmatprep.subr.mxu0 0.0
        %1088 = vmatpush1.msra.mxu0 0.0
        %1089 = vmatprep.subr.mxu0 0.0
        %1090 = vmatpush1.msra.mxu0 0.0
        %1091 = vmatprep.subr.mxu0 0.0
        %v1092 = vand.u32 %v877, 4294901760
        %v1093 = vsub.f32 %v877, %v1092
        %1094 = vmatpush1.msra.mxu0 %v1093
        %1095 = vmatprep.subr.mxu0 0.0
        %v1096 = vand.u32 %v876, 4294901760
        %v1097 = vsub.f32 %v876, %v1096
        %1098 = vmatpush1.msra.mxu0 %v1097
        %1099 = vmatprep.subr.mxu0 0.0
        %v1100 = vand.u32 %v875, 4294901760
        %v1101 = vsub.f32 %v875, %v1100
        %1102 = vmatpush1.msra.mxu0 %v1101
        %1103 = vmatprep.subr.mxu0 0.0
        %v1104 = vand.u32 %v874, 4294901760
        %v1105 = vsub.f32 %v874, %v1104
        %1106 = vmatpush1.msra.mxu0 %v1105
        %1107 = vmatprep.subr.mxu0 0.0
        %v1108 = vand.u32 %v873, 4294901760
        %v1109 = vsub.f32 %v873, %v1108
        %1110 = vmatpush1.msra.mxu0 %v1109
        %1111 = vmatprep.subr.mxu0 0.0
        %v1112 = vand.u32 %v872, 4294901760
        %v1113 = vsub.f32 %v872, %v1112
        %1114 = vmatpush1.msra.mxu0 %v1113
        %1115 = vmatprep.subr.mxu0 0.0
        %v1116 = vand.u32 %v871, 4294901760
        %v1117 = vsub.f32 %v871, %v1116
        %1118 = vmatpush1.msra.mxu0 %v1117
        %1119 = vmatprep.subr.mxu0 0.0
        %v1120 = vand.u32 %v870, 4294901760
        %v1121 = vsub.f32 %v870, %v1120
        %1122 = vmatpush1.msra.mxu0 %v1121
        %1123 = vmatprep.subr.mxu0 0.0
        %1124 = vmatpush2.msra.mxu0 0.0
        %1125 = vmatprep.subr.mxu0 0.0
        %1126 = vmatpush2.msra.mxu0 0.0
        %1127 = vmatprep.subr.mxu0 0.0
        %1128 = vmatpush2.msra.mxu0 0.0
        %1129 = vmatprep.subr.mxu0 0.0
        %1130 = vmatpush2.msra.mxu0 0.0
        %1131 = vmatprep.subr.mxu0 0.0
        %1132 = vmatpush2.msra.mxu0 0.0
        %1133 = vmatprep.subr.mxu0 0.0
        %1134 = vmatpush2.msra.mxu0 0.0
        %1135 = vmatprep.subr.mxu0 0.0
        %1136 = vmatpush2.msra.mxu0 0.0
        %1137 = vmatprep.subr.mxu0 0.0
        %1138 = vmatpush2.msra.mxu0 0.0
        %1139 = vmatprep.subr.mxu0 0.0
        %1140 = vmatpush2.msra.mxu0 0.0
        %1141 = vmatprep.subr.mxu0 0.0
        %1142 = vmatpush2.msra.mxu0 0.0
        %1143 = vmatprep.subr.mxu0 0.0
        %1144 = vmatpush2.msra.mxu0 0.0
        %1145 = vmatprep.subr.mxu0 0.0
        %1146 = vmatpush2.msra.mxu0 0.0
        %1147 = vmatprep.subr.mxu0 0.0
        %1148 = vmatpush2.msra.mxu0 0.0
        %1149 = vmatprep.subr.mxu0 0.0
        %1150 = vmatpush2.msra.mxu0 0.0
        %1151 = vmatprep.subr.mxu0 0.0
        %1152 = vmatpush2.msra.mxu0 0.0
        %1153 = vmatprep.subr.mxu0 0.0
        %1154 = vmatpush2.msra.mxu0 0.0
        %1155 = vmatprep.mubr.f32.mxu0 0.0
        %v1156 = vand.u32 %v879, 4294901760
        %v1157 = vsub.f32 %v879, %v1156
        %1158 = vmatmul.mubr.f32.gmra.mxu0 %v1157
        %v1159 = vpop.f32.mrf.mxu0
        %v1160 = vadd.f32 %v1072, %v1159
        %v1161 = vpop.f32.mrf.mxu0
        %1162 = vdwg.mxu0
        %1163 = vmatprep.subr.mxu0 0.0
        %1164 = vmatpush1.msra.mxu0 0.0
        %1165 = vmatprep.subr.mxu0 0.0
        %1166 = vmatpush1.msra.mxu0 0.0
        %1167 = vmatprep.subr.mxu0 0.0
        %1168 = vmatpush1.msra.mxu0 0.0
        %1169 = vmatprep.subr.mxu0 0.0
        %1170 = vmatpush1.msra.mxu0 0.0
        %1171 = vmatprep.subr.mxu0 0.0
        %1172 = vmatpush1.msra.mxu0 0.0
        %1173 = vmatprep.subr.mxu0 0.0
        %1174 = vmatpush1.msra.mxu0 0.0
        %1175 = vmatprep.subr.mxu0 0.0
        %1176 = vmatpush1.msra.mxu0 0.0
        %1177 = vmatprep.subr.mxu0 0.0
        %1178 = vmatpush1.msra.mxu0 0.0
        %1179 = vmatprep.subr.mxu0 0.0
        %v1180 = vand.u32 %v877, 4294901760
        %1181 = vmatpush1.msra.mxu0 %v1180
        %1182 = vmatprep.subr.mxu0 0.0
        %v1183 = vand.u32 %v876, 4294901760
        %1184 = vmatpush1.msra.mxu0 %v1183
        %1185 = vmatprep.subr.mxu0 0.0
        %v1186 = vand.u32 %v875, 4294901760
        %1187 = vmatpush1.msra.mxu0 %v1186
        %1188 = vmatprep.subr.mxu0 0.0
        %v1189 = vand.u32 %v874, 4294901760
        %1190 = vmatpush1.msra.mxu0 %v1189
        %1191 = vmatprep.subr.mxu0 0.0
        %v1192 = vand.u32 %v873, 4294901760
        %1193 = vmatpush1.msra.mxu0 %v1192
        %1194 = vmatprep.subr.mxu0 0.0
        %v1195 = vand.u32 %v872, 4294901760
        %1196 = vmatpush1.msra.mxu0 %v1195
        %1197 = vmatprep.subr.mxu0 0.0
        %v1198 = vand.u32 %v871, 4294901760
        %1199 = vmatpush1.msra.mxu0 %v1198
        %1200 = vmatprep.subr.mxu0 0.0
        %v1201 = vand.u32 %v870, 4294901760
        %1202 = vmatpush1.msra.mxu0 %v1201
        %1203 = vmatprep.subr.mxu0 0.0
        %1204 = vmatpush2.msra.mxu0 0.0
        %1205 = vmatprep.subr.mxu0 0.0
        %1206 = vmatpush2.msra.mxu0 0.0
        %1207 = vmatprep.subr.mxu0 0.0
        %1208 = vmatpush2.msra.mxu0 0.0
        %1209 = vmatprep.subr.mxu0 0.0
        %1210 = vmatpush2.msra.mxu0 0.0
        %1211 = vmatprep.subr.mxu0 0.0
        %1212 = vmatpush2.msra.mxu0 0.0
        %1213 = vmatprep.subr.mxu0 0.0
        %1214 = vmatpush2.msra.mxu0 0.0
        %1215 = vmatprep.subr.mxu0 0.0
        %1216 = vmatpush2.msra.mxu0 0.0
        %1217 = vmatprep.subr.mxu0 0.0
        %1218 = vmatpush2.msra.mxu0 0.0
        %1219 = vmatprep.subr.mxu0 0.0
        %1220 = vmatpush2.msra.mxu0 0.0
        %1221 = vmatprep.subr.mxu0 0.0
        %1222 = vmatpush2.msra.mxu0 0.0
        %1223 = vmatprep.subr.mxu0 0.0
        %1224 = vmatpush2.msra.mxu0 0.0
        %1225 = vmatprep.subr.mxu0 0.0
        %1226 = vmatpush2.msra.mxu0 0.0
        %1227 = vmatprep.subr.mxu0 0.0
        %1228 = vmatpush2.msra.mxu0 0.0
        %1229 = vmatprep.subr.mxu0 0.0
        %1230 = vmatpush2.msra.mxu0 0.0
        %1231 = vmatprep.subr.mxu0 0.0
        %1232 = vmatpush2.msra.mxu0 0.0
        %1233 = vmatprep.subr.mxu0 0.0
        %1234 = vmatpush2.msra.mxu0 0.0
        %1235 = vmatprep.mubr.f32.mxu0 0.0
        %v1236 = vand.u32 %v879, 4294901760
        %v1237 = vsub.f32 %v879, %v1236
        %v1238 = vand.u32 %v1237, 4294901760
        %1239 = vmatmul.mubr.f32.gmra.mxu0 %v1238
        %v1240 = vpop.f32.mrf.mxu0
        %v1241 = vadd.f32 %v1160, %v1240
        %v1242 = vpop.f32.mrf.mxu0
        %1243 = vdwg.mxu0
        %1244 = vmatprep.subr.mxu0 0.0
        %1245 = vmatpush1.msra.mxu0 0.0
        %1246 = vmatprep.subr.mxu0 0.0
        %1247 = vmatpush1.msra.mxu0 0.0
        %1248 = vmatprep.subr.mxu0 0.0
        %1249 = vmatpush1.msra.mxu0 0.0
        %1250 = vmatprep.subr.mxu0 0.0
        %1251 = vmatpush1.msra.mxu0 0.0
        %1252 = vmatprep.subr.mxu0 0.0
        %1253 = vmatpush1.msra.mxu0 0.0
        %1254 = vmatprep.subr.mxu0 0.0
        %1255 = vmatpush1.msra.mxu0 0.0
        %1256 = vmatprep.subr.mxu0 0.0
        %1257 = vmatpush1.msra.mxu0 0.0
        %1258 = vmatprep.subr.mxu0 0.0
        %1259 = vmatpush1.msra.mxu0 0.0
        %1260 = vmatprep.subr.mxu0 0.0
        %v1261 = vand.u32 %v877, 4294901760
        %v1262 = vsub.f32 %v877, %v1261
        %v1263 = vand.u32 %v1262, 4294901760
        %1264 = vmatpush1.msra.mxu0 %v1263
        %1265 = vmatprep.subr.mxu0 0.0
        %v1266 = vand.u32 %v876, 4294901760
        %v1267 = vsub.f32 %v876, %v1266
        %v1268 = vand.u32 %v1267, 4294901760
        %1269 = vmatpush1.msra.mxu0 %v1268
        %1270 = vmatprep.subr.mxu0 0.0
        %v1271 = vand.u32 %v875, 4294901760
        %v1272 = vsub.f32 %v875, %v1271
        %v1273 = vand.u32 %v1272, 4294901760
        %1274 = vmatpush1.msra.mxu0 %v1273
        %1275 = vmatprep.subr.mxu0 0.0
        %v1276 = vand.u32 %v874, 4294901760
        %v1277 = vsub.f32 %v874, %v1276
        %v1278 = vand.u32 %v1277, 4294901760
        %1279 = vmatpush1.msra.mxu0 %v1278
        %1280 = vmatprep.subr.mxu0 0.0
        %v1281 = vand.u32 %v873, 4294901760
        %v1282 = vsub.f32 %v873, %v1281
        %v1283 = vand.u32 %v1282, 4294901760
        %1284 = vmatpush1.msra.mxu0 %v1283
        %1285 = vmatprep.subr.mxu0 0.0
        %v1286 = vand.u32 %v872, 4294901760
        %v1287 = vsub.f32 %v872, %v1286
        %v1288 = vand.u32 %v1287, 4294901760
        %1289 = vmatpush1.msra.mxu0 %v1288
        %1290 = vmatprep.subr.mxu0 0.0
        %v1291 = vand.u32 %v871, 4294901760
        %v1292 = vsub.f32 %v871, %v1291
        %v1293 = vand.u32 %v1292, 4294901760
        %1294 = vmatpush1.msra.mxu0 %v1293
        %1295 = vmatprep.subr.mxu0 0.0
        %v1296 = vand.u32 %v870, 4294901760
        %v1297 = vsub.f32 %v870, %v1296
        %v1298 = vand.u32 %v1297, 4294901760
        %1299 = vmatpush1.msra.mxu0 %v1298
        %1300 = vmatprep.subr.mxu0 0.0
        %1301 = vmatpush2.msra.mxu0 0.0
        %1302 = vmatprep.subr.mxu0 0.0
        %1303 = vmatpush2.msra.mxu0 0.0
        %1304 = vmatprep.subr.mxu0 0.0
        %1305 = vmatpush2.msra.mxu0 0.0
        %1306 = vmatprep.subr.mxu0 0.0
        %1307 = vmatpush2.msra.mxu0 0.0
        %1308 = vmatprep.subr.mxu0 0.0
        %1309 = vmatpush2.msra.mxu0 0.0
        %1310 = vmatprep.subr.mxu0 0.0
        %1311 = vmatpush2.msra.mxu0 0.0
        %1312 = vmatprep.subr.mxu0 0.0
        %1313 = vmatpush2.msra.mxu0 0.0
        %1314 = vmatprep.subr.mxu0 0.0
        %1315 = vmatpush2.msra.mxu0 0.0
        %1316 = vmatprep.subr.mxu0 0.0
        %1317 = vmatpush2.msra.mxu0 0.0
        %1318 = vmatprep.subr.mxu0 0.0
        %1319 = vmatpush2.msra.mxu0 0.0
        %1320 = vmatprep.subr.mxu0 0.0
        %1321 = vmatpush2.msra.mxu0 0.0
        %1322 = vmatprep.subr.mxu0 0.0
        %1323 = vmatpush2.msra.mxu0 0.0
        %1324 = vmatprep.subr.mxu0 0.0
        %1325 = vmatpush2.msra.mxu0 0.0
        %1326 = vmatprep.subr.mxu0 0.0
        %1327 = vmatpush2.msra.mxu0 0.0
        %1328 = vmatprep.subr.mxu0 0.0
        %1329 = vmatpush2.msra.mxu0 0.0
        %1330 = vmatprep.subr.mxu0 0.0
        %1331 = vmatpush2.msra.mxu0 0.0
        %1332 = vmatprep.mubr.f32.mxu0 0.0
        %v1333 = vand.u32 %v879, 4294901760
        %1334 = vmatmul.mubr.f32.gmra.mxu0 %v1333
        %v1335 = vpop.f32.mrf.mxu0
        %v1336 = vadd.f32 %v1241, %v1335
        %v1337 = vpop.f32.mrf.mxu0
        %1338 = vdwg.mxu0
        %1339 = vmatprep.subr.mxu0 0.0
        %1340 = vmatpush1.msra.mxu0 0.0
        %1341 = vmatprep.subr.mxu0 0.0
        %1342 = vmatpush1.msra.mxu0 0.0
        %1343 = vmatprep.subr.mxu0 0.0
        %1344 = vmatpush1.msra.mxu0 0.0
        %1345 = vmatprep.subr.mxu0 0.0
        %1346 = vmatpush1.msra.mxu0 0.0
        %1347 = vmatprep.subr.mxu0 0.0
        %1348 = vmatpush1.msra.mxu0 0.0
        %1349 = vmatprep.subr.mxu0 0.0
        %1350 = vmatpush1.msra.mxu0 0.0
        %1351 = vmatprep.subr.mxu0 0.0
        %1352 = vmatpush1.msra.mxu0 0.0
        %1353 = vmatprep.subr.mxu0 0.0
        %1354 = vmatpush1.msra.mxu0 0.0
        %1355 = vmatprep.subr.mxu0 0.0
        %v1356 = vand.u32 %v877, 4294901760
        %1357 = vmatpush1.msra.mxu0 %v1356
        %1358 = vmatprep.subr.mxu0 0.0
        %v1359 = vand.u32 %v876, 4294901760
        %1360 = vmatpush1.msra.mxu0 %v1359
        %1361 = vmatprep.subr.mxu0 0.0
        %v1362 = vand.u32 %v875, 4294901760
        %1363 = vmatpush1.msra.mxu0 %v1362
        %1364 = vmatprep.subr.mxu0 0.0
        %v1365 = vand.u32 %v874, 4294901760
        %1366 = vmatpush1.msra.mxu0 %v1365
        %1367 = vmatprep.subr.mxu0 0.0
        %v1368 = vand.u32 %v873, 4294901760
        %1369 = vmatpush1.msra.mxu0 %v1368
        %1370 = vmatprep.subr.mxu0 0.0
        %v1371 = vand.u32 %v872, 4294901760
        %1372 = vmatpush1.msra.mxu0 %v1371
        %1373 = vmatprep.subr.mxu0 0.0
        %v1374 = vand.u32 %v871, 4294901760
        %1375 = vmatpush1.msra.mxu0 %v1374
        %1376 = vmatprep.subr.mxu0 0.0
        %v1377 = vand.u32 %v870, 4294901760
        %1378 = vmatpush1.msra.mxu0 %v1377
        %1379 = vmatprep.subr.mxu0 0.0
        %1380 = vmatpush2.msra.mxu0 0.0
        %1381 = vmatprep.subr.mxu0 0.0
        %1382 = vmatpush2.msra.mxu0 0.0
        %1383 = vmatprep.subr.mxu0 0.0
        %1384 = vmatpush2.msra.mxu0 0.0
        %1385 = vmatprep.subr.mxu0 0.0
        %1386 = vmatpush2.msra.mxu0 0.0
        %1387 = vmatprep.subr.mxu0 0.0
        %1388 = vmatpush2.msra.mxu0 0.0
        %1389 = vmatprep.subr.mxu0 0.0
        %1390 = vmatpush2.msra.mxu0 0.0
        %1391 = vmatprep.subr.mxu0 0.0
        %1392 = vmatpush2.msra.mxu0 0.0
        %1393 = vmatprep.subr.mxu0 0.0
        %1394 = vmatpush2.msra.mxu0 0.0
        %1395 = vmatprep.subr.mxu0 0.0
        %1396 = vmatpush2.msra.mxu0 0.0
        %1397 = vmatprep.subr.mxu0 0.0
        %1398 = vmatpush2.msra.mxu0 0.0
        %1399 = vmatprep.subr.mxu0 0.0
        %1400 = vmatpush2.msra.mxu0 0.0
        %1401 = vmatprep.subr.mxu0 0.0
        %1402 = vmatpush2.msra.mxu0 0.0
        %1403 = vmatprep.subr.mxu0 0.0
        %1404 = vmatpush2.msra.mxu0 0.0
        %1405 = vmatprep.subr.mxu0 0.0
        %1406 = vmatpush2.msra.mxu0 0.0
        %1407 = vmatprep.subr.mxu0 0.0
        %1408 = vmatpush2.msra.mxu0 0.0
        %1409 = vmatprep.subr.mxu0 0.0
        %1410 = vmatpush2.msra.mxu0 0.0
        %1411 = vmatprep.mubr.f32.mxu0 0.0
        %v1412 = vand.u32 %v879, 4294901760
        %1413 = vmatmul.mubr.f32.gmra.mxu0 %v1412
        %v1414 = vpop.f32.mrf.mxu0
        %v1415 = vadd.f32 %v1336, %v1414
        %v1416 = vpop.f32.mrf.mxu0
        %1417 = vdwg.mxu0
        %v1418 = vmax.f32 %v1415, 0.0
        %v1419 = vld [vmem:[%s2] sm:$0xff]
        %vm1420 = vcmask 64512
        %v1422 = vsel %vm1420, %v1418, 0
        %1424 = vmatprep.subr.mxu0 0.0
        %1425 = vmatpush1.msra.mxu0 0.0
        %1426 = vmatprep.subr.mxu0 0.0
        %1427 = vmatpush1.msra.mxu0 0.0
        %1428 = vmatprep.subr.mxu0 0.0
        %1429 = vmatpush1.msra.mxu0 0.0
        %1430 = vmatprep.subr.mxu0 0.0
        %1431 = vmatpush1.msra.mxu0 0.0
        %1432 = vmatprep.subr.mxu0 0.0
        %1433 = vmatpush1.msra.mxu0 0.0
        %1434 = vmatprep.subr.mxu0 0.0
        %1435 = vmatpush1.msra.mxu0 0.0
        %1436 = vmatprep.subr.mxu0 0.0
        %1437 = vmatpush1.msra.mxu0 0.0
        %1438 = vmatprep.subr.mxu0 0.0
        %1439 = vmatpush1.msra.mxu0 0.0
        %1440 = vmatprep.subr.mxu0 0.0
        %1441 = vmatpush1.msra.mxu0 0.0
        %1442 = vmatprep.subr.mxu0 0.0
        %1443 = vmatpush1.msra.mxu0 0.0
        %1444 = vmatprep.subr.mxu0 0.0
        %1445 = vmatpush1.msra.mxu0 0.0
        %1446 = vmatprep.subr.mxu0 0.0
        %1447 = vmatpush1.msra.mxu0 0.0
        %1448 = vmatprep.subr.mxu0 0.0
        %1449 = vmatpush1.msra.mxu0 0.0
        %1450 = vmatprep.subr.mxu0 0.0
        %1451 = vmatpush1.msra.mxu0 0.0
        %1452 = vmatprep.subr.mxu0 0.0
        %1453 = vmatpush1.msra.mxu0 0.0
        %1454 = vmatprep.subr.mxu0 0.0
        %v1455 = vand.u32 %v1419, 4294901760
        %1456 = vmatpush1.msra.mxu0 %v1455
        %1457 = vmatprep.subr.mxu0 0.0
        %1458 = vmatpush2.msra.mxu0 0.0
        %1459 = vmatprep.subr.mxu0 0.0
        %1460 = vmatpush2.msra.mxu0 0.0
        %1461 = vmatprep.subr.mxu0 0.0
        %1462 = vmatpush2.msra.mxu0 0.0
        %1463 = vmatprep.subr.mxu0 0.0
        %1464 = vmatpush2.msra.mxu0 0.0
        %1465 = vmatprep.subr.mxu0 0.0
        %1466 = vmatpush2.msra.mxu0 0.0
        %1467 = vmatprep.subr.mxu0 0.0
        %1468 = vmatpush2.msra.mxu0 0.0
        %1469 = vmatprep.subr.mxu0 0.0
        %1470 = vmatpush2.msra.mxu0 0.0
        %1471 = vmatprep.subr.mxu0 0.0
        %1472 = vmatpush2.msra.mxu0 0.0
        %1473 = vmatprep.subr.mxu0 0.0
        %1474 = vmatpush2.msra.mxu0 0.0
        %1475 = vmatprep.subr.mxu0 0.0
        %1476 = vmatpush2.msra.mxu0 0.0
        %1477 = vmatprep.subr.mxu0 0.0
        %1478 = vmatpush2.msra.mxu0 0.0
        %1479 = vmatprep.subr.mxu0 0.0
        %1480 = vmatpush2.msra.mxu0 0.0
        %1481 = vmatprep.subr.mxu0 0.0
        %1482 = vmatpush2.msra.mxu0 0.0
        %1483 = vmatprep.subr.mxu0 0.0
        %1484 = vmatpush2.msra.mxu0 0.0
        %1485 = vmatprep.subr.mxu0 0.0
        %1486 = vmatpush2.msra.mxu0 0.0
        %1487 = vmatprep.subr.mxu0 0.0
        %1488 = vmatpush2.msra.mxu0 0.0
        %1489 = vmatprep.mubr.f32.mxu0 0.0
        %v1490 = vand.u32 %v1422, 4294901760
        %v1491 = vsub.f32 %v1422, %v1490
        %v1492 = vand.u32 %v1491, 4294901760
        %v1493 = vsub.f32 %v1491, %v1492
        %v1494 = vand.u32 %v1493, 4294901760
        %1495 = vmatmul.mubr.f32.gmra.mxu0 %v1494
        %v1496 = vpop.f32.mrf.mxu0
        %v1497 = vadd.f32 0.0, %v1496
        %v1498 = vpop.f32.mrf.mxu0
        %1499 = vdwg.mxu0
        %1500 = vmatprep.subr.mxu0 0.0
        %1501 = vmatpush1.msra.mxu0 0.0
        %1502 = vmatprep.subr.mxu0 0.0
        %1503 = vmatpush1.msra.mxu0 0.0
        %1504 = vmatprep.subr.mxu0 0.0
        %1505 = vmatpush1.msra.mxu0 0.0
        %1506 = vmatprep.subr.mxu0 0.0
        %1507 = vmatpush1.msra.mxu0 0.0
        %1508 = vmatprep.subr.mxu0 0.0
        %1509 = vmatpush1.msra.mxu0 0.0
        %1510 = vmatprep.subr.mxu0 0.0
        %1511 = vmatpush1.msra.mxu0 0.0
        %1512 = vmatprep.subr.mxu0 0.0
        %1513 = vmatpush1.msra.mxu0 0.0
        %1514 = vmatprep.subr.mxu0 0.0
        %1515 = vmatpush1.msra.mxu0 0.0
        %1516 = vmatprep.subr.mxu0 0.0
        %1517 = vmatpush1.msra.mxu0 0.0
        %1518 = vmatprep.subr.mxu0 0.0
        %1519 = vmatpush1.msra.mxu0 0.0
        %1520 = vmatprep.subr.mxu0 0.0
        %1521 = vmatpush1.msra.mxu0 0.0
        %1522 = vmatprep.subr.mxu0 0.0
        %1523 = vmatpush1.msra.mxu0 0.0
        %1524 = vmatprep.subr.mxu0 0.0
        %1525 = vmatpush1.msra.mxu0 0.0
        %1526 = vmatprep.subr.mxu0 0.0
        %1527 = vmatpush1.msra.mxu0 0.0
        %1528 = vmatprep.subr.mxu0 0.0
        %1529 = vmatpush1.msra.mxu0 0.0
        %1530 = vmatprep.subr.mxu0 0.0
        %v1531 = vand.u32 %v1419, 4294901760
        %v1532 = vsub.f32 %v1419, %v1531
        %v1533 = vand.u32 %v1532, 4294901760
        %v1534 = vsub.f32 %v1532, %v1533
        %v1535 = vand.u32 %v1534, 4294901760
        %1536 = vmatpush1.msra.mxu0 %v1535
        %1537 = vmatprep.subr.mxu0 0.0
        %1538 = vmatpush2.msra.mxu0 0.0
        %1539 = vmatprep.subr.mxu0 0.0
        %1540 = vmatpush2.msra.mxu0 0.0
        %1541 = vmatprep.subr.mxu0 0.0
        %1542 = vmatpush2.msra.mxu0 0.0
        %1543 = vmatprep.subr.mxu0 0.0
        %1544 = vmatpush2.msra.mxu0 0.0
        %1545 = vmatprep.subr.mxu0 0.0
        %1546 = vmatpush2.msra.mxu0 0.0
        %1547 = vmatprep.subr.mxu0 0.0
        %1548 = vmatpush2.msra.mxu0 0.0
        %1549 = vmatprep.subr.mxu0 0.0
        %1550 = vmatpush2.msra.mxu0 0.0
        %1551 = vmatprep.subr.mxu0 0.0
        %1552 = vmatpush2.msra.mxu0 0.0
        %1553 = vmatprep.subr.mxu0 0.0
        %1554 = vmatpush2.msra.mxu0 0.0
        %1555 = vmatprep.subr.mxu0 0.0
        %1556 = vmatpush2.msra.mxu0 0.0
        %1557 = vmatprep.subr.mxu0 0.0
        %1558 = vmatpush2.msra.mxu0 0.0
        %1559 = vmatprep.subr.mxu0 0.0
        %1560 = vmatpush2.msra.mxu0 0.0
        %1561 = vmatprep.subr.mxu0 0.0
        %1562 = vmatpush2.msra.mxu0 0.0
        %1563 = vmatprep.subr.mxu0 0.0
        %1564 = vmatpush2.msra.mxu0 0.0
        %1565 = vmatprep.subr.mxu0 0.0
        %1566 = vmatpush2.msra.mxu0 0.0
        %1567 = vmatprep.subr.mxu0 0.0
        %1568 = vmatpush2.msra.mxu0 0.0
        %1569 = vmatprep.mubr.f32.mxu0 0.0
        %v1570 = vand.u32 %v1422, 4294901760
        %1571 = vmatmul.mubr.f32.gmra.mxu0 %v1570
        %v1572 = vpop.f32.mrf.mxu0
        %v1573 = vadd.f32 %v1497, %v1572
        %v1574 = vpop.f32.mrf.mxu0
        %1575 = vdwg.mxu0
        %1576 = vmatprep.subr.mxu0 0.0
        %1577 = vmatpush1.msra.mxu0 0.0
        %1578 = vmatprep.subr.mxu0 0.0
        %1579 = vmatpush1.msra.mxu0 0.0
        %1580 = vmatprep.subr.mxu0 0.0
        %1581 = vmatpush1.msra.mxu0 0.0
        %1582 = vmatprep.subr.mxu0 0.0
        %1583 = vmatpush1.msra.mxu0 0.0
        %1584 = vmatprep.subr.mxu0 0.0
        %1585 = vmatpush1.msra.mxu0 0.0
        %1586 = vmatprep.subr.mxu0 0.0
        %1587 = vmatpush1.msra.mxu0 0.0
        %1588 = vmatprep.subr.mxu0 0.0
        %1589 = vmatpush1.msra.mxu0 0.0
        %1590 = vmatprep.subr.mxu0 0.0
        %1591 = vmatpush1.msra.mxu0 0.0
        %1592 = vmatprep.subr.mxu0 0.0
        %1593 = vmatpush1.msra.mxu0 0.0
        %1594 = vmatprep.subr.mxu0 0.0
        %1595 = vmatpush1.msra.mxu0 0.0
        %1596 = vmatprep.subr.mxu0 0.0
        %1597 = vmatpush1.msra.mxu0 0.0
        %1598 = vmatprep.subr.mxu0 0.0
        %1599 = vmatpush1.msra.mxu0 0.0
        %1600 = vmatprep.subr.mxu0 0.0
        %1601 = vmatpush1.msra.mxu0 0.0
        %1602 = vmatprep.subr.mxu0 0.0
        %1603 = vmatpush1.msra.mxu0 0.0
        %1604 = vmatprep.subr.mxu0 0.0
        %1605 = vmatpush1.msra.mxu0 0.0
        %1606 = vmatprep.subr.mxu0 0.0
        %v1607 = vand.u32 %v1419, 4294901760
        %v1608 = vsub.f32 %v1419, %v1607
        %1609 = vmatpush1.msra.mxu0 %v1608
        %1610 = vmatprep.subr.mxu0 0.0
        %1611 = vmatpush2.msra.mxu0 0.0
        %1612 = vmatprep.subr.mxu0 0.0
        %1613 = vmatpush2.msra.mxu0 0.0
        %1614 = vmatprep.subr.mxu0 0.0
        %1615 = vmatpush2.msra.mxu0 0.0
        %1616 = vmatprep.subr.mxu0 0.0
        %1617 = vmatpush2.msra.mxu0 0.0
        %1618 = vmatprep.subr.mxu0 0.0
        %1619 = vmatpush2.msra.mxu0 0.0
        %1620 = vmatprep.subr.mxu0 0.0
        %1621 = vmatpush2.msra.mxu0 0.0
        %1622 = vmatprep.subr.mxu0 0.0
        %1623 = vmatpush2.msra.mxu0 0.0
        %1624 = vmatprep.subr.mxu0 0.0
        %1625 = vmatpush2.msra.mxu0 0.0
        %1626 = vmatprep.subr.mxu0 0.0
        %1627 = vmatpush2.msra.mxu0 0.0
        %1628 = vmatprep.subr.mxu0 0.0
        %1629 = vmatpush2.msra.mxu0 0.0
        %1630 = vmatprep.subr.mxu0 0.0
        %1631 = vmatpush2.msra.mxu0 0.0
        %1632 = vmatprep.subr.mxu0 0.0
        %1633 = vmatpush2.msra.mxu0 0.0
        %1634 = vmatprep.subr.mxu0 0.0
        %1635 = vmatpush2.msra.mxu0 0.0
        %1636 = vmatprep.subr.mxu0 0.0
        %1637 = vmatpush2.msra.mxu0 0.0
        %1638 = vmatprep.subr.mxu0 0.0
        %1639 = vmatpush2.msra.mxu0 0.0
        %1640 = vmatprep.subr.mxu0 0.0
        %1641 = vmatpush2.msra.mxu0 0.0
        %1642 = vmatprep.mubr.f32.mxu0 0.0
        %v1643 = vand.u32 %v1422, 4294901760
        %v1644 = vsub.f32 %v1422, %v1643
        %1645 = vmatmul.mubr.f32.gmra.mxu0 %v1644
        %v1646 = vpop.f32.mrf.mxu0
        %v1647 = vadd.f32 %v1573, %v1646
        %v1648 = vpop.f32.mrf.mxu0
        %1649 = vdwg.mxu0
        %1650 = vmatprep.subr.mxu0 0.0
        %1651 = vmatpush1.msra.mxu0 0.0
        %1652 = vmatprep.subr.mxu0 0.0
        %1653 = vmatpush1.msra.mxu0 0.0
        %1654 = vmatprep.subr.mxu0 0.0
        %1655 = vmatpush1.msra.mxu0 0.0
        %1656 = vmatprep.subr.mxu0 0.0
        %1657 = vmatpush1.msra.mxu0 0.0
        %1658 = vmatprep.subr.mxu0 0.0
        %1659 = vmatpush1.msra.mxu0 0.0
        %1660 = vmatprep.subr.mxu0 0.0
        %1661 = vmatpush1.msra.mxu0 0.0
        %1662 = vmatprep.subr.mxu0 0.0
        %1663 = vmatpush1.msra.mxu0 0.0
        %1664 = vmatprep.subr.mxu0 0.0
        %1665 = vmatpush1.msra.mxu0 0.0
        %1666 = vmatprep.subr.mxu0 0.0
        %1667 = vmatpush1.msra.mxu0 0.0
        %1668 = vmatprep.subr.mxu0 0.0
        %1669 = vmatpush1.msra.mxu0 0.0
        %1670 = vmatprep.subr.mxu0 0.0
        %1671 = vmatpush1.msra.mxu0 0.0
        %1672 = vmatprep.subr.mxu0 0.0
        %1673 = vmatpush1.msra.mxu0 0.0
        %1674 = vmatprep.subr.mxu0 0.0
        %1675 = vmatpush1.msra.mxu0 0.0
        %1676 = vmatprep.subr.mxu0 0.0
        %1677 = vmatpush1.msra.mxu0 0.0
        %1678 = vmatprep.subr.mxu0 0.0
        %1679 = vmatpush1.msra.mxu0 0.0
        %1680 = vmatprep.subr.mxu0 0.0
        %v1681 = vand.u32 %v1419, 4294901760
        %1682 = vmatpush1.msra.mxu0 %v1681
        %1683 = vmatprep.subr.mxu0 0.0
        %1684 = vmatpush2.msra.mxu0 0.0
        %1685 = vmatprep.subr.mxu0 0.0
        %1686 = vmatpush2.msra.mxu0 0.0
        %1687 = vmatprep.subr.mxu0 0.0
        %1688 = vmatpush2.msra.mxu0 0.0
        %1689 = vmatprep.subr.mxu0 0.0
        %1690 = vmatpush2.msra.mxu0 0.0
        %1691 = vmatprep.subr.mxu0 0.0
        %1692 = vmatpush2.msra.mxu0 0.0
        %1693 = vmatprep.subr.mxu0 0.0
        %1694 = vmatpush2.msra.mxu0 0.0
        %1695 = vmatprep.subr.mxu0 0.0
        %1696 = vmatpush2.msra.mxu0 0.0
        %1697 = vmatprep.subr.mxu0 0.0
        %1698 = vmatpush2.msra.mxu0 0.0
        %1699 = vmatprep.subr.mxu0 0.0
        %1700 = vmatpush2.msra.mxu0 0.0
        %1701 = vmatprep.subr.mxu0 0.0
        %1702 = vmatpush2.msra.mxu0 0.0
        %1703 = vmatprep.subr.mxu0 0.0
        %1704 = vmatpush2.msra.mxu0 0.0
        %1705 = vmatprep.subr.mxu0 0.0
        %1706 = vmatpush2.msra.mxu0 0.0
        %1707 = vmatprep.subr.mxu0 0.0
        %1708 = vmatpush2.msra.mxu0 0.0
        %1709 = vmatprep.subr.mxu0 0.0
        %1710 = vmatpush2.msra.mxu0 0.0
        %1711 = vmatprep.subr.mxu0 0.0
        %1712 = vmatpush2.msra.mxu0 0.0
        %1713 = vmatprep.subr.mxu0 0.0
        %1714 = vmatpush2.msra.mxu0 0.0
        %1715 = vmatprep.mubr.f32.mxu0 0.0
        %v1716 = vand.u32 %v1422, 4294901760
        %v1717 = vsub.f32 %v1422, %v1716
        %v1718 = vand.u32 %v1717, 4294901760
        %1719 = vmatmul.mubr.f32.gmra.mxu0 %v1718
        %v1720 = vpop.f32.mrf.mxu0
        %v1721 = vadd.f32 %v1647, %v1720
        %v1722 = vpop.f32.mrf.mxu0
        %1723 = vdwg.mxu0
        %1724 = vmatprep.subr.mxu0 0.0
        %1725 = vmatpush1.msra.mxu0 0.0
        %1726 = vmatprep.subr.mxu0 0.0
        %1727 = vmatpush1.msra.mxu0 0.0
        %1728 = vmatprep.subr.mxu0 0.0
        %1729 = vmatpush1.msra.mxu0 0.0
        %1730 = vmatprep.subr.mxu0 0.0
        %1731 = vmatpush1.msra.mxu0 0.0
        %1732 = vmatprep.subr.mxu0 0.0
        %1733 = vmatpush1.msra.mxu0 0.0
        %1734 = vmatprep.subr.mxu0 0.0
        %1735 = vmatpush1.msra.mxu0 0.0
        %1736 = vmatprep.subr.mxu0 0.0
        %1737 = vmatpush1.msra.mxu0 0.0
        %1738 = vmatprep.subr.mxu0 0.0
        %1739 = vmatpush1.msra.mxu0 0.0
        %1740 = vmatprep.subr.mxu0 0.0
        %1741 = vmatpush1.msra.mxu0 0.0
        %1742 = vmatprep.subr.mxu0 0.0
        %1743 = vmatpush1.msra.mxu0 0.0
        %1744 = vmatprep.subr.mxu0 0.0
        %1745 = vmatpush1.msra.mxu0 0.0
        %1746 = vmatprep.subr.mxu0 0.0
        %1747 = vmatpush1.msra.mxu0 0.0
        %1748 = vmatprep.subr.mxu0 0.0
        %1749 = vmatpush1.msra.mxu0 0.0
        %1750 = vmatprep.subr.mxu0 0.0
        %1751 = vmatpush1.msra.mxu0 0.0
        %1752 = vmatprep.subr.mxu0 0.0
        %1753 = vmatpush1.msra.mxu0 0.0
        %1754 = vmatprep.subr.mxu0 0.0
        %v1755 = vand.u32 %v1419, 4294901760
        %v1756 = vsub.f32 %v1419, %v1755
        %v1757 = vand.u32 %v1756, 4294901760
        %1758 = vmatpush1.msra.mxu0 %v1757
        %1759 = vmatprep.subr.mxu0 0.0
        %1760 = vmatpush2.msra.mxu0 0.0
        %1761 = vmatprep.subr.mxu0 0.0
        %1762 = vmatpush2.msra.mxu0 0.0
        %1763 = vmatprep.subr.mxu0 0.0
        %1764 = vmatpush2.msra.mxu0 0.0
        %1765 = vmatprep.subr.mxu0 0.0
        %1766 = vmatpush2.msra.mxu0 0.0
        %1767 = vmatprep.subr.mxu0 0.0
        %1768 = vmatpush2.msra.mxu0 0.0
        %1769 = vmatprep.subr.mxu0 0.0
        %1770 = vmatpush2.msra.mxu0 0.0
        %1771 = vmatprep.subr.mxu0 0.0
        %1772 = vmatpush2.msra.mxu0 0.0
        %1773 = vmatprep.subr.mxu0 0.0
        %1774 = vmatpush2.msra.mxu0 0.0
        %1775 = vmatprep.subr.mxu0 0.0
        %1776 = vmatpush2.msra.mxu0 0.0
        %1777 = vmatprep.subr.mxu0 0.0
        %1778 = vmatpush2.msra.mxu0 0.0
        %1779 = vmatprep.subr.mxu0 0.0
        %1780 = vmatpush2.msra.mxu0 0.0
        %1781 = vmatprep.subr.mxu0 0.0
        %1782 = vmatpush2.msra.mxu0 0.0
        %1783 = vmatprep.subr.mxu0 0.0
        %1784 = vmatpush2.msra.mxu0 0.0
        %1785 = vmatprep.subr.mxu0 0.0
        %1786 = vmatpush2.msra.mxu0 0.0
        %1787 = vmatprep.subr.mxu0 0.0
        %1788 = vmatpush2.msra.mxu0 0.0
        %1789 = vmatprep.subr.mxu0 0.0
        %1790 = vmatpush2.msra.mxu0 0.0
        %1791 = vmatprep.mubr.f32.mxu0 0.0
        %v1792 = vand.u32 %v1422, 4294901760
        %1793 = vmatmul.mubr.f32.gmra.mxu0 %v1792
        %v1794 = vpop.f32.mrf.mxu0
        %v1795 = vadd.f32 %v1721, %v1794
        %v1796 = vpop.f32.mrf.mxu0
        %1797 = vdwg.mxu0
        %1798 = vmatprep.subr.mxu0 0.0
        %1799 = vmatpush1.msra.mxu0 0.0
        %1800 = vmatprep.subr.mxu0 0.0
        %1801 = vmatpush1.msra.mxu0 0.0
        %1802 = vmatprep.subr.mxu0 0.0
        %1803 = vmatpush1.msra.mxu0 0.0
        %1804 = vmatprep.subr.mxu0 0.0
        %1805 = vmatpush1.msra.mxu0 0.0
        %1806 = vmatprep.subr.mxu0 0.0
        %1807 = vmatpush1.msra.mxu0 0.0
        %1808 = vmatprep.subr.mxu0 0.0
        %1809 = vmatpush1.msra.mxu0 0.0
        %1810 = vmatprep.subr.mxu0 0.0
        %1811 = vmatpush1.msra.mxu0 0.0
        %1812 = vmatprep.subr.mxu0 0.0
        %1813 = vmatpush1.msra.mxu0 0.0
        %1814 = vmatprep.subr.mxu0 0.0
        %1815 = vmatpush1.msra.mxu0 0.0
        %1816 = vmatprep.subr.mxu0 0.0
        %1817 = vmatpush1.msra.mxu0 0.0
        %1818 = vmatprep.subr.mxu0 0.0
        %1819 = vmatpush1.msra.mxu0 0.0
        %1820 = vmatprep.subr.mxu0 0.0
        %1821 = vmatpush1.msra.mxu0 0.0
        %1822 = vmatprep.subr.mxu0 0.0
        %1823 = vmatpush1.msra.mxu0 0.0
        %1824 = vmatprep.subr.mxu0 0.0
        %1825 = vmatpush1.msra.mxu0 0.0
        %1826 = vmatprep.subr.mxu0 0.0
        %1827 = vmatpush1.msra.mxu0 0.0
        %1828 = vmatprep.subr.mxu0 0.0
        %v1829 = vand.u32 %v1419, 4294901760
        %1830 = vmatpush1.msra.mxu0 %v1829
        %1831 = vmatprep.subr.mxu0 0.0
        %1832 = vmatpush2.msra.mxu0 0.0
        %1833 = vmatprep.subr.mxu0 0.0
        %1834 = vmatpush2.msra.mxu0 0.0
        %1835 = vmatprep.subr.mxu0 0.0
        %1836 = vmatpush2.msra.mxu0 0.0
        %1837 = vmatprep.subr.mxu0 0.0
        %1838 = vmatpush2.msra.mxu0 0.0
        %1839 = vmatprep.subr.mxu0 0.0
        %1840 = vmatpush2.msra.mxu0 0.0
        %1841 = vmatprep.subr.mxu0 0.0
        %1842 = vmatpush2.msra.mxu0 0.0
        %1843 = vmatprep.subr.mxu0 0.0
        %1844 = vmatpush2.msra.mxu0 0.0
        %1845 = vmatprep.subr.mxu0 0.0
        %1846 = vmatpush2.msra.mxu0 0.0
        %1847 = vmatprep.subr.mxu0 0.0
        %1848 = vmatpush2.msra.mxu0 0.0
        %1849 = vmatprep.subr.mxu0 0.0
        %1850 = vmatpush2.msra.mxu0 0.0
        %1851 = vmatprep.subr.mxu0 0.0
        %1852 = vmatpush2.msra.mxu0 0.0
        %1853 = vmatprep.subr.mxu0 0.0
        %1854 = vmatpush2.msra.mxu0 0.0
        %1855 = vmatprep.subr.mxu0 0.0
        %1856 = vmatpush2.msra.mxu0 0.0
        %1857 = vmatprep.subr.mxu0 0.0
        %1858 = vmatpush2.msra.mxu0 0.0
        %1859 = vmatprep.subr.mxu0 0.0
        %1860 = vmatpush2.msra.mxu0 0.0
        %1861 = vmatprep.subr.mxu0 0.0
        %1862 = vmatpush2.msra.mxu0 0.0
        %1863 = vmatprep.mubr.f32.mxu0 0.0
        %v1864 = vand.u32 %v1422, 4294901760
        %1865 = vmatmul.mubr.f32.gmra.mxu0 %v1864
        %v1866 = vpop.f32.mrf.mxu0
        %v1867 = vadd.f32 %v1795, %v1866
        %v1868 = vpop.f32.mrf.mxu0
        %1869 = vdwg.mxu0
        %v1871 = vrot.slane %v1867, 1
        %v1873 = vadd.f32 %v1867, %v1871
        %v1874 = vxor.u32 %v1873, 2147483648
        %v1875 = vmul.f32 %v1874, 1.442695
        %v1876 = vpow.pop %v1875
        %v1877 = vadd.f32 %v1876, 1.0
        %v1878 = vrcp.pop %v1877
        %v1879 = vmul.f32 1.0, %v1878
        %v1880 = vlaneseq
        %v1881 = vshrl.u32 %v1880, 7
        %v1882 = vsub.s32 0, %v1881
        %v1883 = vrot.slane %v1879, %v1882
        %v1884 = vmul.f32 %v216, %v1883
        %v1885 = vmul.f32 %v217, %v1883
        %v1886 = vmul.f32 %v218, %v1883
        %v1887 = vmul.f32 %v219, %v1883
        %v1888 = vmul.f32 %v220, %v1883
        %v1889 = vmul.f32 %v221, %v1883
        %v1890 = vmul.f32 %v222, %v1883
        %v1891 = vmul.f32 %v223, %v1883
        %v1892 = vmul.f32 %v224, %v1883
        %v1893 = vmul.f32 %v225, %v1883
        %v1894 = vmul.f32 %v226, %v1883
        %v1895 = vmul.f32 %v227, %v1883
        %v1896 = vmul.f32 %v228, %v1883
        %v1897 = vmul.f32 %v229, %v1883
        %v1898 = vmul.f32 %v230, %v1883
        %v1899 = vmul.f32 %v231, %v1883
        %v1900 = vmul.f32 %v232, %v1883
        %v1901 = vmul.f32 %v233, %v1883
        %v1902 = vmul.f32 %v234, %v1883
        %v1903 = vmul.f32 %v235, %v1883
        %v1904 = vmul.f32 %v236, %v1883
        %v1905 = vmul.f32 %v237, %v1883
        %v1906 = vmul.f32 %v238, %v1883
        %v1907 = vmul.f32 %v239, %v1883
        %v1908 = vmul.f32 %v240, %v1883
        %v1909 = vmul.f32 %v241, %v1883
        %v1910 = vmul.f32 %v242, %v1883
        %v1911 = vmul.f32 %v243, %v1883
        %v1912 = vmul.f32 %v244, %v1883
        %v1913 = vmul.f32 %v245, %v1883
        %v1914 = vmul.f32 %v246, %v1883
        %v1915 = vmul.f32 %v247, %v1883
        %v1916 = vmul.f32 %v248, %v1883
        %v1917 = vmul.f32 %v249, %v1883
        %v1918 = vmul.f32 %v250, %v1883
        %v1919 = vmul.f32 %v251, %v1883
        %v1920 = vmul.f32 %v252, %v1883
        %v1921 = vmul.f32 %v253, %v1883
        %v1922 = vmul.f32 %v254, %v1883
        %v1923 = vmul.f32 %v255, %v1883
        %v1924 = vmul.f32 %v256, %v1883
        %v1925 = vmul.f32 %v257, %v1883
        %v1926 = vmul.f32 %v258, %v1883
        %v1927 = vmul.f32 %v259, %v1883
        %v1928 = vmul.f32 %v260, %v1883
        %v1929 = vmul.f32 %v261, %v1883
        %v1930 = vmul.f32 %v262, %v1883
        %v1931 = vmul.f32 %v263, %v1883
        %v1932 = vmul.f32 %v264, %v1883
        %v1933 = vmul.f32 %v265, %v1883
        %v1934 = vmul.f32 %v266, %v1883
        %v1935 = vmul.f32 %v267, %v1883
        %v1936 = vmul.f32 %v268, %v1883
        %v1937 = vmul.f32 %v269, %v1883
        %v1938 = vmul.f32 %v270, %v1883
        %v1939 = vmul.f32 %v271, %v1883
        %v1940 = vmul.f32 %v272, %v1883
        %v1941 = vmul.f32 %v273, %v1883
        %v1942 = vmul.f32 %v274, %v1883
        %v1943 = vmul.f32 %v275, %v1883
        %v1944 = vmul.f32 %v276, %v1883
        %v1945 = vmul.f32 %v277, %v1883
        %v1946 = vmul.f32 %v278, %v1883
        %v1947 = vmul.f32 %v279, %v1883
        %v1948 = vmul.f32 %v280, %v1883
        %v1949 = vmul.f32 %v281, %v1883
        %v1950 = vmul.f32 %v282, %v1883
        %v1951 = vmul.f32 %v283, %v1883
        %v1952 = vmul.f32 %v284, %v1883
        %v1953 = vmul.f32 %v285, %v1883
        %v1954 = vmul.f32 %v286, %v1883
        %v1955 = vmul.f32 %v287, %v1883
        %v1956 = vmul.f32 %v288, %v1883
        %v1957 = vmul.f32 %v289, %v1883
        %v1958 = vmul.f32 %v290, %v1883
        %v1959 = vmul.f32 %v291, %v1883
        %v1960 = vmul.f32 %v292, %v1883
        %v1961 = vmul.f32 %v293, %v1883
        %v1962 = vmul.f32 %v294, %v1883
        %v1963 = vmul.f32 %v295, %v1883
        %v1964 = vmul.f32 %v296, %v1883
        %v1965 = vmul.f32 %v297, %v1883
        %v1966 = vmul.f32 %v298, %v1883
        %v1967 = vmul.f32 %v299, %v1883
        %v1968 = vmul.f32 %v300, %v1883
        %v1969 = vmul.f32 %v301, %v1883
        %v1970 = vmul.f32 %v302, %v1883
        %v1971 = vmul.f32 %v303, %v1883
        %v1972 = vmul.f32 %v304, %v1883
        %v1973 = vmul.f32 %v305, %v1883
        %v1974 = vmul.f32 %v306, %v1883
        %v1975 = vmul.f32 %v307, %v1883
        %v1976 = vmul.f32 %v308, %v1883
        %v1977 = vmul.f32 %v309, %v1883
        %v1978 = vmul.f32 %v310, %v1883
        %v1979 = vmul.f32 %v311, %v1883
        %v1980 = vmul.f32 %v312, %v1883
        %v1981 = vmul.f32 %v313, %v1883
        %v1982 = vmul.f32 %v314, %v1883
        %v1983 = vmul.f32 %v315, %v1883
        %v1984 = vmul.f32 %v316, %v1883
        %v1985 = vmul.f32 %v317, %v1883
        %v1986 = vmul.f32 %v318, %v1883
        %v1987 = vmul.f32 %v319, %v1883
        %v1988 = vmul.f32 %v320, %v1883
        %v1989 = vmul.f32 %v321, %v1883
        %v1990 = vmul.f32 %v322, %v1883
        %v1991 = vmul.f32 %v323, %v1883
        %v1992 = vmul.f32 %v324, %v1883
        %v1993 = vmul.f32 %v325, %v1883
        %v1994 = vmul.f32 %v326, %v1883
        %v1995 = vmul.f32 %v327, %v1883
        %v1996 = vmul.f32 %v328, %v1883
        %v1997 = vmul.f32 %v329, %v1883
        %v1998 = vmul.f32 %v330, %v1883
        %v1999 = vmul.f32 %v331, %v1883
        %v2000 = vmul.f32 %v332, %v1883
        %v2001 = vmul.f32 %v333, %v1883
        %v2002 = vmul.f32 %v334, %v1883
        %v2003 = vmul.f32 %v335, %v1883
        %v2004 = vmul.f32 %v336, %v1883
        %v2005 = vmul.f32 %v337, %v1883
        %v2006 = vmul.f32 %v338, %v1883
        %v2007 = vmul.f32 %v339, %v1883
        %v2008 = vmul.f32 %v340, %v1883
        %v2009 = vmul.f32 %v341, %v1883
        %v2010 = vmul.f32 %v342, %v1883
        %v2011 = vmul.f32 %v343, %v1883
        %v2012 = vsel %vm344, %v1884, -inf
        %2013 = vmax.xlane.f32.xlu0 %v2012
        %v2014 = vpop.xlane.xlu0 %2013
        %v2015 = vsel %vm344, %v1885, -inf
        %2016 = vmax.xlane.f32.xlu0 %v2015
        %v2017 = vpop.xlane.xlu0 %2016
        %v2018 = vsel %vm344, %v1886, -inf
        %2019 = vmax.xlane.f32.xlu0 %v2018
        %v2020 = vpop.xlane.xlu0 %2019
        %v2021 = vsel %vm344, %v1887, -inf
        %2022 = vmax.xlane.f32.xlu0 %v2021
        %v2023 = vpop.xlane.xlu0 %2022
        %v2024 = vsel %vm344, %v1888, -inf
        %2025 = vmax.xlane.f32.xlu0 %v2024
        %v2026 = vpop.xlane.xlu0 %2025
        %v2027 = vsel %vm344, %v1889, -inf
        %2028 = vmax.xlane.f32.xlu0 %v2027
        %v2029 = vpop.xlane.xlu0 %2028
        %v2030 = vsel %vm344, %v1890, -inf
        %2031 = vmax.xlane.f32.xlu0 %v2030
        %v2032 = vpop.xlane.xlu0 %2031
        %v2033 = vsel %vm344, %v1891, -inf
        %2034 = vmax.xlane.f32.xlu0 %v2033
        %v2035 = vpop.xlane.xlu0 %2034
        %v2036 = vsel %vm344, %v1892, -inf
        %2037 = vmax.xlane.f32.xlu0 %v2036
        %v2038 = vpop.xlane.xlu0 %2037
        %v2039 = vsel %vm344, %v1893, -inf
        %2040 = vmax.xlane.f32.xlu0 %v2039
        %v2041 = vpop.xlane.xlu0 %2040
        %v2042 = vsel %vm344, %v1894, -inf
        %2043 = vmax.xlane.f32.xlu0 %v2042
        %v2044 = vpop.xlane.xlu0 %2043
        %v2045 = vsel %vm344, %v1895, -inf
        %2046 = vmax.xlane.f32.xlu0 %v2045
        %v2047 = vpop.xlane.xlu0 %2046
        %v2048 = vsel %vm344, %v1896, -inf
        %2049 = vmax.xlane.f32.xlu0 %v2048
        %v2050 = vpop.xlane.xlu0 %2049
        %v2051 = vsel %vm344, %v1897, -inf
        %2052 = vmax.xlane.f32.xlu0 %v2051
        %v2053 = vpop.xlane.xlu0 %2052
        %v2054 = vsel %vm344, %v1898, -inf
        %2055 = vmax.xlane.f32.xlu0 %v2054
        %v2056 = vpop.xlane.xlu0 %2055
        %v2057 = vsel %vm344, %v1899, -inf
        %2058 = vmax.xlane.f32.xlu0 %v2057
        %v2059 = vpop.xlane.xlu0 %2058
        %v2060 = vsel %vm344, %v1900, -inf
        %2061 = vmax.xlane.f32.xlu0 %v2060
        %v2062 = vpop.xlane.xlu0 %2061
        %v2063 = vsel %vm344, %v1901, -inf
        %2064 = vmax.xlane.f32.xlu0 %v2063
        %v2065 = vpop.xlane.xlu0 %2064
        %v2066 = vsel %vm344, %v1902, -inf
        %2067 = vmax.xlane.f32.xlu0 %v2066
        %v2068 = vpop.xlane.xlu0 %2067
        %v2069 = vsel %vm344, %v1903, -inf
        %2070 = vmax.xlane.f32.xlu0 %v2069
        %v2071 = vpop.xlane.xlu0 %2070
        %v2072 = vsel %vm344, %v1904, -inf
        %2073 = vmax.xlane.f32.xlu0 %v2072
        %v2074 = vpop.xlane.xlu0 %2073
        %v2075 = vsel %vm344, %v1905, -inf
        %2076 = vmax.xlane.f32.xlu0 %v2075
        %v2077 = vpop.xlane.xlu0 %2076
        %v2078 = vsel %vm344, %v1906, -inf
        %2079 = vmax.xlane.f32.xlu0 %v2078
        %v2080 = vpop.xlane.xlu0 %2079
        %v2081 = vsel %vm344, %v1907, -inf
        %2082 = vmax.xlane.f32.xlu0 %v2081
        %v2083 = vpop.xlane.xlu0 %2082
        %v2084 = vsel %vm344, %v1908, -inf
        %2085 = vmax.xlane.f32.xlu0 %v2084
        %v2086 = vpop.xlane.xlu0 %2085
        %v2087 = vsel %vm344, %v1909, -inf
        %2088 = vmax.xlane.f32.xlu0 %v2087
        %v2089 = vpop.xlane.xlu0 %2088
        %v2090 = vsel %vm344, %v1910, -inf
        %2091 = vmax.xlane.f32.xlu0 %v2090
        %v2092 = vpop.xlane.xlu0 %2091
        %v2093 = vsel %vm344, %v1911, -inf
        %2094 = vmax.xlane.f32.xlu0 %v2093
        %v2095 = vpop.xlane.xlu0 %2094
        %v2096 = vsel %vm344, %v1912, -inf
        %2097 = vmax.xlane.f32.xlu0 %v2096
        %v2098 = vpop.xlane.xlu0 %2097
        %v2099 = vsel %vm344, %v1913, -inf
        %2100 = vmax.xlane.f32.xlu0 %v2099
        %v2101 = vpop.xlane.xlu0 %2100
        %v2102 = vsel %vm344, %v1914, -inf
        %2103 = vmax.xlane.f32.xlu0 %v2102
        %v2104 = vpop.xlane.xlu0 %2103
        %v2105 = vsel %vm344, %v1915, -inf
        %2106 = vmax.xlane.f32.xlu0 %v2105
        %v2107 = vpop.xlane.xlu0 %2106
        %v2108 = vsel %vm344, %v1916, -inf
        %2109 = vmax.xlane.f32.xlu0 %v2108
        %v2110 = vpop.xlane.xlu0 %2109
        %v2111 = vsel %vm344, %v1917, -inf
        %2112 = vmax.xlane.f32.xlu0 %v2111
        %v2113 = vpop.xlane.xlu0 %2112
        %v2114 = vsel %vm344, %v1918, -inf
        %2115 = vmax.xlane.f32.xlu0 %v2114
        %v2116 = vpop.xlane.xlu0 %2115
        %v2117 = vsel %vm344, %v1919, -inf
        %2118 = vmax.xlane.f32.xlu0 %v2117
        %v2119 = vpop.xlane.xlu0 %2118
        %v2120 = vsel %vm344, %v1920, -inf
        %2121 = vmax.xlane.f32.xlu0 %v2120
        %v2122 = vpop.xlane.xlu0 %2121
        %v2123 = vsel %vm344, %v1921, -inf
        %2124 = vmax.xlane.f32.xlu0 %v2123
        %v2125 = vpop.xlane.xlu0 %2124
        %v2126 = vsel %vm344, %v1922, -inf
        %2127 = vmax.xlane.f32.xlu0 %v2126
        %v2128 = vpop.xlane.xlu0 %2127
        %v2129 = vsel %vm344, %v1923, -inf
        %2130 = vmax.xlane.f32.xlu0 %v2129
        %v2131 = vpop.xlane.xlu0 %2130
        %v2132 = vsel %vm344, %v1924, -inf
        %2133 = vmax.xlane.f32.xlu0 %v2132
        %v2134 = vpop.xlane.xlu0 %2133
        %v2135 = vsel %vm344, %v1925, -inf
        %2136 = vmax.xlane.f32.xlu0 %v2135
        %v2137 = vpop.xlane.xlu0 %2136
        %v2138 = vsel %vm344, %v1926, -inf
        %2139 = vmax.xlane.f32.xlu0 %v2138
        %v2140 = vpop.xlane.xlu0 %2139
        %v2141 = vsel %vm344, %v1927, -inf
        %2142 = vmax.xlane.f32.xlu0 %v2141
        %v2143 = vpop.xlane.xlu0 %2142
        %v2144 = vsel %vm344, %v1928, -inf
        %2145 = vmax.xlane.f32.xlu0 %v2144
        %v2146 = vpop.xlane.xlu0 %2145
        %v2147 = vsel %vm344, %v1929, -inf
        %2148 = vmax.xlane.f32.xlu0 %v2147
        %v2149 = vpop.xlane.xlu0 %2148
        %v2150 = vsel %vm344, %v1930, -inf
        %2151 = vmax.xlane.f32.xlu0 %v2150
        %v2152 = vpop.xlane.xlu0 %2151
        %v2153 = vsel %vm344, %v1931, -inf
        %2154 = vmax.xlane.f32.xlu0 %v2153
        %v2155 = vpop.xlane.xlu0 %2154
        %v2156 = vsel %vm344, %v1932, -inf
        %2157 = vmax.xlane.f32.xlu0 %v2156
        %v2158 = vpop.xlane.xlu0 %2157
        %v2159 = vsel %vm344, %v1933, -inf
        %2160 = vmax.xlane.f32.xlu0 %v2159
        %v2161 = vpop.xlane.xlu0 %2160
        %v2162 = vsel %vm344, %v1934, -inf
        %2163 = vmax.xlane.f32.xlu0 %v2162
        %v2164 = vpop.xlane.xlu0 %2163
        %v2165 = vsel %vm344, %v1935, -inf
        %2166 = vmax.xlane.f32.xlu0 %v2165
        %v2167 = vpop.xlane.xlu0 %2166
        %v2168 = vsel %vm344, %v1936, -inf
        %2169 = vmax.xlane.f32.xlu0 %v2168
        %v2170 = vpop.xlane.xlu0 %2169
        %v2171 = vsel %vm344, %v1937, -inf
        %2172 = vmax.xlane.f32.xlu0 %v2171
        %v2173 = vpop.xlane.xlu0 %2172
        %v2174 = vsel %vm344, %v1938, -inf
        %2175 = vmax.xlane.f32.xlu0 %v2174
        %v2176 = vpop.xlane.xlu0 %2175
        %v2177 = vsel %vm344, %v1939, -inf
        %2178 = vmax.xlane.f32.xlu0 %v2177
        %v2179 = vpop.xlane.xlu0 %2178
        %v2180 = vsel %vm344, %v1940, -inf
        %2181 = vmax.xlane.f32.xlu0 %v2180
        %v2182 = vpop.xlane.xlu0 %2181
        %v2183 = vsel %vm344, %v1941, -inf
        %2184 = vmax.xlane.f32.xlu0 %v2183
        %v2185 = vpop.xlane.xlu0 %2184
        %v2186 = vsel %vm344, %v1942, -inf
        %2187 = vmax.xlane.f32.xlu0 %v2186
        %v2188 = vpop.xlane.xlu0 %2187
        %v2189 = vsel %vm344, %v1943, -inf
        %2190 = vmax.xlane.f32.xlu0 %v2189
        %v2191 = vpop.xlane.xlu0 %2190
        %v2192 = vsel %vm344, %v1944, -inf
        %2193 = vmax.xlane.f32.xlu0 %v2192
        %v2194 = vpop.xlane.xlu0 %2193
        %v2195 = vsel %vm344, %v1945, -inf
        %2196 = vmax.xlane.f32.xlu0 %v2195
        %v2197 = vpop.xlane.xlu0 %2196
        %v2198 = vsel %vm344, %v1946, -inf
        %2199 = vmax.xlane.f32.xlu0 %v2198
        %v2200 = vpop.xlane.xlu0 %2199
        %v2201 = vsel %vm344, %v1947, -inf
        %2202 = vmax.xlane.f32.xlu0 %v2201
        %v2203 = vpop.xlane.xlu0 %2202
        %v2204 = vsel %vm344, %v1948, -inf
        %2205 = vmax.xlane.f32.xlu0 %v2204
        %v2206 = vpop.xlane.xlu0 %2205
        %v2207 = vsel %vm344, %v1949, -inf
        %2208 = vmax.xlane.f32.xlu0 %v2207
        %v2209 = vpop.xlane.xlu0 %2208
        %v2210 = vsel %vm344, %v1950, -inf
        %2211 = vmax.xlane.f32.xlu0 %v2210
        %v2212 = vpop.xlane.xlu0 %2211
        %v2213 = vsel %vm344, %v1951, -inf
        %2214 = vmax.xlane.f32.xlu0 %v2213
        %v2215 = vpop.xlane.xlu0 %2214
        %v2216 = vsel %vm344, %v1952, -inf
        %2217 = vmax.xlane.f32.xlu0 %v2216
        %v2218 = vpop.xlane.xlu0 %2217
        %v2219 = vsel %vm344, %v1953, -inf
        %2220 = vmax.xlane.f32.xlu0 %v2219
        %v2221 = vpop.xlane.xlu0 %2220
        %v2222 = vsel %vm344, %v1954, -inf
        %2223 = vmax.xlane.f32.xlu0 %v2222
        %v2224 = vpop.xlane.xlu0 %2223
        %v2225 = vsel %vm344, %v1955, -inf
        %2226 = vmax.xlane.f32.xlu0 %v2225
        %v2227 = vpop.xlane.xlu0 %2226
        %v2228 = vsel %vm344, %v1956, -inf
        %2229 = vmax.xlane.f32.xlu0 %v2228
        %v2230 = vpop.xlane.xlu0 %2229
        %v2231 = vsel %vm344, %v1957, -inf
        %2232 = vmax.xlane.f32.xlu0 %v2231
        %v2233 = vpop.xlane.xlu0 %2232
        %v2234 = vsel %vm344, %v1958, -inf
        %2235 = vmax.xlane.f32.xlu0 %v2234
        %v2236 = vpop.xlane.xlu0 %2235
        %v2237 = vsel %vm344, %v1959, -inf
        %2238 = vmax.xlane.f32.xlu0 %v2237
        %v2239 = vpop.xlane.xlu0 %2238
        %v2240 = vsel %vm344, %v1960, -inf
        %2241 = vmax.xlane.f32.xlu0 %v2240
        %v2242 = vpop.xlane.xlu0 %2241
        %v2243 = vsel %vm344, %v1961, -inf
        %2244 = vmax.xlane.f32.xlu0 %v2243
        %v2245 = vpop.xlane.xlu0 %2244
        %v2246 = vsel %vm344, %v1962, -inf
        %2247 = vmax.xlane.f32.xlu0 %v2246
        %v2248 = vpop.xlane.xlu0 %2247
        %v2249 = vsel %vm344, %v1963, -inf
        %2250 = vmax.xlane.f32.xlu0 %v2249
        %v2251 = vpop.xlane.xlu0 %2250
        %v2252 = vsel %vm344, %v1964, -inf
        %2253 = vmax.xlane.f32.xlu0 %v2252
        %v2254 = vpop.xlane.xlu0 %2253
        %v2255 = vsel %vm344, %v1965, -inf
        %2256 = vmax.xlane.f32.xlu0 %v2255
        %v2257 = vpop.xlane.xlu0 %2256
        %v2258 = vsel %vm344, %v1966, -inf
        %2259 = vmax.xlane.f32.xlu0 %v2258
        %v2260 = vpop.xlane.xlu0 %2259
        %v2261 = vsel %vm344, %v1967, -inf
        %2262 = vmax.xlane.f32.xlu0 %v2261
        %v2263 = vpop.xlane.xlu0 %2262
        %v2264 = vsel %vm344, %v1968, -inf
        %2265 = vmax.xlane.f32.xlu0 %v2264
        %v2266 = vpop.xlane.xlu0 %2265
        %v2267 = vsel %vm344, %v1969, -inf
        %2268 = vmax.xlane.f32.xlu0 %v2267
        %v2269 = vpop.xlane.xlu0 %2268
        %v2270 = vsel %vm344, %v1970, -inf
        %2271 = vmax.xlane.f32.xlu0 %v2270
        %v2272 = vpop.xlane.xlu0 %2271
        %v2273 = vsel %vm344, %v1971, -inf
        %2274 = vmax.xlane.f32.xlu0 %v2273
        %v2275 = vpop.xlane.xlu0 %2274
        %v2276 = vsel %vm344, %v1972, -inf
        %2277 = vmax.xlane.f32.xlu0 %v2276
        %v2278 = vpop.xlane.xlu0 %2277
        %v2279 = vsel %vm344, %v1973, -inf
        %2280 = vmax.xlane.f32.xlu0 %v2279
        %v2281 = vpop.xlane.xlu0 %2280
        %v2282 = vsel %vm344, %v1974, -inf
        %2283 = vmax.xlane.f32.xlu0 %v2282
        %v2284 = vpop.xlane.xlu0 %2283
        %v2285 = vsel %vm344, %v1975, -inf
        %2286 = vmax.xlane.f32.xlu0 %v2285
        %v2287 = vpop.xlane.xlu0 %2286
        %v2288 = vsel %vm344, %v1976, -inf
        %2289 = vmax.xlane.f32.xlu0 %v2288
        %v2290 = vpop.xlane.xlu0 %2289
        %v2291 = vsel %vm344, %v1977, -inf
        %2292 = vmax.xlane.f32.xlu0 %v2291
        %v2293 = vpop.xlane.xlu0 %2292
        %v2294 = vsel %vm344, %v1978, -inf
        %2295 = vmax.xlane.f32.xlu0 %v2294
        %v2296 = vpop.xlane.xlu0 %2295
        %v2297 = vsel %vm344, %v1979, -inf
        %2298 = vmax.xlane.f32.xlu0 %v2297
        %v2299 = vpop.xlane.xlu0 %2298
        %v2300 = vsel %vm344, %v1980, -inf
        %2301 = vmax.xlane.f32.xlu0 %v2300
        %v2302 = vpop.xlane.xlu0 %2301
        %v2303 = vsel %vm344, %v1981, -inf
        %2304 = vmax.xlane.f32.xlu0 %v2303
        %v2305 = vpop.xlane.xlu0 %2304
        %v2306 = vsel %vm344, %v1982, -inf
        %2307 = vmax.xlane.f32.xlu0 %v2306
        %v2308 = vpop.xlane.xlu0 %2307
        %v2309 = vsel %vm344, %v1983, -inf
        %2310 = vmax.xlane.f32.xlu0 %v2309
        %v2311 = vpop.xlane.xlu0 %2310
        %v2312 = vsel %vm344, %v1984, -inf
        %2313 = vmax.xlane.f32.xlu0 %v2312
        %v2314 = vpop.xlane.xlu0 %2313
        %v2315 = vsel %vm344, %v1985, -inf
        %2316 = vmax.xlane.f32.xlu0 %v2315
        %v2317 = vpop.xlane.xlu0 %2316
        %v2318 = vsel %vm344, %v1986, -inf
        %2319 = vmax.xlane.f32.xlu0 %v2318
        %v2320 = vpop.xlane.xlu0 %2319
        %v2321 = vsel %vm344, %v1987, -inf
        %2322 = vmax.xlane.f32.xlu0 %v2321
        %v2323 = vpop.xlane.xlu0 %2322
        %v2324 = vsel %vm344, %v1988, -inf
        %2325 = vmax.xlane.f32.xlu0 %v2324
        %v2326 = vpop.xlane.xlu0 %2325
        %v2327 = vsel %vm344, %v1989, -inf
        %2328 = vmax.xlane.f32.xlu0 %v2327
        %v2329 = vpop.xlane.xlu0 %2328
        %v2330 = vsel %vm344, %v1990, -inf
        %2331 = vmax.xlane.f32.xlu0 %v2330
        %v2332 = vpop.xlane.xlu0 %2331
        %v2333 = vsel %vm344, %v1991, -inf
        %2334 = vmax.xlane.f32.xlu0 %v2333
        %v2335 = vpop.xlane.xlu0 %2334
        %v2336 = vsel %vm344, %v1992, -inf
        %2337 = vmax.xlane.f32.xlu0 %v2336
        %v2338 = vpop.xlane.xlu0 %2337
        %v2339 = vsel %vm344, %v1993, -inf
        %2340 = vmax.xlane.f32.xlu0 %v2339
        %v2341 = vpop.xlane.xlu0 %2340
        %v2342 = vsel %vm344, %v1994, -inf
        %2343 = vmax.xlane.f32.xlu0 %v2342
        %v2344 = vpop.xlane.xlu0 %2343
        %v2345 = vsel %vm344, %v1995, -inf
        %2346 = vmax.xlane.f32.xlu0 %v2345
        %v2347 = vpop.xlane.xlu0 %2346
        %v2348 = vsel %vm344, %v1996, -inf
        %2349 = vmax.xlane.f32.xlu0 %v2348
        %v2350 = vpop.xlane.xlu0 %2349
        %v2351 = vsel %vm344, %v1997, -inf
        %2352 = vmax.xlane.f32.xlu0 %v2351
        %v2353 = vpop.xlane.xlu0 %2352
        %v2354 = vsel %vm344, %v1998, -inf
        %2355 = vmax.xlane.f32.xlu0 %v2354
        %v2356 = vpop.xlane.xlu0 %2355
        %v2357 = vsel %vm344, %v1999, -inf
        %2358 = vmax.xlane.f32.xlu0 %v2357
        %v2359 = vpop.xlane.xlu0 %2358
        %v2360 = vsel %vm344, %v2000, -inf
        %2361 = vmax.xlane.f32.xlu0 %v2360
        %v2362 = vpop.xlane.xlu0 %2361
        %v2363 = vsel %vm344, %v2001, -inf
        %2364 = vmax.xlane.f32.xlu0 %v2363
        %v2365 = vpop.xlane.xlu0 %2364
        %v2366 = vsel %vm344, %v2002, -inf
        %2367 = vmax.xlane.f32.xlu0 %v2366
        %v2368 = vpop.xlane.xlu0 %2367
        %v2369 = vsel %vm344, %v2003, -inf
        %2370 = vmax.xlane.f32.xlu0 %v2369
        %v2371 = vpop.xlane.xlu0 %2370
        %v2372 = vsel %vm344, %v2004, -inf
        %2373 = vmax.xlane.f32.xlu0 %v2372
        %v2374 = vpop.xlane.xlu0 %2373
        %v2375 = vsel %vm344, %v2005, -inf
        %2376 = vmax.xlane.f32.xlu0 %v2375
        %v2377 = vpop.xlane.xlu0 %2376
        %v2378 = vsel %vm344, %v2006, -inf
        %2379 = vmax.xlane.f32.xlu0 %v2378
        %v2380 = vpop.xlane.xlu0 %2379
        %v2381 = vsel %vm344, %v2007, -inf
        %2382 = vmax.xlane.f32.xlu0 %v2381
        %v2383 = vpop.xlane.xlu0 %2382
        %v2384 = vsel %vm344, %v2008, -inf
        %2385 = vmax.xlane.f32.xlu0 %v2384
        %v2386 = vpop.xlane.xlu0 %2385
        %v2387 = vsel %vm344, %v2009, -inf
        %2388 = vmax.xlane.f32.xlu0 %v2387
        %v2389 = vpop.xlane.xlu0 %2388
        %v2390 = vsel %vm344, %v2010, -inf
        %2391 = vmax.xlane.f32.xlu0 %v2390
        %v2392 = vpop.xlane.xlu0 %2391
        %v2393 = vsel %vm344, %v2011, -inf
        %2394 = vmax.xlane.f32.xlu0 %v2393
        %v2395 = vpop.xlane.xlu0 %2394
        %v2396 = vsel %vm344, %v1884, 0.0
        %2397 = vadd.xlane.f32.xlu0 %v2396
        %v2398 = vpop.xlane.xlu0 %2397
        %v2399 = vsel %vm344, %v1885, 0.0
        %2400 = vadd.xlane.f32.xlu0 %v2399
        %v2401 = vpop.xlane.xlu0 %2400
        %v2402 = vsel %vm344, %v1886, 0.0
        %2403 = vadd.xlane.f32.xlu0 %v2402
        %v2404 = vpop.xlane.xlu0 %2403
        %v2405 = vsel %vm344, %v1887, 0.0
        %2406 = vadd.xlane.f32.xlu0 %v2405
        %v2407 = vpop.xlane.xlu0 %2406
        %v2408 = vsel %vm344, %v1888, 0.0
        %2409 = vadd.xlane.f32.xlu0 %v2408
        %v2410 = vpop.xlane.xlu0 %2409
        %v2411 = vsel %vm344, %v1889, 0.0
        %2412 = vadd.xlane.f32.xlu0 %v2411
        %v2413 = vpop.xlane.xlu0 %2412
        %v2414 = vsel %vm344, %v1890, 0.0
        %2415 = vadd.xlane.f32.xlu0 %v2414
        %v2416 = vpop.xlane.xlu0 %2415
        %v2417 = vsel %vm344, %v1891, 0.0
        %2418 = vadd.xlane.f32.xlu0 %v2417
        %v2419 = vpop.xlane.xlu0 %2418
        %v2420 = vsel %vm344, %v1892, 0.0
        %2421 = vadd.xlane.f32.xlu0 %v2420
        %v2422 = vpop.xlane.xlu0 %2421
        %v2423 = vsel %vm344, %v1893, 0.0
        %2424 = vadd.xlane.f32.xlu0 %v2423
        %v2425 = vpop.xlane.xlu0 %2424
        %v2426 = vsel %vm344, %v1894, 0.0
        %2427 = vadd.xlane.f32.xlu0 %v2426
        %v2428 = vpop.xlane.xlu0 %2427
        %v2429 = vsel %vm344, %v1895, 0.0
        %2430 = vadd.xlane.f32.xlu0 %v2429
        %v2431 = vpop.xlane.xlu0 %2430
        %v2432 = vsel %vm344, %v1896, 0.0
        %2433 = vadd.xlane.f32.xlu0 %v2432
        %v2434 = vpop.xlane.xlu0 %2433
        %v2435 = vsel %vm344, %v1897, 0.0
        %2436 = vadd.xlane.f32.xlu0 %v2435
        %v2437 = vpop.xlane.xlu0 %2436
        %v2438 = vsel %vm344, %v1898, 0.0
        %2439 = vadd.xlane.f32.xlu0 %v2438
        %v2440 = vpop.xlane.xlu0 %2439
        %v2441 = vsel %vm344, %v1899, 0.0
        %2442 = vadd.xlane.f32.xlu0 %v2441
        %v2443 = vpop.xlane.xlu0 %2442
        %v2444 = vsel %vm344, %v1900, 0.0
        %2445 = vadd.xlane.f32.xlu0 %v2444
        %v2446 = vpop.xlane.xlu0 %2445
        %v2447 = vsel %vm344, %v1901, 0.0
        %2448 = vadd.xlane.f32.xlu0 %v2447
        %v2449 = vpop.xlane.xlu0 %2448
        %v2450 = vsel %vm344, %v1902, 0.0
        %2451 = vadd.xlane.f32.xlu0 %v2450
        %v2452 = vpop.xlane.xlu0 %2451
        %v2453 = vsel %vm344, %v1903, 0.0
        %2454 = vadd.xlane.f32.xlu0 %v2453
        %v2455 = vpop.xlane.xlu0 %2454
        %v2456 = vsel %vm344, %v1904, 0.0
        %2457 = vadd.xlane.f32.xlu0 %v2456
        %v2458 = vpop.xlane.xlu0 %2457
        %v2459 = vsel %vm344, %v1905, 0.0
        %2460 = vadd.xlane.f32.xlu0 %v2459
        %v2461 = vpop.xlane.xlu0 %2460
        %v2462 = vsel %vm344, %v1906, 0.0
        %2463 = vadd.xlane.f32.xlu0 %v2462
        %v2464 = vpop.xlane.xlu0 %2463
        %v2465 = vsel %vm344, %v1907, 0.0
        %2466 = vadd.xlane.f32.xlu0 %v2465
        %v2467 = vpop.xlane.xlu0 %2466
        %v2468 = vsel %vm344, %v1908, 0.0
        %2469 = vadd.xlane.f32.xlu0 %v2468
        %v2470 = vpop.xlane.xlu0 %2469
        %v2471 = vsel %vm344, %v1909, 0.0
        %2472 = vadd.xlane.f32.xlu0 %v2471
        %v2473 = vpop.xlane.xlu0 %2472
        %v2474 = vsel %vm344, %v1910, 0.0
        %2475 = vadd.xlane.f32.xlu0 %v2474
        %v2476 = vpop.xlane.xlu0 %2475
        %v2477 = vsel %vm344, %v1911, 0.0
        %2478 = vadd.xlane.f32.xlu0 %v2477
        %v2479 = vpop.xlane.xlu0 %2478
        %v2480 = vsel %vm344, %v1912, 0.0
        %2481 = vadd.xlane.f32.xlu0 %v2480
        %v2482 = vpop.xlane.xlu0 %2481
        %v2483 = vsel %vm344, %v1913, 0.0
        %2484 = vadd.xlane.f32.xlu0 %v2483
        %v2485 = vpop.xlane.xlu0 %2484
        %v2486 = vsel %vm344, %v1914, 0.0
        %2487 = vadd.xlane.f32.xlu0 %v2486
        %v2488 = vpop.xlane.xlu0 %2487
        %v2489 = vsel %vm344, %v1915, 0.0
        %2490 = vadd.xlane.f32.xlu0 %v2489
        %v2491 = vpop.xlane.xlu0 %2490
        %v2492 = vsel %vm344, %v1916, 0.0
        %2493 = vadd.xlane.f32.xlu0 %v2492
        %v2494 = vpop.xlane.xlu0 %2493
        %v2495 = vsel %vm344, %v1917, 0.0
        %2496 = vadd.xlane.f32.xlu0 %v2495
        %v2497 = vpop.xlane.xlu0 %2496
        %v2498 = vsel %vm344, %v1918, 0.0
        %2499 = vadd.xlane.f32.xlu0 %v2498
        %v2500 = vpop.xlane.xlu0 %2499
        %v2501 = vsel %vm344, %v1919, 0.0
        %2502 = vadd.xlane.f32.xlu0 %v2501
        %v2503 = vpop.xlane.xlu0 %2502
        %v2504 = vsel %vm344, %v1920, 0.0
        %2505 = vadd.xlane.f32.xlu0 %v2504
        %v2506 = vpop.xlane.xlu0 %2505
        %v2507 = vsel %vm344, %v1921, 0.0
        %2508 = vadd.xlane.f32.xlu0 %v2507
        %v2509 = vpop.xlane.xlu0 %2508
        %v2510 = vsel %vm344, %v1922, 0.0
        %2511 = vadd.xlane.f32.xlu0 %v2510
        %v2512 = vpop.xlane.xlu0 %2511
        %v2513 = vsel %vm344, %v1923, 0.0
        %2514 = vadd.xlane.f32.xlu0 %v2513
        %v2515 = vpop.xlane.xlu0 %2514
        %v2516 = vsel %vm344, %v1924, 0.0
        %2517 = vadd.xlane.f32.xlu0 %v2516
        %v2518 = vpop.xlane.xlu0 %2517
        %v2519 = vsel %vm344, %v1925, 0.0
        %2520 = vadd.xlane.f32.xlu0 %v2519
        %v2521 = vpop.xlane.xlu0 %2520
        %v2522 = vsel %vm344, %v1926, 0.0
        %2523 = vadd.xlane.f32.xlu0 %v2522
        %v2524 = vpop.xlane.xlu0 %2523
        %v2525 = vsel %vm344, %v1927, 0.0
        %2526 = vadd.xlane.f32.xlu0 %v2525
        %v2527 = vpop.xlane.xlu0 %2526
        %v2528 = vsel %vm344, %v1928, 0.0
        %2529 = vadd.xlane.f32.xlu0 %v2528
        %v2530 = vpop.xlane.xlu0 %2529
        %v2531 = vsel %vm344, %v1929, 0.0
        %2532 = vadd.xlane.f32.xlu0 %v2531
        %v2533 = vpop.xlane.xlu0 %2532
        %v2534 = vsel %vm344, %v1930, 0.0
        %2535 = vadd.xlane.f32.xlu0 %v2534
        %v2536 = vpop.xlane.xlu0 %2535
        %v2537 = vsel %vm344, %v1931, 0.0
        %2538 = vadd.xlane.f32.xlu0 %v2537
        %v2539 = vpop.xlane.xlu0 %2538
        %v2540 = vsel %vm344, %v1932, 0.0
        %2541 = vadd.xlane.f32.xlu0 %v2540
        %v2542 = vpop.xlane.xlu0 %2541
        %v2543 = vsel %vm344, %v1933, 0.0
        %2544 = vadd.xlane.f32.xlu0 %v2543
        %v2545 = vpop.xlane.xlu0 %2544
        %v2546 = vsel %vm344, %v1934, 0.0
        %2547 = vadd.xlane.f32.xlu0 %v2546
        %v2548 = vpop.xlane.xlu0 %2547
        %v2549 = vsel %vm344, %v1935, 0.0
        %2550 = vadd.xlane.f32.xlu0 %v2549
        %v2551 = vpop.xlane.xlu0 %2550
        %v2552 = vsel %vm344, %v1936, 0.0
        %2553 = vadd.xlane.f32.xlu0 %v2552
        %v2554 = vpop.xlane.xlu0 %2553
        %v2555 = vsel %vm344, %v1937, 0.0
        %2556 = vadd.xlane.f32.xlu0 %v2555
        %v2557 = vpop.xlane.xlu0 %2556
        %v2558 = vsel %vm344, %v1938, 0.0
        %2559 = vadd.xlane.f32.xlu0 %v2558
        %v2560 = vpop.xlane.xlu0 %2559
        %v2561 = vsel %vm344, %v1939, 0.0
        %2562 = vadd.xlane.f32.xlu0 %v2561
        %v2563 = vpop.xlane.xlu0 %2562
        %v2564 = vsel %vm344, %v1940, 0.0
        %2565 = vadd.xlane.f32.xlu0 %v2564
        %v2566 = vpop.xlane.xlu0 %2565
        %v2567 = vsel %vm344, %v1941, 0.0
        %2568 = vadd.xlane.f32.xlu0 %v2567
        %v2569 = vpop.xlane.xlu0 %2568
        %v2570 = vsel %vm344, %v1942, 0.0
        %2571 = vadd.xlane.f32.xlu0 %v2570
        %v2572 = vpop.xlane.xlu0 %2571
        %v2573 = vsel %vm344, %v1943, 0.0
        %2574 = vadd.xlane.f32.xlu0 %v2573
        %v2575 = vpop.xlane.xlu0 %2574
        %v2576 = vsel %vm344, %v1944, 0.0
        %2577 = vadd.xlane.f32.xlu0 %v2576
        %v2578 = vpop.xlane.xlu0 %2577
        %v2579 = vsel %vm344, %v1945, 0.0
        %2580 = vadd.xlane.f32.xlu0 %v2579
        %v2581 = vpop.xlane.xlu0 %2580
        %v2582 = vsel %vm344, %v1946, 0.0
        %2583 = vadd.xlane.f32.xlu0 %v2582
        %v2584 = vpop.xlane.xlu0 %2583
        %v2585 = vsel %vm344, %v1947, 0.0
        %2586 = vadd.xlane.f32.xlu0 %v2585
        %v2587 = vpop.xlane.xlu0 %2586
        %v2588 = vsel %vm344, %v1948, 0.0
        %2589 = vadd.xlane.f32.xlu0 %v2588
        %v2590 = vpop.xlane.xlu0 %2589
        %v2591 = vsel %vm344, %v1949, 0.0
        %2592 = vadd.xlane.f32.xlu0 %v2591
        %v2593 = vpop.xlane.xlu0 %2592
        %v2594 = vsel %vm344, %v1950, 0.0
        %2595 = vadd.xlane.f32.xlu0 %v2594
        %v2596 = vpop.xlane.xlu0 %2595
        %v2597 = vsel %vm344, %v1951, 0.0
        %2598 = vadd.xlane.f32.xlu0 %v2597
        %v2599 = vpop.xlane.xlu0 %2598
        %v2600 = vsel %vm344, %v1952, 0.0
        %2601 = vadd.xlane.f32.xlu0 %v2600
        %v2602 = vpop.xlane.xlu0 %2601
        %v2603 = vsel %vm344, %v1953, 0.0
        %2604 = vadd.xlane.f32.xlu0 %v2603
        %v2605 = vpop.xlane.xlu0 %2604
        %v2606 = vsel %vm344, %v1954, 0.0
        %2607 = vadd.xlane.f32.xlu0 %v2606
        %v2608 = vpop.xlane.xlu0 %2607
        %v2609 = vsel %vm344, %v1955, 0.0
        %2610 = vadd.xlane.f32.xlu0 %v2609
        %v2611 = vpop.xlane.xlu0 %2610
        %v2612 = vsel %vm344, %v1956, 0.0
        %2613 = vadd.xlane.f32.xlu0 %v2612
        %v2614 = vpop.xlane.xlu0 %2613
        %v2615 = vsel %vm344, %v1957, 0.0
        %2616 = vadd.xlane.f32.xlu0 %v2615
        %v2617 = vpop.xlane.xlu0 %2616
        %v2618 = vsel %vm344, %v1958, 0.0
        %2619 = vadd.xlane.f32.xlu0 %v2618
        %v2620 = vpop.xlane.xlu0 %2619
        %v2621 = vsel %vm344, %v1959, 0.0
        %2622 = vadd.xlane.f32.xlu0 %v2621
        %v2623 = vpop.xlane.xlu0 %2622
        %v2624 = vsel %vm344, %v1960, 0.0
        %2625 = vadd.xlane.f32.xlu0 %v2624
        %v2626 = vpop.xlane.xlu0 %2625
        %v2627 = vsel %vm344, %v1961, 0.0
        %2628 = vadd.xlane.f32.xlu0 %v2627
        %v2629 = vpop.xlane.xlu0 %2628
        %v2630 = vsel %vm344, %v1962, 0.0
        %2631 = vadd.xlane.f32.xlu0 %v2630
        %v2632 = vpop.xlane.xlu0 %2631
        %v2633 = vsel %vm344, %v1963, 0.0
        %2634 = vadd.xlane.f32.xlu0 %v2633
        %v2635 = vpop.xlane.xlu0 %2634
        %v2636 = vsel %vm344, %v1964, 0.0
        %2637 = vadd.xlane.f32.xlu0 %v2636
        %v2638 = vpop.xlane.xlu0 %2637
        %v2639 = vsel %vm344, %v1965, 0.0
        %2640 = vadd.xlane.f32.xlu0 %v2639
        %v2641 = vpop.xlane.xlu0 %2640
        %v2642 = vsel %vm344, %v1966, 0.0
        %2643 = vadd.xlane.f32.xlu0 %v2642
        %v2644 = vpop.xlane.xlu0 %2643
        %v2645 = vsel %vm344, %v1967, 0.0
        %2646 = vadd.xlane.f32.xlu0 %v2645
        %v2647 = vpop.xlane.xlu0 %2646
        %v2648 = vsel %vm344, %v1968, 0.0
        %2649 = vadd.xlane.f32.xlu0 %v2648
        %v2650 = vpop.xlane.xlu0 %2649
        %v2651 = vsel %vm344, %v1969, 0.0
        %2652 = vadd.xlane.f32.xlu0 %v2651
        %v2653 = vpop.xlane.xlu0 %2652
        %v2654 = vsel %vm344, %v1970, 0.0
        %2655 = vadd.xlane.f32.xlu0 %v2654
        %v2656 = vpop.xlane.xlu0 %2655
        %v2657 = vsel %vm344, %v1971, 0.0
        %2658 = vadd.xlane.f32.xlu0 %v2657
        %v2659 = vpop.xlane.xlu0 %2658
        %v2660 = vsel %vm344, %v1972, 0.0
        %2661 = vadd.xlane.f32.xlu0 %v2660
        %v2662 = vpop.xlane.xlu0 %2661
        %v2663 = vsel %vm344, %v1973, 0.0
        %2664 = vadd.xlane.f32.xlu0 %v2663
        %v2665 = vpop.xlane.xlu0 %2664
        %v2666 = vsel %vm344, %v1974, 0.0
        %2667 = vadd.xlane.f32.xlu0 %v2666
        %v2668 = vpop.xlane.xlu0 %2667
        %v2669 = vsel %vm344, %v1975, 0.0
        %2670 = vadd.xlane.f32.xlu0 %v2669
        %v2671 = vpop.xlane.xlu0 %2670
        %v2672 = vsel %vm344, %v1976, 0.0
        %2673 = vadd.xlane.f32.xlu0 %v2672
        %v2674 = vpop.xlane.xlu0 %2673
        %v2675 = vsel %vm344, %v1977, 0.0
        %2676 = vadd.xlane.f32.xlu0 %v2675
        %v2677 = vpop.xlane.xlu0 %2676
        %v2678 = vsel %vm344, %v1978, 0.0
        %2679 = vadd.xlane.f32.xlu0 %v2678
        %v2680 = vpop.xlane.xlu0 %2679
        %v2681 = vsel %vm344, %v1979, 0.0
        %2682 = vadd.xlane.f32.xlu0 %v2681
        %v2683 = vpop.xlane.xlu0 %2682
        %v2684 = vsel %vm344, %v1980, 0.0
        %2685 = vadd.xlane.f32.xlu0 %v2684
        %v2686 = vpop.xlane.xlu0 %2685
        %v2687 = vsel %vm344, %v1981, 0.0
        %2688 = vadd.xlane.f32.xlu0 %v2687
        %v2689 = vpop.xlane.xlu0 %2688
        %v2690 = vsel %vm344, %v1982, 0.0
        %2691 = vadd.xlane.f32.xlu0 %v2690
        %v2692 = vpop.xlane.xlu0 %2691
        %v2693 = vsel %vm344, %v1983, 0.0
        %2694 = vadd.xlane.f32.xlu0 %v2693
        %v2695 = vpop.xlane.xlu0 %2694
        %v2696 = vsel %vm344, %v1984, 0.0
        %2697 = vadd.xlane.f32.xlu0 %v2696
        %v2698 = vpop.xlane.xlu0 %2697
        %v2699 = vsel %vm344, %v1985, 0.0
        %2700 = vadd.xlane.f32.xlu0 %v2699
        %v2701 = vpop.xlane.xlu0 %2700
        %v2702 = vsel %vm344, %v1986, 0.0
        %2703 = vadd.xlane.f32.xlu0 %v2702
        %v2704 = vpop.xlane.xlu0 %2703
        %v2705 = vsel %vm344, %v1987, 0.0
        %2706 = vadd.xlane.f32.xlu0 %v2705
        %v2707 = vpop.xlane.xlu0 %2706
        %v2708 = vsel %vm344, %v1988, 0.0
        %2709 = vadd.xlane.f32.xlu0 %v2708
        %v2710 = vpop.xlane.xlu0 %2709
        %v2711 = vsel %vm344, %v1989, 0.0
        %2712 = vadd.xlane.f32.xlu0 %v2711
        %v2713 = vpop.xlane.xlu0 %2712
        %v2714 = vsel %vm344, %v1990, 0.0
        %2715 = vadd.xlane.f32.xlu0 %v2714
        %v2716 = vpop.xlane.xlu0 %2715
        %v2717 = vsel %vm344, %v1991, 0.0
        %2718 = vadd.xlane.f32.xlu0 %v2717
        %v2719 = vpop.xlane.xlu0 %2718
        %v2720 = vsel %vm344, %v1992, 0.0
        %2721 = vadd.xlane.f32.xlu0 %v2720
        %v2722 = vpop.xlane.xlu0 %2721
        %v2723 = vsel %vm344, %v1993, 0.0
        %2724 = vadd.xlane.f32.xlu0 %v2723
        %v2725 = vpop.xlane.xlu0 %2724
        %v2726 = vsel %vm344, %v1994, 0.0
        %2727 = vadd.xlane.f32.xlu0 %v2726
        %v2728 = vpop.xlane.xlu0 %2727
        %v2729 = vsel %vm344, %v1995, 0.0
        %2730 = vadd.xlane.f32.xlu0 %v2729
        %v2731 = vpop.xlane.xlu0 %2730
        %v2732 = vsel %vm344, %v1996, 0.0
        %2733 = vadd.xlane.f32.xlu0 %v2732
        %v2734 = vpop.xlane.xlu0 %2733
        %v2735 = vsel %vm344, %v1997, 0.0
        %2736 = vadd.xlane.f32.xlu0 %v2735
        %v2737 = vpop.xlane.xlu0 %2736
        %v2738 = vsel %vm344, %v1998, 0.0
        %2739 = vadd.xlane.f32.xlu0 %v2738
        %v2740 = vpop.xlane.xlu0 %2739
        %v2741 = vsel %vm344, %v1999, 0.0
        %2742 = vadd.xlane.f32.xlu0 %v2741
        %v2743 = vpop.xlane.xlu0 %2742
        %v2744 = vsel %vm344, %v2000, 0.0
        %2745 = vadd.xlane.f32.xlu0 %v2744
        %v2746 = vpop.xlane.xlu0 %2745
        %v2747 = vsel %vm344, %v2001, 0.0
        %2748 = vadd.xlane.f32.xlu0 %v2747
        %v2749 = vpop.xlane.xlu0 %2748
        %v2750 = vsel %vm344, %v2002, 0.0
        %2751 = vadd.xlane.f32.xlu0 %v2750
        %v2752 = vpop.xlane.xlu0 %2751
        %v2753 = vsel %vm344, %v2003, 0.0
        %2754 = vadd.xlane.f32.xlu0 %v2753
        %v2755 = vpop.xlane.xlu0 %2754
        %v2756 = vsel %vm344, %v2004, 0.0
        %2757 = vadd.xlane.f32.xlu0 %v2756
        %v2758 = vpop.xlane.xlu0 %2757
        %v2759 = vsel %vm344, %v2005, 0.0
        %2760 = vadd.xlane.f32.xlu0 %v2759
        %v2761 = vpop.xlane.xlu0 %2760
        %v2762 = vsel %vm344, %v2006, 0.0
        %2763 = vadd.xlane.f32.xlu0 %v2762
        %v2764 = vpop.xlane.xlu0 %2763
        %v2765 = vsel %vm344, %v2007, 0.0
        %2766 = vadd.xlane.f32.xlu0 %v2765
        %v2767 = vpop.xlane.xlu0 %2766
        %v2768 = vsel %vm344, %v2008, 0.0
        %2769 = vadd.xlane.f32.xlu0 %v2768
        %v2770 = vpop.xlane.xlu0 %2769
        %v2771 = vsel %vm344, %v2009, 0.0
        %2772 = vadd.xlane.f32.xlu0 %v2771
        %v2773 = vpop.xlane.xlu0 %2772
        %v2774 = vsel %vm344, %v2010, 0.0
        %2775 = vadd.xlane.f32.xlu0 %v2774
        %v2776 = vpop.xlane.xlu0 %2775
        %v2777 = vsel %vm344, %v2011, 0.0
        %2778 = vadd.xlane.f32.xlu0 %v2777
        %v2779 = vpop.xlane.xlu0 %2778
        %v2780 = vmul.f32 %v2398, 0.015625
        %v2781 = vmul.f32 %v2401, 0.015625
        %v2782 = vmul.f32 %v2404, 0.015625
        %v2783 = vmul.f32 %v2407, 0.015625
        %v2784 = vmul.f32 %v2410, 0.015625
        %v2785 = vmul.f32 %v2413, 0.015625
        %v2786 = vmul.f32 %v2416, 0.015625
        %v2787 = vmul.f32 %v2419, 0.015625
        %v2788 = vmul.f32 %v2422, 0.015625
        %v2789 = vmul.f32 %v2425, 0.015625
        %v2790 = vmul.f32 %v2428, 0.015625
        %v2791 = vmul.f32 %v2431, 0.015625
        %v2792 = vmul.f32 %v2434, 0.015625
        %v2793 = vmul.f32 %v2437, 0.015625
        %v2794 = vmul.f32 %v2440, 0.015625
        %v2795 = vmul.f32 %v2443, 0.015625
        %v2796 = vmul.f32 %v2446, 0.015625
        %v2797 = vmul.f32 %v2449, 0.015625
        %v2798 = vmul.f32 %v2452, 0.015625
        %v2799 = vmul.f32 %v2455, 0.015625
        %v2800 = vmul.f32 %v2458, 0.015625
        %v2801 = vmul.f32 %v2461, 0.015625
        %v2802 = vmul.f32 %v2464, 0.015625
        %v2803 = vmul.f32 %v2467, 0.015625
        %v2804 = vmul.f32 %v2470, 0.015625
        %v2805 = vmul.f32 %v2473, 0.015625
        %v2806 = vmul.f32 %v2476, 0.015625
        %v2807 = vmul.f32 %v2479, 0.015625
        %v2808 = vmul.f32 %v2482, 0.015625
        %v2809 = vmul.f32 %v2485, 0.015625
        %v2810 = vmul.f32 %v2488, 0.015625
        %v2811 = vmul.f32 %v2491, 0.015625
        %v2812 = vmul.f32 %v2494, 0.015625
        %v2813 = vmul.f32 %v2497, 0.015625
        %v2814 = vmul.f32 %v2500, 0.015625
        %v2815 = vmul.f32 %v2503, 0.015625
        %v2816 = vmul.f32 %v2506, 0.015625
        %v2817 = vmul.f32 %v2509, 0.015625
        %v2818 = vmul.f32 %v2512, 0.015625
        %v2819 = vmul.f32 %v2515, 0.015625
        %v2820 = vmul.f32 %v2518, 0.015625
        %v2821 = vmul.f32 %v2521, 0.015625
        %v2822 = vmul.f32 %v2524, 0.015625
        %v2823 = vmul.f32 %v2527, 0.015625
        %v2824 = vmul.f32 %v2530, 0.015625
        %v2825 = vmul.f32 %v2533, 0.015625
        %v2826 = vmul.f32 %v2536, 0.015625
        %v2827 = vmul.f32 %v2539, 0.015625
        %v2828 = vmul.f32 %v2542, 0.015625
        %v2829 = vmul.f32 %v2545, 0.015625
        %v2830 = vmul.f32 %v2548, 0.015625
        %v2831 = vmul.f32 %v2551, 0.015625
        %v2832 = vmul.f32 %v2554, 0.015625
        %v2833 = vmul.f32 %v2557, 0.015625
        %v2834 = vmul.f32 %v2560, 0.015625
        %v2835 = vmul.f32 %v2563, 0.015625
        %v2836 = vmul.f32 %v2566, 0.015625
        %v2837 = vmul.f32 %v2569, 0.015625
        %v2838 = vmul.f32 %v2572, 0.015625
        %v2839 = vmul.f32 %v2575, 0.015625
        %v2840 = vmul.f32 %v2578, 0.015625
        %v2841 = vmul.f32 %v2581, 0.015625
        %v2842 = vmul.f32 %v2584, 0.015625
        %v2843 = vmul.f32 %v2587, 0.015625
        %v2844 = vmul.f32 %v2590, 0.015625
        %v2845 = vmul.f32 %v2593, 0.015625
        %v2846 = vmul.f32 %v2596, 0.015625
        %v2847 = vmul.f32 %v2599, 0.015625
        %v2848 = vmul.f32 %v2602, 0.015625
        %v2849 = vmul.f32 %v2605, 0.015625
        %v2850 = vmul.f32 %v2608, 0.015625
        %v2851 = vmul.f32 %v2611, 0.015625
        %v2852 = vmul.f32 %v2614, 0.015625
        %v2853 = vmul.f32 %v2617, 0.015625
        %v2854 = vmul.f32 %v2620, 0.015625
        %v2855 = vmul.f32 %v2623, 0.015625
        %v2856 = vmul.f32 %v2626, 0.015625
        %v2857 = vmul.f32 %v2629, 0.015625
        %v2858 = vmul.f32 %v2632, 0.015625
        %v2859 = vmul.f32 %v2635, 0.015625
        %v2860 = vmul.f32 %v2638, 0.015625
        %v2861 = vmul.f32 %v2641, 0.015625
        %v2862 = vmul.f32 %v2644, 0.015625
        %v2863 = vmul.f32 %v2647, 0.015625
        %v2864 = vmul.f32 %v2650, 0.015625
        %v2865 = vmul.f32 %v2653, 0.015625
        %v2866 = vmul.f32 %v2656, 0.015625
        %v2867 = vmul.f32 %v2659, 0.015625
        %v2868 = vmul.f32 %v2662, 0.015625
        %v2869 = vmul.f32 %v2665, 0.015625
        %v2870 = vmul.f32 %v2668, 0.015625
        %v2871 = vmul.f32 %v2671, 0.015625
        %v2872 = vmul.f32 %v2674, 0.015625
        %v2873 = vmul.f32 %v2677, 0.015625
        %v2874 = vmul.f32 %v2680, 0.015625
        %v2875 = vmul.f32 %v2683, 0.015625
        %v2876 = vmul.f32 %v2686, 0.015625
        %v2877 = vmul.f32 %v2689, 0.015625
        %v2878 = vmul.f32 %v2692, 0.015625
        %v2879 = vmul.f32 %v2695, 0.015625
        %v2880 = vmul.f32 %v2698, 0.015625
        %v2881 = vmul.f32 %v2701, 0.015625
        %v2882 = vmul.f32 %v2704, 0.015625
        %v2883 = vmul.f32 %v2707, 0.015625
        %v2884 = vmul.f32 %v2710, 0.015625
        %v2885 = vmul.f32 %v2713, 0.015625
        %v2886 = vmul.f32 %v2716, 0.015625
        %v2887 = vmul.f32 %v2719, 0.015625
        %v2888 = vmul.f32 %v2722, 0.015625
        %v2889 = vmul.f32 %v2725, 0.015625
        %v2890 = vmul.f32 %v2728, 0.015625
        %v2891 = vmul.f32 %v2731, 0.015625
        %v2892 = vmul.f32 %v2734, 0.015625
        %v2893 = vmul.f32 %v2737, 0.015625
        %v2894 = vmul.f32 %v2740, 0.015625
        %v2895 = vmul.f32 %v2743, 0.015625
        %v2896 = vmul.f32 %v2746, 0.015625
        %v2897 = vmul.f32 %v2749, 0.015625
        %v2898 = vmul.f32 %v2752, 0.015625
        %v2899 = vmul.f32 %v2755, 0.015625
        %v2900 = vmul.f32 %v2758, 0.015625
        %v2901 = vmul.f32 %v2761, 0.015625
        %v2902 = vmul.f32 %v2764, 0.015625
        %v2903 = vmul.f32 %v2767, 0.015625
        %v2904 = vmul.f32 %v2770, 0.015625
        %v2905 = vmul.f32 %v2773, 0.015625
        %v2906 = vmul.f32 %v2776, 0.015625
        %v2907 = vmul.f32 %v2779, 0.015625
        %v3036 = vlaneseq
        %v3037 = vand.u32 %v3036, 127
        %v3038 = vadd.s32 %v3037, 4294967293
        %v3039 = vlaneseq
        %v3040 = vshrl.u32 %v3039, 7
        %v3041 = vsub.s32 %v3038, %v3040
        %v3042 = vrot.slane %v2014, %v3041
        %v3043 = vadd.s32 %v3037, 4294967285
        %v3044 = vlaneseq
        %v3045 = vshrl.u32 %v3044, 7
        %v3046 = vsub.s32 %v3043, %v3045
        %v3047 = vrot.slane %v2017, %v3046
        %vm3048 = vcmask 154712
        %v3049 = vsel %vm3048, %v3047, %v3042
        %v3050 = vadd.s32 %v3037, 4294967277
        %v3051 = vlaneseq
        %v3052 = vshrl.u32 %v3051, 7
        %v3053 = vsub.s32 %v3050, %v3052
        %v3054 = vrot.slane %v2020, %v3053
        %vm3055 = vcmask 220312
        %v3056 = vsel %vm3055, %v3054, %v3049
        %v3057 = vadd.s32 %v3037, 4294967269
        %v3058 = vlaneseq
        %v3059 = vshrl.u32 %v3058, 7
        %v3060 = vsub.s32 %v3057, %v3059
        %v3061 = vrot.slane %v2023, %v3060
        %vm3062 = vcmask 285912
        %v3063 = vsel %vm3062, %v3061, %v3056
        %v3064 = vlaneseq
        %v3065 = vshrl.u32 %v3064, 7
        %v3066 = vsub.s32 %v3038, %v3065
        %v3067 = vrot.slane %v2026, %v3066
        %v3068 = vlaneseq
        %v3069 = vshrl.u32 %v3068, 7
        %v3070 = vsub.s32 %v3043, %v3069
        %v3071 = vrot.slane %v2029, %v3070
        %v3072 = vsel %vm3048, %v3071, %v3067
        %v3073 = vlaneseq
        %v3074 = vshrl.u32 %v3073, 7
        %v3075 = vsub.s32 %v3050, %v3074
        %v3076 = vrot.slane %v2032, %v3075
        %v3077 = vsel %vm3055, %v3076, %v3072
        %v3078 = vlaneseq
        %v3079 = vshrl.u32 %v3078, 7
        %v3080 = vsub.s32 %v3057, %v3079
        %v3081 = vrot.slane %v2035, %v3080
        %v3082 = vsel %vm3062, %v3081, %v3077
        %v3083 = vlaneseq
        %v3084 = vshrl.u32 %v3083, 7
        %v3085 = vsub.s32 %v3038, %v3084
        %v3086 = vrot.slane %v2038, %v3085
        %v3087 = vlaneseq
        %v3088 = vshrl.u32 %v3087, 7
        %v3089 = vsub.s32 %v3043, %v3088
        %v3090 = vrot.slane %v2041, %v3089
        %v3091 = vsel %vm3048, %v3090, %v3086
        %v3092 = vlaneseq
        %v3093 = vshrl.u32 %v3092, 7
        %v3094 = vsub.s32 %v3050, %v3093
        %v3095 = vrot.slane %v2044, %v3094
        %v3096 = vsel %vm3055, %v3095, %v3091
        %v3097 = vlaneseq
        %v3098 = vshrl.u32 %v3097, 7
        %v3099 = vsub.s32 %v3057, %v3098
        %v3100 = vrot.slane %v2047, %v3099
        %v3101 = vsel %vm3062, %v3100, %v3096
        %v3102 = vlaneseq
        %v3103 = vshrl.u32 %v3102, 7
        %v3104 = vsub.s32 %v3038, %v3103
        %v3105 = vrot.slane %v2050, %v3104
        %v3106 = vlaneseq
        %v3107 = vshrl.u32 %v3106, 7
        %v3108 = vsub.s32 %v3043, %v3107
        %v3109 = vrot.slane %v2053, %v3108
        %v3110 = vsel %vm3048, %v3109, %v3105
        %v3111 = vlaneseq
        %v3112 = vshrl.u32 %v3111, 7
        %v3113 = vsub.s32 %v3050, %v3112
        %v3114 = vrot.slane %v2056, %v3113
        %v3115 = vsel %vm3055, %v3114, %v3110
        %v3116 = vlaneseq
        %v3117 = vshrl.u32 %v3116, 7
        %v3118 = vsub.s32 %v3057, %v3117
        %v3119 = vrot.slane %v2059, %v3118
        %v3120 = vsel %vm3062, %v3119, %v3115
        %v3121 = vlaneseq
        %v3122 = vshrl.u32 %v3121, 7
        %v3123 = vsub.s32 %v3038, %v3122
        %v3124 = vrot.slane %v2062, %v3123
        %v3125 = vlaneseq
        %v3126 = vshrl.u32 %v3125, 7
        %v3127 = vsub.s32 %v3043, %v3126
        %v3128 = vrot.slane %v2065, %v3127
        %v3129 = vsel %vm3048, %v3128, %v3124
        %v3130 = vlaneseq
        %v3131 = vshrl.u32 %v3130, 7
        %v3132 = vsub.s32 %v3050, %v3131
        %v3133 = vrot.slane %v2068, %v3132
        %v3134 = vsel %vm3055, %v3133, %v3129
        %v3135 = vlaneseq
        %v3136 = vshrl.u32 %v3135, 7
        %v3137 = vsub.s32 %v3057, %v3136
        %v3138 = vrot.slane %v2071, %v3137
        %v3139 = vsel %vm3062, %v3138, %v3134
        %v3140 = vlaneseq
        %v3141 = vshrl.u32 %v3140, 7
        %v3142 = vsub.s32 %v3038, %v3141
        %v3143 = vrot.slane %v2074, %v3142
        %v3144 = vlaneseq
        %v3145 = vshrl.u32 %v3144, 7
        %v3146 = vsub.s32 %v3043, %v3145
        %v3147 = vrot.slane %v2077, %v3146
        %v3148 = vsel %vm3048, %v3147, %v3143
        %v3149 = vlaneseq
        %v3150 = vshrl.u32 %v3149, 7
        %v3151 = vsub.s32 %v3050, %v3150
        %v3152 = vrot.slane %v2080, %v3151
        %v3153 = vsel %vm3055, %v3152, %v3148
        %v3154 = vlaneseq
        %v3155 = vshrl.u32 %v3154, 7
        %v3156 = vsub.s32 %v3057, %v3155
        %v3157 = vrot.slane %v2083, %v3156
        %v3158 = vsel %vm3062, %v3157, %v3153
        %v3159 = vlaneseq
        %v3160 = vshrl.u32 %v3159, 7
        %v3161 = vsub.s32 %v3038, %v3160
        %v3162 = vrot.slane %v2086, %v3161
        %v3163 = vlaneseq
        %v3164 = vshrl.u32 %v3163, 7
        %v3165 = vsub.s32 %v3043, %v3164
        %v3166 = vrot.slane %v2089, %v3165
        %v3167 = vsel %vm3048, %v3166, %v3162
        %v3168 = vlaneseq
        %v3169 = vshrl.u32 %v3168, 7
        %v3170 = vsub.s32 %v3050, %v3169
        %v3171 = vrot.slane %v2092, %v3170
        %v3172 = vsel %vm3055, %v3171, %v3167
        %v3173 = vlaneseq
        %v3174 = vshrl.u32 %v3173, 7
        %v3175 = vsub.s32 %v3057, %v3174
        %v3176 = vrot.slane %v2095, %v3175
        %v3177 = vsel %vm3062, %v3176, %v3172
        %v3178 = vlaneseq
        %v3179 = vshrl.u32 %v3178, 7
        %v3180 = vsub.s32 %v3038, %v3179
        %v3181 = vrot.slane %v2098, %v3180
        %v3182 = vlaneseq
        %v3183 = vshrl.u32 %v3182, 7
        %v3184 = vsub.s32 %v3043, %v3183
        %v3185 = vrot.slane %v2101, %v3184
        %v3186 = vsel %vm3048, %v3185, %v3181
        %v3187 = vlaneseq
        %v3188 = vshrl.u32 %v3187, 7
        %v3189 = vsub.s32 %v3050, %v3188
        %v3190 = vrot.slane %v2104, %v3189
        %v3191 = vsel %vm3055, %v3190, %v3186
        %v3192 = vlaneseq
        %v3193 = vshrl.u32 %v3192, 7
        %v3194 = vsub.s32 %v3057, %v3193
        %v3195 = vrot.slane %v2107, %v3194
        %v3196 = vsel %vm3062, %v3195, %v3191
        %v3197 = vlaneseq
        %v3198 = vshrl.u32 %v3197, 7
        %v3199 = vsub.s32 %v3038, %v3198
        %v3200 = vrot.slane %v2110, %v3199
        %v3201 = vlaneseq
        %v3202 = vshrl.u32 %v3201, 7
        %v3203 = vsub.s32 %v3043, %v3202
        %v3204 = vrot.slane %v2113, %v3203
        %v3205 = vsel %vm3048, %v3204, %v3200
        %v3206 = vlaneseq
        %v3207 = vshrl.u32 %v3206, 7
        %v3208 = vsub.s32 %v3050, %v3207
        %v3209 = vrot.slane %v2116, %v3208
        %v3210 = vsel %vm3055, %v3209, %v3205
        %v3211 = vlaneseq
        %v3212 = vshrl.u32 %v3211, 7
        %v3213 = vsub.s32 %v3057, %v3212
        %v3214 = vrot.slane %v2119, %v3213
        %v3215 = vsel %vm3062, %v3214, %v3210
        %v3216 = vlaneseq
        %v3217 = vshrl.u32 %v3216, 7
        %v3218 = vsub.s32 %v3038, %v3217
        %v3219 = vrot.slane %v2122, %v3218
        %v3220 = vlaneseq
        %v3221 = vshrl.u32 %v3220, 7
        %v3222 = vsub.s32 %v3043, %v3221
        %v3223 = vrot.slane %v2125, %v3222
        %v3224 = vsel %vm3048, %v3223, %v3219
        %v3225 = vlaneseq
        %v3226 = vshrl.u32 %v3225, 7
        %v3227 = vsub.s32 %v3050, %v3226
        %v3228 = vrot.slane %v2128, %v3227
        %v3229 = vsel %vm3055, %v3228, %v3224
        %v3230 = vlaneseq
        %v3231 = vshrl.u32 %v3230, 7
        %v3232 = vsub.s32 %v3057, %v3231
        %v3233 = vrot.slane %v2131, %v3232
        %v3234 = vsel %vm3062, %v3233, %v3229
        %v3235 = vlaneseq
        %v3236 = vshrl.u32 %v3235, 7
        %v3237 = vsub.s32 %v3038, %v3236
        %v3238 = vrot.slane %v2134, %v3237
        %v3239 = vlaneseq
        %v3240 = vshrl.u32 %v3239, 7
        %v3241 = vsub.s32 %v3043, %v3240
        %v3242 = vrot.slane %v2137, %v3241
        %v3243 = vsel %vm3048, %v3242, %v3238
        %v3244 = vlaneseq
        %v3245 = vshrl.u32 %v3244, 7
        %v3246 = vsub.s32 %v3050, %v3245
        %v3247 = vrot.slane %v2140, %v3246
        %v3248 = vsel %vm3055, %v3247, %v3243
        %v3249 = vlaneseq
        %v3250 = vshrl.u32 %v3249, 7
        %v3251 = vsub.s32 %v3057, %v3250
        %v3252 = vrot.slane %v2143, %v3251
        %v3253 = vsel %vm3062, %v3252, %v3248
        %v3254 = vlaneseq
        %v3255 = vshrl.u32 %v3254, 7
        %v3256 = vsub.s32 %v3038, %v3255
        %v3257 = vrot.slane %v2146, %v3256
        %v3258 = vlaneseq
        %v3259 = vshrl.u32 %v3258, 7
        %v3260 = vsub.s32 %v3043, %v3259
        %v3261 = vrot.slane %v2149, %v3260
        %v3262 = vsel %vm3048, %v3261, %v3257
        %v3263 = vlaneseq
        %v3264 = vshrl.u32 %v3263, 7
        %v3265 = vsub.s32 %v3050, %v3264
        %v3266 = vrot.slane %v2152, %v3265
        %v3267 = vsel %vm3055, %v3266, %v3262
        %v3268 = vlaneseq
        %v3269 = vshrl.u32 %v3268, 7
        %v3270 = vsub.s32 %v3057, %v3269
        %v3271 = vrot.slane %v2155, %v3270
        %v3272 = vsel %vm3062, %v3271, %v3267
        %v3273 = vlaneseq
        %v3274 = vshrl.u32 %v3273, 7
        %v3275 = vsub.s32 %v3038, %v3274
        %v3276 = vrot.slane %v2158, %v3275
        %v3277 = vlaneseq
        %v3278 = vshrl.u32 %v3277, 7
        %v3279 = vsub.s32 %v3043, %v3278
        %v3280 = vrot.slane %v2161, %v3279
        %v3281 = vsel %vm3048, %v3280, %v3276
        %v3282 = vlaneseq
        %v3283 = vshrl.u32 %v3282, 7
        %v3284 = vsub.s32 %v3050, %v3283
        %v3285 = vrot.slane %v2164, %v3284
        %v3286 = vsel %vm3055, %v3285, %v3281
        %v3287 = vlaneseq
        %v3288 = vshrl.u32 %v3287, 7
        %v3289 = vsub.s32 %v3057, %v3288
        %v3290 = vrot.slane %v2167, %v3289
        %v3291 = vsel %vm3062, %v3290, %v3286
        %v3292 = vlaneseq
        %v3293 = vshrl.u32 %v3292, 7
        %v3294 = vsub.s32 %v3038, %v3293
        %v3295 = vrot.slane %v2170, %v3294
        %v3296 = vlaneseq
        %v3297 = vshrl.u32 %v3296, 7
        %v3298 = vsub.s32 %v3043, %v3297
        %v3299 = vrot.slane %v2173, %v3298
        %v3300 = vsel %vm3048, %v3299, %v3295
        %v3301 = vlaneseq
        %v3302 = vshrl.u32 %v3301, 7
        %v3303 = vsub.s32 %v3050, %v3302
        %v3304 = vrot.slane %v2176, %v3303
        %v3305 = vsel %vm3055, %v3304, %v3300
        %v3306 = vlaneseq
        %v3307 = vshrl.u32 %v3306, 7
        %v3308 = vsub.s32 %v3057, %v3307
        %v3309 = vrot.slane %v2179, %v3308
        %v3310 = vsel %vm3062, %v3309, %v3305
        %v3311 = vlaneseq
        %v3312 = vshrl.u32 %v3311, 7
        %v3313 = vsub.s32 %v3038, %v3312
        %v3314 = vrot.slane %v2182, %v3313
        %v3315 = vlaneseq
        %v3316 = vshrl.u32 %v3315, 7
        %v3317 = vsub.s32 %v3043, %v3316
        %v3318 = vrot.slane %v2185, %v3317
        %v3319 = vsel %vm3048, %v3318, %v3314
        %v3320 = vlaneseq
        %v3321 = vshrl.u32 %v3320, 7
        %v3322 = vsub.s32 %v3050, %v3321
        %v3323 = vrot.slane %v2188, %v3322
        %v3324 = vsel %vm3055, %v3323, %v3319
        %v3325 = vlaneseq
        %v3326 = vshrl.u32 %v3325, 7
        %v3327 = vsub.s32 %v3057, %v3326
        %v3328 = vrot.slane %v2191, %v3327
        %v3329 = vsel %vm3062, %v3328, %v3324
        %v3330 = vlaneseq
        %v3331 = vshrl.u32 %v3330, 7
        %v3332 = vsub.s32 %v3038, %v3331
        %v3333 = vrot.slane %v2194, %v3332
        %v3334 = vlaneseq
        %v3335 = vshrl.u32 %v3334, 7
        %v3336 = vsub.s32 %v3043, %v3335
        %v3337 = vrot.slane %v2197, %v3336
        %v3338 = vsel %vm3048, %v3337, %v3333
        %v3339 = vlaneseq
        %v3340 = vshrl.u32 %v3339, 7
        %v3341 = vsub.s32 %v3050, %v3340
        %v3342 = vrot.slane %v2200, %v3341
        %v3343 = vsel %vm3055, %v3342, %v3338
        %v3344 = vlaneseq
        %v3345 = vshrl.u32 %v3344, 7
        %v3346 = vsub.s32 %v3057, %v3345
        %v3347 = vrot.slane %v2203, %v3346
        %v3348 = vsel %vm3062, %v3347, %v3343
        %v3349 = vlaneseq
        %v3350 = vshrl.u32 %v3349, 7
        %v3351 = vsub.s32 %v3038, %v3350
        %v3352 = vrot.slane %v2206, %v3351
        %v3353 = vlaneseq
        %v3354 = vshrl.u32 %v3353, 7
        %v3355 = vsub.s32 %v3043, %v3354
        %v3356 = vrot.slane %v2209, %v3355
        %v3357 = vsel %vm3048, %v3356, %v3352
        %v3358 = vlaneseq
        %v3359 = vshrl.u32 %v3358, 7
        %v3360 = vsub.s32 %v3050, %v3359
        %v3361 = vrot.slane %v2212, %v3360
        %v3362 = vsel %vm3055, %v3361, %v3357
        %v3363 = vlaneseq
        %v3364 = vshrl.u32 %v3363, 7
        %v3365 = vsub.s32 %v3057, %v3364
        %v3366 = vrot.slane %v2215, %v3365
        %v3367 = vsel %vm3062, %v3366, %v3362
        %v3368 = vlaneseq
        %v3369 = vshrl.u32 %v3368, 7
        %v3370 = vsub.s32 %v3038, %v3369
        %v3371 = vrot.slane %v2218, %v3370
        %v3372 = vlaneseq
        %v3373 = vshrl.u32 %v3372, 7
        %v3374 = vsub.s32 %v3043, %v3373
        %v3375 = vrot.slane %v2221, %v3374
        %v3376 = vsel %vm3048, %v3375, %v3371
        %v3377 = vlaneseq
        %v3378 = vshrl.u32 %v3377, 7
        %v3379 = vsub.s32 %v3050, %v3378
        %v3380 = vrot.slane %v2224, %v3379
        %v3381 = vsel %vm3055, %v3380, %v3376
        %v3382 = vlaneseq
        %v3383 = vshrl.u32 %v3382, 7
        %v3384 = vsub.s32 %v3057, %v3383
        %v3385 = vrot.slane %v2227, %v3384
        %v3386 = vsel %vm3062, %v3385, %v3381
        %v3387 = vlaneseq
        %v3388 = vshrl.u32 %v3387, 7
        %v3389 = vsub.s32 %v3038, %v3388
        %v3390 = vrot.slane %v2230, %v3389
        %v3391 = vlaneseq
        %v3392 = vshrl.u32 %v3391, 7
        %v3393 = vsub.s32 %v3043, %v3392
        %v3394 = vrot.slane %v2233, %v3393
        %v3395 = vsel %vm3048, %v3394, %v3390
        %v3396 = vlaneseq
        %v3397 = vshrl.u32 %v3396, 7
        %v3398 = vsub.s32 %v3050, %v3397
        %v3399 = vrot.slane %v2236, %v3398
        %v3400 = vsel %vm3055, %v3399, %v3395
        %v3401 = vlaneseq
        %v3402 = vshrl.u32 %v3401, 7
        %v3403 = vsub.s32 %v3057, %v3402
        %v3404 = vrot.slane %v2239, %v3403
        %v3405 = vsel %vm3062, %v3404, %v3400
        %v3406 = vlaneseq
        %v3407 = vshrl.u32 %v3406, 7
        %v3408 = vsub.s32 %v3038, %v3407
        %v3409 = vrot.slane %v2242, %v3408
        %v3410 = vlaneseq
        %v3411 = vshrl.u32 %v3410, 7
        %v3412 = vsub.s32 %v3043, %v3411
        %v3413 = vrot.slane %v2245, %v3412
        %v3414 = vsel %vm3048, %v3413, %v3409
        %v3415 = vlaneseq
        %v3416 = vshrl.u32 %v3415, 7
        %v3417 = vsub.s32 %v3050, %v3416
        %v3418 = vrot.slane %v2248, %v3417
        %v3419 = vsel %vm3055, %v3418, %v3414
        %v3420 = vlaneseq
        %v3421 = vshrl.u32 %v3420, 7
        %v3422 = vsub.s32 %v3057, %v3421
        %v3423 = vrot.slane %v2251, %v3422
        %v3424 = vsel %vm3062, %v3423, %v3419
        %v3425 = vlaneseq
        %v3426 = vshrl.u32 %v3425, 7
        %v3427 = vsub.s32 %v3038, %v3426
        %v3428 = vrot.slane %v2254, %v3427
        %v3429 = vlaneseq
        %v3430 = vshrl.u32 %v3429, 7
        %v3431 = vsub.s32 %v3043, %v3430
        %v3432 = vrot.slane %v2257, %v3431
        %v3433 = vsel %vm3048, %v3432, %v3428
        %v3434 = vlaneseq
        %v3435 = vshrl.u32 %v3434, 7
        %v3436 = vsub.s32 %v3050, %v3435
        %v3437 = vrot.slane %v2260, %v3436
        %v3438 = vsel %vm3055, %v3437, %v3433
        %v3439 = vlaneseq
        %v3440 = vshrl.u32 %v3439, 7
        %v3441 = vsub.s32 %v3057, %v3440
        %v3442 = vrot.slane %v2263, %v3441
        %v3443 = vsel %vm3062, %v3442, %v3438
        %v3444 = vlaneseq
        %v3445 = vshrl.u32 %v3444, 7
        %v3446 = vsub.s32 %v3038, %v3445
        %v3447 = vrot.slane %v2266, %v3446
        %v3448 = vlaneseq
        %v3449 = vshrl.u32 %v3448, 7
        %v3450 = vsub.s32 %v3043, %v3449
        %v3451 = vrot.slane %v2269, %v3450
        %v3452 = vsel %vm3048, %v3451, %v3447
        %v3453 = vlaneseq
        %v3454 = vshrl.u32 %v3453, 7
        %v3455 = vsub.s32 %v3050, %v3454
        %v3456 = vrot.slane %v2272, %v3455
        %v3457 = vsel %vm3055, %v3456, %v3452
        %v3458 = vlaneseq
        %v3459 = vshrl.u32 %v3458, 7
        %v3460 = vsub.s32 %v3057, %v3459
        %v3461 = vrot.slane %v2275, %v3460
        %v3462 = vsel %vm3062, %v3461, %v3457
        %v3463 = vlaneseq
        %v3464 = vshrl.u32 %v3463, 7
        %v3465 = vsub.s32 %v3038, %v3464
        %v3466 = vrot.slane %v2278, %v3465
        %v3467 = vlaneseq
        %v3468 = vshrl.u32 %v3467, 7
        %v3469 = vsub.s32 %v3043, %v3468
        %v3470 = vrot.slane %v2281, %v3469
        %v3471 = vsel %vm3048, %v3470, %v3466
        %v3472 = vlaneseq
        %v3473 = vshrl.u32 %v3472, 7
        %v3474 = vsub.s32 %v3050, %v3473
        %v3475 = vrot.slane %v2284, %v3474
        %v3476 = vsel %vm3055, %v3475, %v3471
        %v3477 = vlaneseq
        %v3478 = vshrl.u32 %v3477, 7
        %v3479 = vsub.s32 %v3057, %v3478
        %v3480 = vrot.slane %v2287, %v3479
        %v3481 = vsel %vm3062, %v3480, %v3476
        %v3482 = vlaneseq
        %v3483 = vshrl.u32 %v3482, 7
        %v3484 = vsub.s32 %v3038, %v3483
        %v3485 = vrot.slane %v2290, %v3484
        %v3486 = vlaneseq
        %v3487 = vshrl.u32 %v3486, 7
        %v3488 = vsub.s32 %v3043, %v3487
        %v3489 = vrot.slane %v2293, %v3488
        %v3490 = vsel %vm3048, %v3489, %v3485
        %v3491 = vlaneseq
        %v3492 = vshrl.u32 %v3491, 7
        %v3493 = vsub.s32 %v3050, %v3492
        %v3494 = vrot.slane %v2296, %v3493
        %v3495 = vsel %vm3055, %v3494, %v3490
        %v3496 = vlaneseq
        %v3497 = vshrl.u32 %v3496, 7
        %v3498 = vsub.s32 %v3057, %v3497
        %v3499 = vrot.slane %v2299, %v3498
        %v3500 = vsel %vm3062, %v3499, %v3495
        %v3501 = vlaneseq
        %v3502 = vshrl.u32 %v3501, 7
        %v3503 = vsub.s32 %v3038, %v3502
        %v3504 = vrot.slane %v2302, %v3503
        %v3505 = vlaneseq
        %v3506 = vshrl.u32 %v3505, 7
        %v3507 = vsub.s32 %v3043, %v3506
        %v3508 = vrot.slane %v2305, %v3507
        %v3509 = vsel %vm3048, %v3508, %v3504
        %v3510 = vlaneseq
        %v3511 = vshrl.u32 %v3510, 7
        %v3512 = vsub.s32 %v3050, %v3511
        %v3513 = vrot.slane %v2308, %v3512
        %v3514 = vsel %vm3055, %v3513, %v3509
        %v3515 = vlaneseq
        %v3516 = vshrl.u32 %v3515, 7
        %v3517 = vsub.s32 %v3057, %v3516
        %v3518 = vrot.slane %v2311, %v3517
        %v3519 = vsel %vm3062, %v3518, %v3514
        %v3520 = vlaneseq
        %v3521 = vshrl.u32 %v3520, 7
        %v3522 = vsub.s32 %v3038, %v3521
        %v3523 = vrot.slane %v2314, %v3522
        %v3524 = vlaneseq
        %v3525 = vshrl.u32 %v3524, 7
        %v3526 = vsub.s32 %v3043, %v3525
        %v3527 = vrot.slane %v2317, %v3526
        %v3528 = vsel %vm3048, %v3527, %v3523
        %v3529 = vlaneseq
        %v3530 = vshrl.u32 %v3529, 7
        %v3531 = vsub.s32 %v3050, %v3530
        %v3532 = vrot.slane %v2320, %v3531
        %v3533 = vsel %vm3055, %v3532, %v3528
        %v3534 = vlaneseq
        %v3535 = vshrl.u32 %v3534, 7
        %v3536 = vsub.s32 %v3057, %v3535
        %v3537 = vrot.slane %v2323, %v3536
        %v3538 = vsel %vm3062, %v3537, %v3533
        %v3539 = vlaneseq
        %v3540 = vshrl.u32 %v3539, 7
        %v3541 = vsub.s32 %v3038, %v3540
        %v3542 = vrot.slane %v2326, %v3541
        %v3543 = vlaneseq
        %v3544 = vshrl.u32 %v3543, 7
        %v3545 = vsub.s32 %v3043, %v3544
        %v3546 = vrot.slane %v2329, %v3545
        %v3547 = vsel %vm3048, %v3546, %v3542
        %v3548 = vlaneseq
        %v3549 = vshrl.u32 %v3548, 7
        %v3550 = vsub.s32 %v3050, %v3549
        %v3551 = vrot.slane %v2332, %v3550
        %v3552 = vsel %vm3055, %v3551, %v3547
        %v3553 = vlaneseq
        %v3554 = vshrl.u32 %v3553, 7
        %v3555 = vsub.s32 %v3057, %v3554
        %v3556 = vrot.slane %v2335, %v3555
        %v3557 = vsel %vm3062, %v3556, %v3552
        %v3558 = vlaneseq
        %v3559 = vshrl.u32 %v3558, 7
        %v3560 = vsub.s32 %v3038, %v3559
        %v3561 = vrot.slane %v2338, %v3560
        %v3562 = vlaneseq
        %v3563 = vshrl.u32 %v3562, 7
        %v3564 = vsub.s32 %v3043, %v3563
        %v3565 = vrot.slane %v2341, %v3564
        %v3566 = vsel %vm3048, %v3565, %v3561
        %v3567 = vlaneseq
        %v3568 = vshrl.u32 %v3567, 7
        %v3569 = vsub.s32 %v3050, %v3568
        %v3570 = vrot.slane %v2344, %v3569
        %v3571 = vsel %vm3055, %v3570, %v3566
        %v3572 = vlaneseq
        %v3573 = vshrl.u32 %v3572, 7
        %v3574 = vsub.s32 %v3057, %v3573
        %v3575 = vrot.slane %v2347, %v3574
        %v3576 = vsel %vm3062, %v3575, %v3571
        %v3577 = vlaneseq
        %v3578 = vshrl.u32 %v3577, 7
        %v3579 = vsub.s32 %v3038, %v3578
        %v3580 = vrot.slane %v2350, %v3579
        %v3581 = vlaneseq
        %v3582 = vshrl.u32 %v3581, 7
        %v3583 = vsub.s32 %v3043, %v3582
        %v3584 = vrot.slane %v2353, %v3583
        %v3585 = vsel %vm3048, %v3584, %v3580
        %v3586 = vlaneseq
        %v3587 = vshrl.u32 %v3586, 7
        %v3588 = vsub.s32 %v3050, %v3587
        %v3589 = vrot.slane %v2356, %v3588
        %v3590 = vsel %vm3055, %v3589, %v3585
        %v3591 = vlaneseq
        %v3592 = vshrl.u32 %v3591, 7
        %v3593 = vsub.s32 %v3057, %v3592
        %v3594 = vrot.slane %v2359, %v3593
        %v3595 = vsel %vm3062, %v3594, %v3590
        %v3596 = vlaneseq
        %v3597 = vshrl.u32 %v3596, 7
        %v3598 = vsub.s32 %v3038, %v3597
        %v3599 = vrot.slane %v2362, %v3598
        %v3600 = vlaneseq
        %v3601 = vshrl.u32 %v3600, 7
        %v3602 = vsub.s32 %v3043, %v3601
        %v3603 = vrot.slane %v2365, %v3602
        %v3604 = vsel %vm3048, %v3603, %v3599
        %v3605 = vlaneseq
        %v3606 = vshrl.u32 %v3605, 7
        %v3607 = vsub.s32 %v3050, %v3606
        %v3608 = vrot.slane %v2368, %v3607
        %v3609 = vsel %vm3055, %v3608, %v3604
        %v3610 = vlaneseq
        %v3611 = vshrl.u32 %v3610, 7
        %v3612 = vsub.s32 %v3057, %v3611
        %v3613 = vrot.slane %v2371, %v3612
        %v3614 = vsel %vm3062, %v3613, %v3609
        %v3615 = vlaneseq
        %v3616 = vshrl.u32 %v3615, 7
        %v3617 = vsub.s32 %v3038, %v3616
        %v3618 = vrot.slane %v2374, %v3617
        %v3619 = vlaneseq
        %v3620 = vshrl.u32 %v3619, 7
        %v3621 = vsub.s32 %v3043, %v3620
        %v3622 = vrot.slane %v2377, %v3621
        %v3623 = vsel %vm3048, %v3622, %v3618
        %v3624 = vlaneseq
        %v3625 = vshrl.u32 %v3624, 7
        %v3626 = vsub.s32 %v3050, %v3625
        %v3627 = vrot.slane %v2380, %v3626
        %v3628 = vsel %vm3055, %v3627, %v3623
        %v3629 = vlaneseq
        %v3630 = vshrl.u32 %v3629, 7
        %v3631 = vsub.s32 %v3057, %v3630
        %v3632 = vrot.slane %v2383, %v3631
        %v3633 = vsel %vm3062, %v3632, %v3628
        %v3634 = vlaneseq
        %v3635 = vshrl.u32 %v3634, 7
        %v3636 = vsub.s32 %v3038, %v3635
        %v3637 = vrot.slane %v2386, %v3636
        %v3638 = vlaneseq
        %v3639 = vshrl.u32 %v3638, 7
        %v3640 = vsub.s32 %v3043, %v3639
        %v3641 = vrot.slane %v2389, %v3640
        %v3642 = vsel %vm3048, %v3641, %v3637
        %v3643 = vlaneseq
        %v3644 = vshrl.u32 %v3643, 7
        %v3645 = vsub.s32 %v3050, %v3644
        %v3646 = vrot.slane %v2392, %v3645
        %v3647 = vsel %vm3055, %v3646, %v3642
        %v3648 = vlaneseq
        %v3649 = vshrl.u32 %v3648, 7
        %v3650 = vsub.s32 %v3057, %v3649
        %v3651 = vrot.slane %v2395, %v3650
        %v3652 = vsel %vm3062, %v3651, %v3647
        %vm3653 = vcmask 1041409
        %v3654 = vsel %vm3653, %v3082, %v3063
        %vm3655 = vcmask 1042434
        %v3656 = vsel %vm3655, %v3101, %v3654
        %vm3657 = vcmask 1043459
        %v3658 = vsel %vm3657, %v3120, %v3656
        %vm3659 = vcmask 1044484
        %v3660 = vsel %vm3659, %v3139, %v3658
        %vm3661 = vcmask 1045509
        %v3662 = vsel %vm3661, %v3158, %v3660
        %vm3663 = vcmask 1046534
        %v3664 = vsel %vm3663, %v3177, %v3662
        %vm3665 = vcmask 1047559
        %v3666 = vsel %vm3665, %v3196, %v3664
        %v3667 = vsel %vm3653, %v3234, %v3215
        %v3668 = vsel %vm3655, %v3253, %v3667
        %v3669 = vsel %vm3657, %v3272, %v3668
        %v3670 = vsel %vm3659, %v3291, %v3669
        %v3671 = vsel %vm3661, %v3310, %v3670
        %v3672 = vsel %vm3663, %v3329, %v3671
        %v3673 = vsel %vm3665, %v3348, %v3672
        %v3674 = vsel %vm3653, %v3386, %v3367
        %v3675 = vsel %vm3655, %v3405, %v3674
        %v3676 = vsel %vm3657, %v3424, %v3675
        %v3677 = vsel %vm3659, %v3443, %v3676
        %v3678 = vsel %vm3661, %v3462, %v3677
        %v3679 = vsel %vm3663, %v3481, %v3678
        %v3680 = vsel %vm3665, %v3500, %v3679
        %v3681 = vsel %vm3653, %v3538, %v3519
        %v3682 = vsel %vm3655, %v3557, %v3681
        %v3683 = vsel %vm3657, %v3576, %v3682
        %v3684 = vsel %vm3659, %v3595, %v3683
        %v3685 = vsel %vm3661, %v3614, %v3684
        %v3686 = vsel %vm3663, %v3633, %v3685
        %v3687 = vsel %vm3665, %v3652, %v3686
        %v3820 = vadd.s32 %v3037, 4294967229
        %v3821 = vlaneseq
        %v3822 = vshrl.u32 %v3821, 7
        %v3823 = vsub.s32 %v3820, %v3822
        %v3824 = vrot.slane %v2780, %v3823
        %v3825 = vadd.s32 %v3037, 4294967221
        %v3826 = vlaneseq
        %v3827 = vshrl.u32 %v3826, 7
        %v3828 = vsub.s32 %v3825, %v3827
        %v3829 = vrot.slane %v2781, %v3828
        %vm3830 = vcmask 679512
        %v3831 = vsel %vm3830, %v3829, %v3824
        %v3832 = vadd.s32 %v3037, 4294967213
        %v3833 = vlaneseq
        %v3834 = vshrl.u32 %v3833, 7
        %v3835 = vsub.s32 %v3832, %v3834
        %v3836 = vrot.slane %v2782, %v3835
        %vm3837 = vcmask 745112
        %v3838 = vsel %vm3837, %v3836, %v3831
        %v3839 = vadd.s32 %v3037, 4294967205
        %v3840 = vlaneseq
        %v3841 = vshrl.u32 %v3840, 7
        %v3842 = vsub.s32 %v3839, %v3841
        %v3843 = vrot.slane %v2783, %v3842
        %vm3844 = vcmask 810712
        %v3845 = vsel %vm3844, %v3843, %v3838
        %v3846 = vlaneseq
        %v3847 = vshrl.u32 %v3846, 7
        %v3848 = vsub.s32 %v3820, %v3847
        %v3849 = vrot.slane %v2784, %v3848
        %v3850 = vlaneseq
        %v3851 = vshrl.u32 %v3850, 7
        %v3852 = vsub.s32 %v3825, %v3851
        %v3853 = vrot.slane %v2785, %v3852
        %v3854 = vsel %vm3830, %v3853, %v3849
        %v3855 = vlaneseq
        %v3856 = vshrl.u32 %v3855, 7
        %v3857 = vsub.s32 %v3832, %v3856
        %v3858 = vrot.slane %v2786, %v3857
        %v3859 = vsel %vm3837, %v3858, %v3854
        %v3860 = vlaneseq
        %v3861 = vshrl.u32 %v3860, 7
        %v3862 = vsub.s32 %v3839, %v3861
        %v3863 = vrot.slane %v2787, %v3862
        %v3864 = vsel %vm3844, %v3863, %v3859
        %v3865 = vlaneseq
        %v3866 = vshrl.u32 %v3865, 7
        %v3867 = vsub.s32 %v3820, %v3866
        %v3868 = vrot.slane %v2788, %v3867
        %v3869 = vlaneseq
        %v3870 = vshrl.u32 %v3869, 7
        %v3871 = vsub.s32 %v3825, %v3870
        %v3872 = vrot.slane %v2789, %v3871
        %v3873 = vsel %vm3830, %v3872, %v3868
        %v3874 = vlaneseq
        %v3875 = vshrl.u32 %v3874, 7
        %v3876 = vsub.s32 %v3832, %v3875
        %v3877 = vrot.slane %v2790, %v3876
        %v3878 = vsel %vm3837, %v3877, %v3873
        %v3879 = vlaneseq
        %v3880 = vshrl.u32 %v3879, 7
        %v3881 = vsub.s32 %v3839, %v3880
        %v3882 = vrot.slane %v2791, %v3881
        %v3883 = vsel %vm3844, %v3882, %v3878
        %v3884 = vlaneseq
        %v3885 = vshrl.u32 %v3884, 7
        %v3886 = vsub.s32 %v3820, %v3885
        %v3887 = vrot.slane %v2792, %v3886
        %v3888 = vlaneseq
        %v3889 = vshrl.u32 %v3888, 7
        %v3890 = vsub.s32 %v3825, %v3889
        %v3891 = vrot.slane %v2793, %v3890
        %v3892 = vsel %vm3830, %v3891, %v3887
        %v3893 = vlaneseq
        %v3894 = vshrl.u32 %v3893, 7
        %v3895 = vsub.s32 %v3832, %v3894
        %v3896 = vrot.slane %v2794, %v3895
        %v3897 = vsel %vm3837, %v3896, %v3892
        %v3898 = vlaneseq
        %v3899 = vshrl.u32 %v3898, 7
        %v3900 = vsub.s32 %v3839, %v3899
        %v3901 = vrot.slane %v2795, %v3900
        %v3902 = vsel %vm3844, %v3901, %v3897
        %v3903 = vlaneseq
        %v3904 = vshrl.u32 %v3903, 7
        %v3905 = vsub.s32 %v3820, %v3904
        %v3906 = vrot.slane %v2796, %v3905
        %v3907 = vlaneseq
        %v3908 = vshrl.u32 %v3907, 7
        %v3909 = vsub.s32 %v3825, %v3908
        %v3910 = vrot.slane %v2797, %v3909
        %v3911 = vsel %vm3830, %v3910, %v3906
        %v3912 = vlaneseq
        %v3913 = vshrl.u32 %v3912, 7
        %v3914 = vsub.s32 %v3832, %v3913
        %v3915 = vrot.slane %v2798, %v3914
        %v3916 = vsel %vm3837, %v3915, %v3911
        %v3917 = vlaneseq
        %v3918 = vshrl.u32 %v3917, 7
        %v3919 = vsub.s32 %v3839, %v3918
        %v3920 = vrot.slane %v2799, %v3919
        %v3921 = vsel %vm3844, %v3920, %v3916
        %v3922 = vlaneseq
        %v3923 = vshrl.u32 %v3922, 7
        %v3924 = vsub.s32 %v3820, %v3923
        %v3925 = vrot.slane %v2800, %v3924
        %v3926 = vlaneseq
        %v3927 = vshrl.u32 %v3926, 7
        %v3928 = vsub.s32 %v3825, %v3927
        %v3929 = vrot.slane %v2801, %v3928
        %v3930 = vsel %vm3830, %v3929, %v3925
        %v3931 = vlaneseq
        %v3932 = vshrl.u32 %v3931, 7
        %v3933 = vsub.s32 %v3832, %v3932
        %v3934 = vrot.slane %v2802, %v3933
        %v3935 = vsel %vm3837, %v3934, %v3930
        %v3936 = vlaneseq
        %v3937 = vshrl.u32 %v3936, 7
        %v3938 = vsub.s32 %v3839, %v3937
        %v3939 = vrot.slane %v2803, %v3938
        %v3940 = vsel %vm3844, %v3939, %v3935
        %v3941 = vlaneseq
        %v3942 = vshrl.u32 %v3941, 7
        %v3943 = vsub.s32 %v3820, %v3942
        %v3944 = vrot.slane %v2804, %v3943
        %v3945 = vlaneseq
        %v3946 = vshrl.u32 %v3945, 7
        %v3947 = vsub.s32 %v3825, %v3946
        %v3948 = vrot.slane %v2805, %v3947
        %v3949 = vsel %vm3830, %v3948, %v3944
        %v3950 = vlaneseq
        %v3951 = vshrl.u32 %v3950, 7
        %v3952 = vsub.s32 %v3832, %v3951
        %v3953 = vrot.slane %v2806, %v3952
        %v3954 = vsel %vm3837, %v3953, %v3949
        %v3955 = vlaneseq
        %v3956 = vshrl.u32 %v3955, 7
        %v3957 = vsub.s32 %v3839, %v3956
        %v3958 = vrot.slane %v2807, %v3957
        %v3959 = vsel %vm3844, %v3958, %v3954
        %v3960 = vlaneseq
        %v3961 = vshrl.u32 %v3960, 7
        %v3962 = vsub.s32 %v3820, %v3961
        %v3963 = vrot.slane %v2808, %v3962
        %v3964 = vlaneseq
        %v3965 = vshrl.u32 %v3964, 7
        %v3966 = vsub.s32 %v3825, %v3965
        %v3967 = vrot.slane %v2809, %v3966
        %v3968 = vsel %vm3830, %v3967, %v3963
        %v3969 = vlaneseq
        %v3970 = vshrl.u32 %v3969, 7
        %v3971 = vsub.s32 %v3832, %v3970
        %v3972 = vrot.slane %v2810, %v3971
        %v3973 = vsel %vm3837, %v3972, %v3968
        %v3974 = vlaneseq
        %v3975 = vshrl.u32 %v3974, 7
        %v3976 = vsub.s32 %v3839, %v3975
        %v3977 = vrot.slane %v2811, %v3976
        %v3978 = vsel %vm3844, %v3977, %v3973
        %v3979 = vlaneseq
        %v3980 = vshrl.u32 %v3979, 7
        %v3981 = vsub.s32 %v3820, %v3980
        %v3982 = vrot.slane %v2812, %v3981
        %v3983 = vlaneseq
        %v3984 = vshrl.u32 %v3983, 7
        %v3985 = vsub.s32 %v3825, %v3984
        %v3986 = vrot.slane %v2813, %v3985
        %v3987 = vsel %vm3830, %v3986, %v3982
        %v3988 = vlaneseq
        %v3989 = vshrl.u32 %v3988, 7
        %v3990 = vsub.s32 %v3832, %v3989
        %v3991 = vrot.slane %v2814, %v3990
        %v3992 = vsel %vm3837, %v3991, %v3987
        %v3993 = vlaneseq
        %v3994 = vshrl.u32 %v3993, 7
        %v3995 = vsub.s32 %v3839, %v3994
        %v3996 = vrot.slane %v2815, %v3995
        %v3997 = vsel %vm3844, %v3996, %v3992
        %v3998 = vlaneseq
        %v3999 = vshrl.u32 %v3998, 7
        %v4000 = vsub.s32 %v3820, %v3999
        %v4001 = vrot.slane %v2816, %v4000
        %v4002 = vlaneseq
        %v4003 = vshrl.u32 %v4002, 7
        %v4004 = vsub.s32 %v3825, %v4003
        %v4005 = vrot.slane %v2817, %v4004
        %v4006 = vsel %vm3830, %v4005, %v4001
        %v4007 = vlaneseq
        %v4008 = vshrl.u32 %v4007, 7
        %v4009 = vsub.s32 %v3832, %v4008
        %v4010 = vrot.slane %v2818, %v4009
        %v4011 = vsel %vm3837, %v4010, %v4006
        %v4012 = vlaneseq
        %v4013 = vshrl.u32 %v4012, 7
        %v4014 = vsub.s32 %v3839, %v4013
        %v4015 = vrot.slane %v2819, %v4014
        %v4016 = vsel %vm3844, %v4015, %v4011
        %v4017 = vlaneseq
        %v4018 = vshrl.u32 %v4017, 7
        %v4019 = vsub.s32 %v3820, %v4018
        %v4020 = vrot.slane %v2820, %v4019
        %v4021 = vlaneseq
        %v4022 = vshrl.u32 %v4021, 7
        %v4023 = vsub.s32 %v3825, %v4022
        %v4024 = vrot.slane %v2821, %v4023
        %v4025 = vsel %vm3830, %v4024, %v4020
        %v4026 = vlaneseq
        %v4027 = vshrl.u32 %v4026, 7
        %v4028 = vsub.s32 %v3832, %v4027
        %v4029 = vrot.slane %v2822, %v4028
        %v4030 = vsel %vm3837, %v4029, %v4025
        %v4031 = vlaneseq
        %v4032 = vshrl.u32 %v4031, 7
        %v4033 = vsub.s32 %v3839, %v4032
        %v4034 = vrot.slane %v2823, %v4033
        %v4035 = vsel %vm3844, %v4034, %v4030
        %v4036 = vlaneseq
        %v4037 = vshrl.u32 %v4036, 7
        %v4038 = vsub.s32 %v3820, %v4037
        %v4039 = vrot.slane %v2824, %v4038
        %v4040 = vlaneseq
        %v4041 = vshrl.u32 %v4040, 7
        %v4042 = vsub.s32 %v3825, %v4041
        %v4043 = vrot.slane %v2825, %v4042
        %v4044 = vsel %vm3830, %v4043, %v4039
        %v4045 = vlaneseq
        %v4046 = vshrl.u32 %v4045, 7
        %v4047 = vsub.s32 %v3832, %v4046
        %v4048 = vrot.slane %v2826, %v4047
        %v4049 = vsel %vm3837, %v4048, %v4044
        %v4050 = vlaneseq
        %v4051 = vshrl.u32 %v4050, 7
        %v4052 = vsub.s32 %v3839, %v4051
        %v4053 = vrot.slane %v2827, %v4052
        %v4054 = vsel %vm3844, %v4053, %v4049
        %v4055 = vlaneseq
        %v4056 = vshrl.u32 %v4055, 7
        %v4057 = vsub.s32 %v3820, %v4056
        %v4058 = vrot.slane %v2828, %v4057
        %v4059 = vlaneseq
        %v4060 = vshrl.u32 %v4059, 7
        %v4061 = vsub.s32 %v3825, %v4060
        %v4062 = vrot.slane %v2829, %v4061
        %v4063 = vsel %vm3830, %v4062, %v4058
        %v4064 = vlaneseq
        %v4065 = vshrl.u32 %v4064, 7
        %v4066 = vsub.s32 %v3832, %v4065
        %v4067 = vrot.slane %v2830, %v4066
        %v4068 = vsel %vm3837, %v4067, %v4063
        %v4069 = vlaneseq
        %v4070 = vshrl.u32 %v4069, 7
        %v4071 = vsub.s32 %v3839, %v4070
        %v4072 = vrot.slane %v2831, %v4071
        %v4073 = vsel %vm3844, %v4072, %v4068
        %v4074 = vlaneseq
        %v4075 = vshrl.u32 %v4074, 7
        %v4076 = vsub.s32 %v3820, %v4075
        %v4077 = vrot.slane %v2832, %v4076
        %v4078 = vlaneseq
        %v4079 = vshrl.u32 %v4078, 7
        %v4080 = vsub.s32 %v3825, %v4079
        %v4081 = vrot.slane %v2833, %v4080
        %v4082 = vsel %vm3830, %v4081, %v4077
        %v4083 = vlaneseq
        %v4084 = vshrl.u32 %v4083, 7
        %v4085 = vsub.s32 %v3832, %v4084
        %v4086 = vrot.slane %v2834, %v4085
        %v4087 = vsel %vm3837, %v4086, %v4082
        %v4088 = vlaneseq
        %v4089 = vshrl.u32 %v4088, 7
        %v4090 = vsub.s32 %v3839, %v4089
        %v4091 = vrot.slane %v2835, %v4090
        %v4092 = vsel %vm3844, %v4091, %v4087
        %v4093 = vlaneseq
        %v4094 = vshrl.u32 %v4093, 7
        %v4095 = vsub.s32 %v3820, %v4094
        %v4096 = vrot.slane %v2836, %v4095
        %v4097 = vlaneseq
        %v4098 = vshrl.u32 %v4097, 7
        %v4099 = vsub.s32 %v3825, %v4098
        %v4100 = vrot.slane %v2837, %v4099
        %v4101 = vsel %vm3830, %v4100, %v4096
        %v4102 = vlaneseq
        %v4103 = vshrl.u32 %v4102, 7
        %v4104 = vsub.s32 %v3832, %v4103
        %v4105 = vrot.slane %v2838, %v4104
        %v4106 = vsel %vm3837, %v4105, %v4101
        %v4107 = vlaneseq
        %v4108 = vshrl.u32 %v4107, 7
        %v4109 = vsub.s32 %v3839, %v4108
        %v4110 = vrot.slane %v2839, %v4109
        %v4111 = vsel %vm3844, %v4110, %v4106
        %v4112 = vlaneseq
        %v4113 = vshrl.u32 %v4112, 7
        %v4114 = vsub.s32 %v3820, %v4113
        %v4115 = vrot.slane %v2840, %v4114
        %v4116 = vlaneseq
        %v4117 = vshrl.u32 %v4116, 7
        %v4118 = vsub.s32 %v3825, %v4117
        %v4119 = vrot.slane %v2841, %v4118
        %v4120 = vsel %vm3830, %v4119, %v4115
        %v4121 = vlaneseq
        %v4122 = vshrl.u32 %v4121, 7
        %v4123 = vsub.s32 %v3832, %v4122
        %v4124 = vrot.slane %v2842, %v4123
        %v4125 = vsel %vm3837, %v4124, %v4120
        %v4126 = vlaneseq
        %v4127 = vshrl.u32 %v4126, 7
        %v4128 = vsub.s32 %v3839, %v4127
        %v4129 = vrot.slane %v2843, %v4128
        %v4130 = vsel %vm3844, %v4129, %v4125
        %v4131 = vlaneseq
        %v4132 = vshrl.u32 %v4131, 7
        %v4133 = vsub.s32 %v3820, %v4132
        %v4134 = vrot.slane %v2844, %v4133
        %v4135 = vlaneseq
        %v4136 = vshrl.u32 %v4135, 7
        %v4137 = vsub.s32 %v3825, %v4136
        %v4138 = vrot.slane %v2845, %v4137
        %v4139 = vsel %vm3830, %v4138, %v4134
        %v4140 = vlaneseq
        %v4141 = vshrl.u32 %v4140, 7
        %v4142 = vsub.s32 %v3832, %v4141
        %v4143 = vrot.slane %v2846, %v4142
        %v4144 = vsel %vm3837, %v4143, %v4139
        %v4145 = vlaneseq
        %v4146 = vshrl.u32 %v4145, 7
        %v4147 = vsub.s32 %v3839, %v4146
        %v4148 = vrot.slane %v2847, %v4147
        %v4149 = vsel %vm3844, %v4148, %v4144
        %v4150 = vlaneseq
        %v4151 = vshrl.u32 %v4150, 7
        %v4152 = vsub.s32 %v3820, %v4151
        %v4153 = vrot.slane %v2848, %v4152
        %v4154 = vlaneseq
        %v4155 = vshrl.u32 %v4154, 7
        %v4156 = vsub.s32 %v3825, %v4155
        %v4157 = vrot.slane %v2849, %v4156
        %v4158 = vsel %vm3830, %v4157, %v4153
        %v4159 = vlaneseq
        %v4160 = vshrl.u32 %v4159, 7
        %v4161 = vsub.s32 %v3832, %v4160
        %v4162 = vrot.slane %v2850, %v4161
        %v4163 = vsel %vm3837, %v4162, %v4158
        %v4164 = vlaneseq
        %v4165 = vshrl.u32 %v4164, 7
        %v4166 = vsub.s32 %v3839, %v4165
        %v4167 = vrot.slane %v2851, %v4166
        %v4168 = vsel %vm3844, %v4167, %v4163
        %v4169 = vlaneseq
        %v4170 = vshrl.u32 %v4169, 7
        %v4171 = vsub.s32 %v3820, %v4170
        %v4172 = vrot.slane %v2852, %v4171
        %v4173 = vlaneseq
        %v4174 = vshrl.u32 %v4173, 7
        %v4175 = vsub.s32 %v3825, %v4174
        %v4176 = vrot.slane %v2853, %v4175
        %v4177 = vsel %vm3830, %v4176, %v4172
        %v4178 = vlaneseq
        %v4179 = vshrl.u32 %v4178, 7
        %v4180 = vsub.s32 %v3832, %v4179
        %v4181 = vrot.slane %v2854, %v4180
        %v4182 = vsel %vm3837, %v4181, %v4177
        %v4183 = vlaneseq
        %v4184 = vshrl.u32 %v4183, 7
        %v4185 = vsub.s32 %v3839, %v4184
        %v4186 = vrot.slane %v2855, %v4185
        %v4187 = vsel %vm3844, %v4186, %v4182
        %v4188 = vlaneseq
        %v4189 = vshrl.u32 %v4188, 7
        %v4190 = vsub.s32 %v3820, %v4189
        %v4191 = vrot.slane %v2856, %v4190
        %v4192 = vlaneseq
        %v4193 = vshrl.u32 %v4192, 7
        %v4194 = vsub.s32 %v3825, %v4193
        %v4195 = vrot.slane %v2857, %v4194
        %v4196 = vsel %vm3830, %v4195, %v4191
        %v4197 = vlaneseq
        %v4198 = vshrl.u32 %v4197, 7
        %v4199 = vsub.s32 %v3832, %v4198
        %v4200 = vrot.slane %v2858, %v4199
        %v4201 = vsel %vm3837, %v4200, %v4196
        %v4202 = vlaneseq
        %v4203 = vshrl.u32 %v4202, 7
        %v4204 = vsub.s32 %v3839, %v4203
        %v4205 = vrot.slane %v2859, %v4204
        %v4206 = vsel %vm3844, %v4205, %v4201
        %v4207 = vlaneseq
        %v4208 = vshrl.u32 %v4207, 7
        %v4209 = vsub.s32 %v3820, %v4208
        %v4210 = vrot.slane %v2860, %v4209
        %v4211 = vlaneseq
        %v4212 = vshrl.u32 %v4211, 7
        %v4213 = vsub.s32 %v3825, %v4212
        %v4214 = vrot.slane %v2861, %v4213
        %v4215 = vsel %vm3830, %v4214, %v4210
        %v4216 = vlaneseq
        %v4217 = vshrl.u32 %v4216, 7
        %v4218 = vsub.s32 %v3832, %v4217
        %v4219 = vrot.slane %v2862, %v4218
        %v4220 = vsel %vm3837, %v4219, %v4215
        %v4221 = vlaneseq
        %v4222 = vshrl.u32 %v4221, 7
        %v4223 = vsub.s32 %v3839, %v4222
        %v4224 = vrot.slane %v2863, %v4223
        %v4225 = vsel %vm3844, %v4224, %v4220
        %v4226 = vlaneseq
        %v4227 = vshrl.u32 %v4226, 7
        %v4228 = vsub.s32 %v3820, %v4227
        %v4229 = vrot.slane %v2864, %v4228
        %v4230 = vlaneseq
        %v4231 = vshrl.u32 %v4230, 7
        %v4232 = vsub.s32 %v3825, %v4231
        %v4233 = vrot.slane %v2865, %v4232
        %v4234 = vsel %vm3830, %v4233, %v4229
        %v4235 = vlaneseq
        %v4236 = vshrl.u32 %v4235, 7
        %v4237 = vsub.s32 %v3832, %v4236
        %v4238 = vrot.slane %v2866, %v4237
        %v4239 = vsel %vm3837, %v4238, %v4234
        %v4240 = vlaneseq
        %v4241 = vshrl.u32 %v4240, 7
        %v4242 = vsub.s32 %v3839, %v4241
        %v4243 = vrot.slane %v2867, %v4242
        %v4244 = vsel %vm3844, %v4243, %v4239
        %v4245 = vlaneseq
        %v4246 = vshrl.u32 %v4245, 7
        %v4247 = vsub.s32 %v3820, %v4246
        %v4248 = vrot.slane %v2868, %v4247
        %v4249 = vlaneseq
        %v4250 = vshrl.u32 %v4249, 7
        %v4251 = vsub.s32 %v3825, %v4250
        %v4252 = vrot.slane %v2869, %v4251
        %v4253 = vsel %vm3830, %v4252, %v4248
        %v4254 = vlaneseq
        %v4255 = vshrl.u32 %v4254, 7
        %v4256 = vsub.s32 %v3832, %v4255
        %v4257 = vrot.slane %v2870, %v4256
        %v4258 = vsel %vm3837, %v4257, %v4253
        %v4259 = vlaneseq
        %v4260 = vshrl.u32 %v4259, 7
        %v4261 = vsub.s32 %v3839, %v4260
        %v4262 = vrot.slane %v2871, %v4261
        %v4263 = vsel %vm3844, %v4262, %v4258
        %v4264 = vlaneseq
        %v4265 = vshrl.u32 %v4264, 7
        %v4266 = vsub.s32 %v3820, %v4265
        %v4267 = vrot.slane %v2872, %v4266
        %v4268 = vlaneseq
        %v4269 = vshrl.u32 %v4268, 7
        %v4270 = vsub.s32 %v3825, %v4269
        %v4271 = vrot.slane %v2873, %v4270
        %v4272 = vsel %vm3830, %v4271, %v4267
        %v4273 = vlaneseq
        %v4274 = vshrl.u32 %v4273, 7
        %v4275 = vsub.s32 %v3832, %v4274
        %v4276 = vrot.slane %v2874, %v4275
        %v4277 = vsel %vm3837, %v4276, %v4272
        %v4278 = vlaneseq
        %v4279 = vshrl.u32 %v4278, 7
        %v4280 = vsub.s32 %v3839, %v4279
        %v4281 = vrot.slane %v2875, %v4280
        %v4282 = vsel %vm3844, %v4281, %v4277
        %v4283 = vlaneseq
        %v4284 = vshrl.u32 %v4283, 7
        %v4285 = vsub.s32 %v3820, %v4284
        %v4286 = vrot.slane %v2876, %v4285
        %v4287 = vlaneseq
        %v4288 = vshrl.u32 %v4287, 7
        %v4289 = vsub.s32 %v3825, %v4288
        %v4290 = vrot.slane %v2877, %v4289
        %v4291 = vsel %vm3830, %v4290, %v4286
        %v4292 = vlaneseq
        %v4293 = vshrl.u32 %v4292, 7
        %v4294 = vsub.s32 %v3832, %v4293
        %v4295 = vrot.slane %v2878, %v4294
        %v4296 = vsel %vm3837, %v4295, %v4291
        %v4297 = vlaneseq
        %v4298 = vshrl.u32 %v4297, 7
        %v4299 = vsub.s32 %v3839, %v4298
        %v4300 = vrot.slane %v2879, %v4299
        %v4301 = vsel %vm3844, %v4300, %v4296
        %v4302 = vlaneseq
        %v4303 = vshrl.u32 %v4302, 7
        %v4304 = vsub.s32 %v3820, %v4303
        %v4305 = vrot.slane %v2880, %v4304
        %v4306 = vlaneseq
        %v4307 = vshrl.u32 %v4306, 7
        %v4308 = vsub.s32 %v3825, %v4307
        %v4309 = vrot.slane %v2881, %v4308
        %v4310 = vsel %vm3830, %v4309, %v4305
        %v4311 = vlaneseq
        %v4312 = vshrl.u32 %v4311, 7
        %v4313 = vsub.s32 %v3832, %v4312
        %v4314 = vrot.slane %v2882, %v4313
        %v4315 = vsel %vm3837, %v4314, %v4310
        %v4316 = vlaneseq
        %v4317 = vshrl.u32 %v4316, 7
        %v4318 = vsub.s32 %v3839, %v4317
        %v4319 = vrot.slane %v2883, %v4318
        %v4320 = vsel %vm3844, %v4319, %v4315
        %v4321 = vlaneseq
        %v4322 = vshrl.u32 %v4321, 7
        %v4323 = vsub.s32 %v3820, %v4322
        %v4324 = vrot.slane %v2884, %v4323
        %v4325 = vlaneseq
        %v4326 = vshrl.u32 %v4325, 7
        %v4327 = vsub.s32 %v3825, %v4326
        %v4328 = vrot.slane %v2885, %v4327
        %v4329 = vsel %vm3830, %v4328, %v4324
        %v4330 = vlaneseq
        %v4331 = vshrl.u32 %v4330, 7
        %v4332 = vsub.s32 %v3832, %v4331
        %v4333 = vrot.slane %v2886, %v4332
        %v4334 = vsel %vm3837, %v4333, %v4329
        %v4335 = vlaneseq
        %v4336 = vshrl.u32 %v4335, 7
        %v4337 = vsub.s32 %v3839, %v4336
        %v4338 = vrot.slane %v2887, %v4337
        %v4339 = vsel %vm3844, %v4338, %v4334
        %v4340 = vlaneseq
        %v4341 = vshrl.u32 %v4340, 7
        %v4342 = vsub.s32 %v3820, %v4341
        %v4343 = vrot.slane %v2888, %v4342
        %v4344 = vlaneseq
        %v4345 = vshrl.u32 %v4344, 7
        %v4346 = vsub.s32 %v3825, %v4345
        %v4347 = vrot.slane %v2889, %v4346
        %v4348 = vsel %vm3830, %v4347, %v4343
        %v4349 = vlaneseq
        %v4350 = vshrl.u32 %v4349, 7
        %v4351 = vsub.s32 %v3832, %v4350
        %v4352 = vrot.slane %v2890, %v4351
        %v4353 = vsel %vm3837, %v4352, %v4348
        %v4354 = vlaneseq
        %v4355 = vshrl.u32 %v4354, 7
        %v4356 = vsub.s32 %v3839, %v4355
        %v4357 = vrot.slane %v2891, %v4356
        %v4358 = vsel %vm3844, %v4357, %v4353
        %v4359 = vlaneseq
        %v4360 = vshrl.u32 %v4359, 7
        %v4361 = vsub.s32 %v3820, %v4360
        %v4362 = vrot.slane %v2892, %v4361
        %v4363 = vlaneseq
        %v4364 = vshrl.u32 %v4363, 7
        %v4365 = vsub.s32 %v3825, %v4364
        %v4366 = vrot.slane %v2893, %v4365
        %v4367 = vsel %vm3830, %v4366, %v4362
        %v4368 = vlaneseq
        %v4369 = vshrl.u32 %v4368, 7
        %v4370 = vsub.s32 %v3832, %v4369
        %v4371 = vrot.slane %v2894, %v4370
        %v4372 = vsel %vm3837, %v4371, %v4367
        %v4373 = vlaneseq
        %v4374 = vshrl.u32 %v4373, 7
        %v4375 = vsub.s32 %v3839, %v4374
        %v4376 = vrot.slane %v2895, %v4375
        %v4377 = vsel %vm3844, %v4376, %v4372
        %v4378 = vlaneseq
        %v4379 = vshrl.u32 %v4378, 7
        %v4380 = vsub.s32 %v3820, %v4379
        %v4381 = vrot.slane %v2896, %v4380
        %v4382 = vlaneseq
        %v4383 = vshrl.u32 %v4382, 7
        %v4384 = vsub.s32 %v3825, %v4383
        %v4385 = vrot.slane %v2897, %v4384
        %v4386 = vsel %vm3830, %v4385, %v4381
        %v4387 = vlaneseq
        %v4388 = vshrl.u32 %v4387, 7
        %v4389 = vsub.s32 %v3832, %v4388
        %v4390 = vrot.slane %v2898, %v4389
        %v4391 = vsel %vm3837, %v4390, %v4386
        %v4392 = vlaneseq
        %v4393 = vshrl.u32 %v4392, 7
        %v4394 = vsub.s32 %v3839, %v4393
        %v4395 = vrot.slane %v2899, %v4394
        %v4396 = vsel %vm3844, %v4395, %v4391
        %v4397 = vlaneseq
        %v4398 = vshrl.u32 %v4397, 7
        %v4399 = vsub.s32 %v3820, %v4398
        %v4400 = vrot.slane %v2900, %v4399
        %v4401 = vlaneseq
        %v4402 = vshrl.u32 %v4401, 7
        %v4403 = vsub.s32 %v3825, %v4402
        %v4404 = vrot.slane %v2901, %v4403
        %v4405 = vsel %vm3830, %v4404, %v4400
        %v4406 = vlaneseq
        %v4407 = vshrl.u32 %v4406, 7
        %v4408 = vsub.s32 %v3832, %v4407
        %v4409 = vrot.slane %v2902, %v4408
        %v4410 = vsel %vm3837, %v4409, %v4405
        %v4411 = vlaneseq
        %v4412 = vshrl.u32 %v4411, 7
        %v4413 = vsub.s32 %v3839, %v4412
        %v4414 = vrot.slane %v2903, %v4413
        %v4415 = vsel %vm3844, %v4414, %v4410
        %v4416 = vlaneseq
        %v4417 = vshrl.u32 %v4416, 7
        %v4418 = vsub.s32 %v3820, %v4417
        %v4419 = vrot.slane %v2904, %v4418
        %v4420 = vlaneseq
        %v4421 = vshrl.u32 %v4420, 7
        %v4422 = vsub.s32 %v3825, %v4421
        %v4423 = vrot.slane %v2905, %v4422
        %v4424 = vsel %vm3830, %v4423, %v4419
        %v4425 = vlaneseq
        %v4426 = vshrl.u32 %v4425, 7
        %v4427 = vsub.s32 %v3832, %v4426
        %v4428 = vrot.slane %v2906, %v4427
        %v4429 = vsel %vm3837, %v4428, %v4424
        %v4430 = vlaneseq
        %v4431 = vshrl.u32 %v4430, 7
        %v4432 = vsub.s32 %v3839, %v4431
        %v4433 = vrot.slane %v2907, %v4432
        %v4434 = vsel %vm3844, %v4433, %v4429
        %v4435 = vsel %vm3653, %v3864, %v3845
        %v4436 = vsel %vm3655, %v3883, %v4435
        %v4437 = vsel %vm3657, %v3902, %v4436
        %v4438 = vsel %vm3659, %v3921, %v4437
        %v4439 = vsel %vm3661, %v3940, %v4438
        %v4440 = vsel %vm3663, %v3959, %v4439
        %v4441 = vsel %vm3665, %v3978, %v4440
        %v4442 = vsel %vm3653, %v4016, %v3997
        %v4443 = vsel %vm3655, %v4035, %v4442
        %v4444 = vsel %vm3657, %v4054, %v4443
        %v4445 = vsel %vm3659, %v4073, %v4444
        %v4446 = vsel %vm3661, %v4092, %v4445
        %v4447 = vsel %vm3663, %v4111, %v4446
        %v4448 = vsel %vm3665, %v4130, %v4447
        %v4449 = vsel %vm3653, %v4168, %v4149
        %v4450 = vsel %vm3655, %v4187, %v4449
        %v4451 = vsel %vm3657, %v4206, %v4450
        %v4452 = vsel %vm3659, %v4225, %v4451
        %v4453 = vsel %vm3661, %v4244, %v4452
        %v4454 = vsel %vm3663, %v4263, %v4453
        %v4455 = vsel %vm3665, %v4282, %v4454
        %v4456 = vsel %vm3653, %v4320, %v4301
        %v4457 = vsel %vm3655, %v4339, %v4456
        %v4458 = vsel %vm3657, %v4358, %v4457
        %v4459 = vsel %vm3659, %v4377, %v4458
        %v4460 = vsel %vm3661, %v4396, %v4459
        %v4461 = vsel %vm3663, %v4415, %v4460
        %v4462 = vsel %vm3665, %v4434, %v4461
        %vm4467 = vcmask 23552
        %v4468 = vsel %vm4467, 0.0, %v3666
        %v4469 = vsel %vm4467, 0.0, %v3673
        %v4470 = vsel %vm4467, 0.0, %v3680
        %v4471 = vsel %vm4467, 0.0, %v3687
        %vm4472 = vcmask 285696
        %v4473 = vsel %vm4472, %v4468, 0.0
        %v4474 = vsel %vm4472, %v4469, 0.0
        %v4475 = vsel %vm4472, %v4470, 0.0
        %v4476 = vsel %vm4472, %v4471, 0.0
        %v4477 = vsel %vm344, %v4473, 0.0
        %v4478 = vsel %vm344, %v4474, 0.0
        %v4479 = vsel %vm344, %v4475, 0.0
        %v4480 = vsel %vm344, %v4476, 0.0
        %vm4481 = vcmask 547840
        %v4482 = vsel %vm4481, %v4477, %v4441
        %v4483 = vsel %vm4481, %v4478, %v4448
        %v4484 = vsel %vm4481, %v4479, %v4455
        %v4485 = vsel %vm4481, %v4480, %v4462
        %vm4486 = vcmask 809984
        %v4487 = vsel %vm4486, %v4482, 0.0
        %v4488 = vsel %vm4486, %v4483, 0.0
        %v4489 = vsel %vm4486, %v4484, 0.0
        %v4490 = vsel %vm4486, %v4485, 0.0
        %vm4495 = vcmask 1042432
        %v4496 = vrot.slane %v4487, 5
        %v4497 = vrot.slane %v4488, 5
        %v4498 = vsel %vm4495, %v4496, %v4497
        %v4499 = vrot.slane %v4489, 5
        %v4500 = vsel %vm4495, %v4497, %v4499
        %v4501 = vrot.slane %v4490, 5
        %v4502 = vsel %vm4495, %v4499, %v4501
        %v4508 = vsel %vm4495, 0.0, %v4496
        %v4509 = vsel %vm4495, %v4501, 0.0
        %4510 = vst [vmem:[#allocation2] sm:$0xff] %v4508
        %4511 = vst [vmem:[#allocation2 + $0x8] sm:$0xff] %v4498
        %4512 = vst [vmem:[#allocation2 + $0x10] sm:$0xff] %v4500
        %4513 = vst [vmem:[#allocation2 + $0x18] sm:$0xff] %v4502
        %4514 = vst [vmem:[#allocation2 + $0x20] sm:$0x3f] %v4509
        %v4515 = vld [vmem:[%s3] sm:$0x1]
        %v4516 = vld [vmem:[#allocation2] sm:$0xff]
        %v4517 = vld [vmem:[#allocation2 + $0x8] sm:$0xff]
        %v4518 = vld [vmem:[#allocation2 + $0x10] sm:$0xff]
        %v4519 = vld [vmem:[#allocation2 + $0x18] sm:$0xff]
        %v4520 = vlaneseq
        %v4521 = vshrl.u32 %v4520, 7
        %v4522 = vsub.s32 0, %v4521
        %v4523 = vrot.slane %v4515, %v4522
        %v4524 = vmul.f32 %v4523, %v4516
        %v4525 = vmul.f32 %v4523, %v4517
        %v4526 = vmul.f32 %v4523, %v4518
        %v4527 = vmul.f32 %v4523, %v4519
        %v4528 = vadd.f32 %v4524, 0.0
        %v4529 = vadd.f32 %v4525, 0.0
        %v4530 = vadd.f32 %v4526, 0.0
        %v4531 = vadd.f32 %v4527, 0.0
        %v4532 = vld [vmem:[%s3 + $0x7] sm:$0x1]
        %v4533 = vld [vmem:[#allocation2 + $0x1] sm:$0xff]
        %v4534 = vld [vmem:[#allocation2 + $0x9] sm:$0xff]
        %v4535 = vld [vmem:[#allocation2 + $0x11] sm:$0xff]
        %v4536 = vld [vmem:[#allocation2 + $0x19] sm:$0xff]
        %v4537 = vlaneseq
        %v4538 = vshrl.u32 %v4537, 7
        %v4539 = vsub.s32 0, %v4538
        %v4540 = vrot.slane %v4532, %v4539
        %v4541 = vmul.f32 %v4540, %v4533
        %v4542 = vmul.f32 %v4540, %v4534
        %v4543 = vmul.f32 %v4540, %v4535
        %v4544 = vmul.f32 %v4540, %v4536
        %v4545 = vadd.f32 %v4528, %v4541
        %v4546 = vadd.f32 %v4529, %v4542
        %v4547 = vadd.f32 %v4530, %v4543
        %v4548 = vadd.f32 %v4531, %v4544
        %v4549 = vld [vmem:[%s3 + $0xe] sm:$0x1]
        %v4550 = vld [vmem:[#allocation2 + $0x2] sm:$0xff]
        %v4551 = vld [vmem:[#allocation2 + $0xa] sm:$0xff]
        %v4552 = vld [vmem:[#allocation2 + $0x12] sm:$0xff]
        %v4553 = vld [vmem:[#allocation2 + $0x1a] sm:$0xff]
        %v4554 = vlaneseq
        %v4555 = vshrl.u32 %v4554, 7
        %v4556 = vsub.s32 0, %v4555
        %v4557 = vrot.slane %v4549, %v4556
        %v4558 = vmul.f32 %v4557, %v4550
        %v4559 = vmul.f32 %v4557, %v4551
        %v4560 = vmul.f32 %v4557, %v4552
        %v4561 = vmul.f32 %v4557, %v4553
        %v4562 = vadd.f32 %v4545, %v4558
        %v4563 = vadd.f32 %v4546, %v4559
        %v4564 = vadd.f32 %v4547, %v4560
        %v4565 = vadd.f32 %v4548, %v4561
        %v4566 = vld [vmem:[%s3 + $0x15] sm:$0x1]
        %v4567 = vld [vmem:[#allocation2 + $0x3] sm:$0xff]
        %v4568 = vld [vmem:[#allocation2 + $0xb] sm:$0xff]
        %v4569 = vld [vmem:[#allocation2 + $0x13] sm:$0xff]
        %v4570 = vld [vmem:[#allocation2 + $0x1b] sm:$0xff]
        %v4571 = vlaneseq
        %v4572 = vshrl.u32 %v4571, 7
        %v4573 = vsub.s32 0, %v4572
        %v4574 = vrot.slane %v4566, %v4573
        %v4575 = vmul.f32 %v4574, %v4567
        %v4576 = vmul.f32 %v4574, %v4568
        %v4577 = vmul.f32 %v4574, %v4569
        %v4578 = vmul.f32 %v4574, %v4570
        %v4579 = vadd.f32 %v4562, %v4575
        %v4580 = vadd.f32 %v4563, %v4576
        %v4581 = vadd.f32 %v4564, %v4577
        %v4582 = vadd.f32 %v4565, %v4578
        %v4583 = vld [vmem:[%s3 + $0x1c] sm:$0x1]
        %v4584 = vld [vmem:[#allocation2 + $0x4] sm:$0xff]
        %v4585 = vld [vmem:[#allocation2 + $0xc] sm:$0xff]
        %v4586 = vld [vmem:[#allocation2 + $0x14] sm:$0xff]
        %v4587 = vld [vmem:[#allocation2 + $0x1c] sm:$0xff]
        %v4588 = vlaneseq
        %v4589 = vshrl.u32 %v4588, 7
        %v4590 = vsub.s32 0, %v4589
        %v4591 = vrot.slane %v4583, %v4590
        %v4592 = vmul.f32 %v4591, %v4584
        %v4593 = vmul.f32 %v4591, %v4585
        %v4594 = vmul.f32 %v4591, %v4586
        %v4595 = vmul.f32 %v4591, %v4587
        %v4596 = vadd.f32 %v4579, %v4592
        %v4597 = vadd.f32 %v4580, %v4593
        %v4598 = vadd.f32 %v4581, %v4594
        %v4599 = vadd.f32 %v4582, %v4595
        %v4600 = vld [vmem:[%s3 + $0x23] sm:$0x1]
        %v4601 = vld [vmem:[#allocation2 + $0x5] sm:$0xff]
        %v4602 = vld [vmem:[#allocation2 + $0xd] sm:$0xff]
        %v4603 = vld [vmem:[#allocation2 + $0x15] sm:$0xff]
        %v4604 = vld [vmem:[#allocation2 + $0x1d] sm:$0xff]
        %v4605 = vlaneseq
        %v4606 = vshrl.u32 %v4605, 7
        %v4607 = vsub.s32 0, %v4606
        %v4608 = vrot.slane %v4600, %v4607
        %v4609 = vmul.f32 %v4608, %v4601
        %v4610 = vmul.f32 %v4608, %v4602
        %v4611 = vmul.f32 %v4608, %v4603
        %v4612 = vmul.f32 %v4608, %v4604
        %v4613 = vadd.f32 %v4596, %v4609
        %v4614 = vadd.f32 %v4597, %v4610
        %v4615 = vadd.f32 %v4598, %v4611
        %v4616 = vadd.f32 %v4599, %v4612
        %v4617 = vld [vmem:[%s3 + $0x2a] sm:$0x1]
        %v4618 = vld [vmem:[#allocation2 + $0x6] sm:$0xff]
        %v4619 = vld [vmem:[#allocation2 + $0xe] sm:$0xff]
        %v4620 = vld [vmem:[#allocation2 + $0x16] sm:$0xff]
        %v4621 = vld [vmem:[#allocation2 + $0x1e] sm:$0xff]
        %v4622 = vlaneseq
        %v4623 = vshrl.u32 %v4622, 7
        %v4624 = vsub.s32 0, %v4623
        %v4625 = vrot.slane %v4617, %v4624
        %v4626 = vmul.f32 %v4625, %v4618
        %v4627 = vmul.f32 %v4625, %v4619
        %v4628 = vmul.f32 %v4625, %v4620
        %v4629 = vmul.f32 %v4625, %v4621
        %v4630 = vadd.f32 %v4613, %v4626
        %v4631 = vadd.f32 %v4614, %v4627
        %v4632 = vadd.f32 %v4615, %v4628
        %v4633 = vadd.f32 %v4616, %v4629
        %v4634 = vadd.f32 %v4630, 0.0
        %v4635 = vadd.f32 %v4631, 0.0
        %v4636 = vadd.f32 %v4632, 0.0
        %v4637 = vadd.f32 %v4633, 0.0
        %v4638 = vld [vmem:[%s3 + $0x1] sm:$0x1]
        %v4639 = vlaneseq
        %v4640 = vshrl.u32 %v4639, 7
        %v4641 = vsub.s32 0, %v4640
        %v4642 = vrot.slane %v4638, %v4641
        %v4643 = vmul.f32 %v4642, %v4516
        %v4644 = vmul.f32 %v4642, %v4517
        %v4645 = vmul.f32 %v4642, %v4518
        %v4646 = vmul.f32 %v4642, %v4519
        %v4647 = vadd.f32 %v4643, 0.0
        %v4648 = vadd.f32 %v4644, 0.0
        %v4649 = vadd.f32 %v4645, 0.0
        %v4650 = vadd.f32 %v4646, 0.0
        %v4651 = vld [vmem:[%s3 + $0x8] sm:$0x1]
        %v4652 = vlaneseq
        %v4653 = vshrl.u32 %v4652, 7
        %v4654 = vsub.s32 0, %v4653
        %v4655 = vrot.slane %v4651, %v4654
        %v4656 = vmul.f32 %v4655, %v4533
        %v4657 = vmul.f32 %v4655, %v4534
        %v4658 = vmul.f32 %v4655, %v4535
        %v4659 = vmul.f32 %v4655, %v4536
        %v4660 = vadd.f32 %v4647, %v4656
        %v4661 = vadd.f32 %v4648, %v4657
        %v4662 = vadd.f32 %v4649, %v4658
        %v4663 = vadd.f32 %v4650, %v4659
        %v4664 = vld [vmem:[%s3 + $0xf] sm:$0x1]
        %v4665 = vlaneseq
        %v4666 = vshrl.u32 %v4665, 7
        %v4667 = vsub.s32 0, %v4666
        %v4668 = vrot.slane %v4664, %v4667
        %v4669 = vmul.f32 %v4668, %v4550
        %v4670 = vmul.f32 %v4668, %v4551
        %v4671 = vmul.f32 %v4668, %v4552
        %v4672 = vmul.f32 %v4668, %v4553
        %v4673 = vadd.f32 %v4660, %v4669
        %v4674 = vadd.f32 %v4661, %v4670
        %v4675 = vadd.f32 %v4662, %v4671
        %v4676 = vadd.f32 %v4663, %v4672
        %v4677 = vld [vmem:[%s3 + $0x16] sm:$0x1]
        %v4678 = vlaneseq
        %v4679 = vshrl.u32 %v4678, 7
        %v4680 = vsub.s32 0, %v4679
        %v4681 = vrot.slane %v4677, %v4680
        %v4682 = vmul.f32 %v4681, %v4567
        %v4683 = vmul.f32 %v4681, %v4568
        %v4684 = vmul.f32 %v4681, %v4569
        %v4685 = vmul.f32 %v4681, %v4570
        %v4686 = vadd.f32 %v4673, %v4682
        %v4687 = vadd.f32 %v4674, %v4683
        %v4688 = vadd.f32 %v4675, %v4684
        %v4689 = vadd.f32 %v4676, %v4685
        %v4690 = vld [vmem:[%s3 + $0x1d] sm:$0x1]
        %v4691 = vlaneseq
        %v4692 = vshrl.u32 %v4691, 7
        %v4693 = vsub.s32 0, %v4692
        %v4694 = vrot.slane %v4690, %v4693
        %v4695 = vmul.f32 %v4694, %v4584
        %v4696 = vmul.f32 %v4694, %v4585
        %v4697 = vmul.f32 %v4694, %v4586
        %v4698 = vmul.f32 %v4694, %v4587
        %v4699 = vadd.f32 %v4686, %v4695
        %v4700 = vadd.f32 %v4687, %v4696
        %v4701 = vadd.f32 %v4688, %v4697
        %v4702 = vadd.f32 %v4689, %v4698
        %v4703 = vld [vmem:[%s3 + $0x24] sm:$0x1]
        %v4704 = vlaneseq
        %v4705 = vshrl.u32 %v4704, 7
        %v4706 = vsub.s32 0, %v4705
        %v4707 = vrot.slane %v4703, %v4706
        %v4708 = vmul.f32 %v4707, %v4601
        %v4709 = vmul.f32 %v4707, %v4602
        %v4710 = vmul.f32 %v4707, %v4603
        %v4711 = vmul.f32 %v4707, %v4604
        %v4712 = vadd.f32 %v4699, %v4708
        %v4713 = vadd.f32 %v4700, %v4709
        %v4714 = vadd.f32 %v4701, %v4710
        %v4715 = vadd.f32 %v4702, %v4711
        %v4716 = vld [vmem:[%s3 + $0x2b] sm:$0x1]
        %v4717 = vlaneseq
        %v4718 = vshrl.u32 %v4717, 7
        %v4719 = vsub.s32 0, %v4718
        %v4720 = vrot.slane %v4716, %v4719
        %v4721 = vmul.f32 %v4720, %v4618
        %v4722 = vmul.f32 %v4720, %v4619
        %v4723 = vmul.f32 %v4720, %v4620
        %v4724 = vmul.f32 %v4720, %v4621
        %v4725 = vadd.f32 %v4712, %v4721
        %v4726 = vadd.f32 %v4713, %v4722
        %v4727 = vadd.f32 %v4714, %v4723
        %v4728 = vadd.f32 %v4715, %v4724
        %4733 = vrot.lane.b32.xlu0 %v4725, 127
        %v4734 = vpop.permute.xlu0 %4733
        %4735 = vrot.lane.b32.xlu0 %v4726, 127
        %v4736 = vpop.permute.xlu0 %4735
        %4737 = vrot.lane.b32.xlu0 %v4727, 127
        %v4738 = vpop.permute.xlu0 %4737
        %4739 = vrot.lane.b32.xlu0 %v4728, 127
        %v4740 = vpop.permute.xlu0 %4739
        %v4745 = vadd.f32 %v4634, %v4734
        %v4746 = vadd.f32 %v4635, %v4736
        %v4747 = vadd.f32 %v4636, %v4738
        %v4748 = vadd.f32 %v4637, %v4740
        %v4749 = vld [vmem:[%s3 + $0x2] sm:$0x1]
        %v4750 = vlaneseq
        %v4751 = vshrl.u32 %v4750, 7
        %v4752 = vsub.s32 0, %v4751
        %v4753 = vrot.slane %v4749, %v4752
        %v4754 = vmul.f32 %v4753, %v4516
        %v4755 = vmul.f32 %v4753, %v4517
        %v4756 = vmul.f32 %v4753, %v4518
        %v4757 = vmul.f32 %v4753, %v4519
        %v4758 = vadd.f32 %v4754, 0.0
        %v4759 = vadd.f32 %v4755, 0.0
        %v4760 = vadd.f32 %v4756, 0.0
        %v4761 = vadd.f32 %v4757, 0.0
        %v4762 = vld [vmem:[%s3 + $0x9] sm:$0x1]
        %v4763 = vlaneseq
        %v4764 = vshrl.u32 %v4763, 7
        %v4765 = vsub.s32 0, %v4764
        %v4766 = vrot.slane %v4762, %v4765
        %v4767 = vmul.f32 %v4766, %v4533
        %v4768 = vmul.f32 %v4766, %v4534
        %v4769 = vmul.f32 %v4766, %v4535
        %v4770 = vmul.f32 %v4766, %v4536
        %v4771 = vadd.f32 %v4758, %v4767
        %v4772 = vadd.f32 %v4759, %v4768
        %v4773 = vadd.f32 %v4760, %v4769
        %v4774 = vadd.f32 %v4761, %v4770
        %v4775 = vld [vmem:[%s3 + $0x10] sm:$0x1]
        %v4776 = vlaneseq
        %v4777 = vshrl.u32 %v4776, 7
        %v4778 = vsub.s32 0, %v4777
        %v4779 = vrot.slane %v4775, %v4778
        %v4780 = vmul.f32 %v4779, %v4550
        %v4781 = vmul.f32 %v4779, %v4551
        %v4782 = vmul.f32 %v4779, %v4552
        %v4783 = vmul.f32 %v4779, %v4553
        %v4784 = vadd.f32 %v4771, %v4780
        %v4785 = vadd.f32 %v4772, %v4781
        %v4786 = vadd.f32 %v4773, %v4782
        %v4787 = vadd.f32 %v4774, %v4783
        %v4788 = vld [vmem:[%s3 + $0x17] sm:$0x1]
        %v4789 = vlaneseq
        %v4790 = vshrl.u32 %v4789, 7
        %v4791 = vsub.s32 0, %v4790
        %v4792 = vrot.slane %v4788, %v4791
        %v4793 = vmul.f32 %v4792, %v4567
        %v4794 = vmul.f32 %v4792, %v4568
        %v4795 = vmul.f32 %v4792, %v4569
        %v4796 = vmul.f32 %v4792, %v4570
        %v4797 = vadd.f32 %v4784, %v4793
        %v4798 = vadd.f32 %v4785, %v4794
        %v4799 = vadd.f32 %v4786, %v4795
        %v4800 = vadd.f32 %v4787, %v4796
        %v4801 = vld [vmem:[%s3 + $0x1e] sm:$0x1]
        %v4802 = vlaneseq
        %v4803 = vshrl.u32 %v4802, 7
        %v4804 = vsub.s32 0, %v4803
        %v4805 = vrot.slane %v4801, %v4804
        %v4806 = vmul.f32 %v4805, %v4584
        %v4807 = vmul.f32 %v4805, %v4585
        %v4808 = vmul.f32 %v4805, %v4586
        %v4809 = vmul.f32 %v4805, %v4587
        %v4810 = vadd.f32 %v4797, %v4806
        %v4811 = vadd.f32 %v4798, %v4807
        %v4812 = vadd.f32 %v4799, %v4808
        %v4813 = vadd.f32 %v4800, %v4809
        %v4814 = vld [vmem:[%s3 + $0x25] sm:$0x1]
        %v4815 = vlaneseq
        %v4816 = vshrl.u32 %v4815, 7
        %v4817 = vsub.s32 0, %v4816
        %v4818 = vrot.slane %v4814, %v4817
        %v4819 = vmul.f32 %v4818, %v4601
        %v4820 = vmul.f32 %v4818, %v4602
        %v4821 = vmul.f32 %v4818, %v4603
        %v4822 = vmul.f32 %v4818, %v4604
        %v4823 = vadd.f32 %v4810, %v4819
        %v4824 = vadd.f32 %v4811, %v4820
        %v4825 = vadd.f32 %v4812, %v4821
        %v4826 = vadd.f32 %v4813, %v4822
        %v4827 = vld [vmem:[%s3 + $0x2c] sm:$0x1]
        %v4828 = vlaneseq
        %v4829 = vshrl.u32 %v4828, 7
        %v4830 = vsub.s32 0, %v4829
        %v4831 = vrot.slane %v4827, %v4830
        %v4832 = vmul.f32 %v4831, %v4618
        %v4833 = vmul.f32 %v4831, %v4619
        %v4834 = vmul.f32 %v4831, %v4620
        %v4835 = vmul.f32 %v4831, %v4621
        %v4836 = vadd.f32 %v4823, %v4832
        %v4837 = vadd.f32 %v4824, %v4833
        %v4838 = vadd.f32 %v4825, %v4834
        %v4839 = vadd.f32 %v4826, %v4835
        %4844 = vrot.lane.b32.xlu0 %v4836, 126
        %v4845 = vpop.permute.xlu0 %4844
        %4846 = vrot.lane.b32.xlu0 %v4837, 126
        %v4847 = vpop.permute.xlu0 %4846
        %4848 = vrot.lane.b32.xlu0 %v4838, 126
        %v4849 = vpop.permute.xlu0 %4848
        %4850 = vrot.lane.b32.xlu0 %v4839, 126
        %v4851 = vpop.permute.xlu0 %4850
        %v4856 = vadd.f32 %v4745, %v4845
        %v4857 = vadd.f32 %v4746, %v4847
        %v4858 = vadd.f32 %v4747, %v4849
        %v4859 = vadd.f32 %v4748, %v4851
        %v4860 = vld [vmem:[%s3 + $0x3] sm:$0x1]
        %v4861 = vlaneseq
        %v4862 = vshrl.u32 %v4861, 7
        %v4863 = vsub.s32 0, %v4862
        %v4864 = vrot.slane %v4860, %v4863
        %v4865 = vmul.f32 %v4864, %v4516
        %v4866 = vmul.f32 %v4864, %v4517
        %v4867 = vmul.f32 %v4864, %v4518
        %v4868 = vmul.f32 %v4864, %v4519
        %v4869 = vadd.f32 %v4865, 0.0
        %v4870 = vadd.f32 %v4866, 0.0
        %v4871 = vadd.f32 %v4867, 0.0
        %v4872 = vadd.f32 %v4868, 0.0
        %v4873 = vld [vmem:[%s3 + $0xa] sm:$0x1]
        %v4874 = vlaneseq
        %v4875 = vshrl.u32 %v4874, 7
        %v4876 = vsub.s32 0, %v4875
        %v4877 = vrot.slane %v4873, %v4876
        %v4878 = vmul.f32 %v4877, %v4533
        %v4879 = vmul.f32 %v4877, %v4534
        %v4880 = vmul.f32 %v4877, %v4535
        %v4881 = vmul.f32 %v4877, %v4536
        %v4882 = vadd.f32 %v4869, %v4878
        %v4883 = vadd.f32 %v4870, %v4879
        %v4884 = vadd.f32 %v4871, %v4880
        %v4885 = vadd.f32 %v4872, %v4881
        %v4886 = vld [vmem:[%s3 + $0x11] sm:$0x1]
        %v4887 = vlaneseq
        %v4888 = vshrl.u32 %v4887, 7
        %v4889 = vsub.s32 0, %v4888
        %v4890 = vrot.slane %v4886, %v4889
        %v4891 = vmul.f32 %v4890, %v4550
        %v4892 = vmul.f32 %v4890, %v4551
        %v4893 = vmul.f32 %v4890, %v4552
        %v4894 = vmul.f32 %v4890, %v4553
        %v4895 = vadd.f32 %v4882, %v4891
        %v4896 = vadd.f32 %v4883, %v4892
        %v4897 = vadd.f32 %v4884, %v4893
        %v4898 = vadd.f32 %v4885, %v4894
        %v4899 = vld [vmem:[%s3 + $0x18] sm:$0x1]
        %v4900 = vlaneseq
        %v4901 = vshrl.u32 %v4900, 7
        %v4902 = vsub.s32 0, %v4901
        %v4903 = vrot.slane %v4899, %v4902
        %v4904 = vmul.f32 %v4903, %v4567
        %v4905 = vmul.f32 %v4903, %v4568
        %v4906 = vmul.f32 %v4903, %v4569
        %v4907 = vmul.f32 %v4903, %v4570
        %v4908 = vadd.f32 %v4895, %v4904
        %v4909 = vadd.f32 %v4896, %v4905
        %v4910 = vadd.f32 %v4897, %v4906
        %v4911 = vadd.f32 %v4898, %v4907
        %v4912 = vld [vmem:[%s3 + $0x1f] sm:$0x1]
        %v4913 = vlaneseq
        %v4914 = vshrl.u32 %v4913, 7
        %v4915 = vsub.s32 0, %v4914
        %v4916 = vrot.slane %v4912, %v4915
        %v4917 = vmul.f32 %v4916, %v4584
        %v4918 = vmul.f32 %v4916, %v4585
        %v4919 = vmul.f32 %v4916, %v4586
        %v4920 = vmul.f32 %v4916, %v4587
        %v4921 = vadd.f32 %v4908, %v4917
        %v4922 = vadd.f32 %v4909, %v4918
        %v4923 = vadd.f32 %v4910, %v4919
        %v4924 = vadd.f32 %v4911, %v4920
        %v4925 = vld [vmem:[%s3 + $0x26] sm:$0x1]
        %v4926 = vlaneseq
        %v4927 = vshrl.u32 %v4926, 7
        %v4928 = vsub.s32 0, %v4927
        %v4929 = vrot.slane %v4925, %v4928
        %v4930 = vmul.f32 %v4929, %v4601
        %v4931 = vmul.f32 %v4929, %v4602
        %v4932 = vmul.f32 %v4929, %v4603
        %v4933 = vmul.f32 %v4929, %v4604
        %v4934 = vadd.f32 %v4921, %v4930
        %v4935 = vadd.f32 %v4922, %v4931
        %v4936 = vadd.f32 %v4923, %v4932
        %v4937 = vadd.f32 %v4924, %v4933
        %v4938 = vld [vmem:[%s3 + $0x2d] sm:$0x1]
        %v4939 = vlaneseq
        %v4940 = vshrl.u32 %v4939, 7
        %v4941 = vsub.s32 0, %v4940
        %v4942 = vrot.slane %v4938, %v4941
        %v4943 = vmul.f32 %v4942, %v4618
        %v4944 = vmul.f32 %v4942, %v4619
        %v4945 = vmul.f32 %v4942, %v4620
        %v4946 = vmul.f32 %v4942, %v4621
        %v4947 = vadd.f32 %v4934, %v4943
        %v4948 = vadd.f32 %v4935, %v4944
        %v4949 = vadd.f32 %v4936, %v4945
        %v4950 = vadd.f32 %v4937, %v4946
        %4955 = vrot.lane.b32.xlu0 %v4947, 125
        %v4956 = vpop.permute.xlu0 %4955
        %4957 = vrot.lane.b32.xlu0 %v4948, 125
        %v4958 = vpop.permute.xlu0 %4957
        %4959 = vrot.lane.b32.xlu0 %v4949, 125
        %v4960 = vpop.permute.xlu0 %4959
        %4961 = vrot.lane.b32.xlu0 %v4950, 125
        %v4962 = vpop.permute.xlu0 %4961
        %v4967 = vadd.f32 %v4856, %v4956
        %v4968 = vadd.f32 %v4857, %v4958
        %v4969 = vadd.f32 %v4858, %v4960
        %v4970 = vadd.f32 %v4859, %v4962
        %v4971 = vld [vmem:[%s3 + $0x4] sm:$0x1]
        %v4972 = vlaneseq
        %v4973 = vshrl.u32 %v4972, 7
        %v4974 = vsub.s32 0, %v4973
        %v4975 = vrot.slane %v4971, %v4974
        %v4976 = vmul.f32 %v4975, %v4516
        %v4977 = vmul.f32 %v4975, %v4517
        %v4978 = vmul.f32 %v4975, %v4518
        %v4979 = vmul.f32 %v4975, %v4519
        %v4980 = vadd.f32 %v4976, 0.0
        %v4981 = vadd.f32 %v4977, 0.0
        %v4982 = vadd.f32 %v4978, 0.0
        %v4983 = vadd.f32 %v4979, 0.0
        %v4984 = vld [vmem:[%s3 + $0xb] sm:$0x1]
        %v4985 = vlaneseq
        %v4986 = vshrl.u32 %v4985, 7
        %v4987 = vsub.s32 0, %v4986
        %v4988 = vrot.slane %v4984, %v4987
        %v4989 = vmul.f32 %v4988, %v4533
        %v4990 = vmul.f32 %v4988, %v4534
        %v4991 = vmul.f32 %v4988, %v4535
        %v4992 = vmul.f32 %v4988, %v4536
        %v4993 = vadd.f32 %v4980, %v4989
        %v4994 = vadd.f32 %v4981, %v4990
        %v4995 = vadd.f32 %v4982, %v4991
        %v4996 = vadd.f32 %v4983, %v4992
        %v4997 = vld [vmem:[%s3 + $0x12] sm:$0x1]
        %v4998 = vlaneseq
        %v4999 = vshrl.u32 %v4998, 7
        %v5000 = vsub.s32 0, %v4999
        %v5001 = vrot.slane %v4997, %v5000
        %v5002 = vmul.f32 %v5001, %v4550
        %v5003 = vmul.f32 %v5001, %v4551
        %v5004 = vmul.f32 %v5001, %v4552
        %v5005 = vmul.f32 %v5001, %v4553
        %v5006 = vadd.f32 %v4993, %v5002
        %v5007 = vadd.f32 %v4994, %v5003
        %v5008 = vadd.f32 %v4995, %v5004
        %v5009 = vadd.f32 %v4996, %v5005
        %v5010 = vld [vmem:[%s3 + $0x19] sm:$0x1]
        %v5011 = vlaneseq
        %v5012 = vshrl.u32 %v5011, 7
        %v5013 = vsub.s32 0, %v5012
        %v5014 = vrot.slane %v5010, %v5013
        %v5015 = vmul.f32 %v5014, %v4567
        %v5016 = vmul.f32 %v5014, %v4568
        %v5017 = vmul.f32 %v5014, %v4569
        %v5018 = vmul.f32 %v5014, %v4570
        %v5019 = vadd.f32 %v5006, %v5015
        %v5020 = vadd.f32 %v5007, %v5016
        %v5021 = vadd.f32 %v5008, %v5017
        %v5022 = vadd.f32 %v5009, %v5018
        %v5023 = vld [vmem:[%s3 + $0x20] sm:$0x1]
        %v5024 = vlaneseq
        %v5025 = vshrl.u32 %v5024, 7
        %v5026 = vsub.s32 0, %v5025
        %v5027 = vrot.slane %v5023, %v5026
        %v5028 = vmul.f32 %v5027, %v4584
        %v5029 = vmul.f32 %v5027, %v4585
        %v5030 = vmul.f32 %v5027, %v4586
        %v5031 = vmul.f32 %v5027, %v4587
        %v5032 = vadd.f32 %v5019, %v5028
        %v5033 = vadd.f32 %v5020, %v5029
        %v5034 = vadd.f32 %v5021, %v5030
        %v5035 = vadd.f32 %v5022, %v5031
        %v5036 = vld [vmem:[%s3 + $0x27] sm:$0x1]
        %v5037 = vlaneseq
        %v5038 = vshrl.u32 %v5037, 7
        %v5039 = vsub.s32 0, %v5038
        %v5040 = vrot.slane %v5036, %v5039
        %v5041 = vmul.f32 %v5040, %v4601
        %v5042 = vmul.f32 %v5040, %v4602
        %v5043 = vmul.f32 %v5040, %v4603
        %v5044 = vmul.f32 %v5040, %v4604
        %v5045 = vadd.f32 %v5032, %v5041
        %v5046 = vadd.f32 %v5033, %v5042
        %v5047 = vadd.f32 %v5034, %v5043
        %v5048 = vadd.f32 %v5035, %v5044
        %v5049 = vld [vmem:[%s3 + $0x2e] sm:$0x1]
        %v5050 = vlaneseq
        %v5051 = vshrl.u32 %v5050, 7
        %v5052 = vsub.s32 0, %v5051
        %v5053 = vrot.slane %v5049, %v5052
        %v5054 = vmul.f32 %v5053, %v4618
        %v5055 = vmul.f32 %v5053, %v4619
        %v5056 = vmul.f32 %v5053, %v4620
        %v5057 = vmul.f32 %v5053, %v4621
        %v5058 = vadd.f32 %v5045, %v5054
        %v5059 = vadd.f32 %v5046, %v5055
        %v5060 = vadd.f32 %v5047, %v5056
        %v5061 = vadd.f32 %v5048, %v5057
        %5066 = vrot.lane.b32.xlu0 %v5058, 124
        %v5067 = vpop.permute.xlu0 %5066
        %5068 = vrot.lane.b32.xlu0 %v5059, 124
        %v5069 = vpop.permute.xlu0 %5068
        %5070 = vrot.lane.b32.xlu0 %v5060, 124
        %v5071 = vpop.permute.xlu0 %5070
        %5072 = vrot.lane.b32.xlu0 %v5061, 124
        %v5073 = vpop.permute.xlu0 %5072
        %v5078 = vadd.f32 %v4967, %v5067
        %v5079 = vadd.f32 %v4968, %v5069
        %v5080 = vadd.f32 %v4969, %v5071
        %v5081 = vadd.f32 %v4970, %v5073
        %v5082 = vld [vmem:[%s3 + $0x5] sm:$0x1]
        %v5083 = vlaneseq
        %v5084 = vshrl.u32 %v5083, 7
        %v5085 = vsub.s32 0, %v5084
        %v5086 = vrot.slane %v5082, %v5085
        %v5087 = vmul.f32 %v5086, %v4516
        %v5088 = vmul.f32 %v5086, %v4517
        %v5089 = vmul.f32 %v5086, %v4518
        %v5090 = vmul.f32 %v5086, %v4519
        %v5091 = vadd.f32 %v5087, 0.0
        %v5092 = vadd.f32 %v5088, 0.0
        %v5093 = vadd.f32 %v5089, 0.0
        %v5094 = vadd.f32 %v5090, 0.0
        %v5095 = vld [vmem:[%s3 + $0xc] sm:$0x1]
        %v5096 = vlaneseq
        %v5097 = vshrl.u32 %v5096, 7
        %v5098 = vsub.s32 0, %v5097
        %v5099 = vrot.slane %v5095, %v5098
        %v5100 = vmul.f32 %v5099, %v4533
        %v5101 = vmul.f32 %v5099, %v4534
        %v5102 = vmul.f32 %v5099, %v4535
        %v5103 = vmul.f32 %v5099, %v4536
        %v5104 = vadd.f32 %v5091, %v5100
        %v5105 = vadd.f32 %v5092, %v5101
        %v5106 = vadd.f32 %v5093, %v5102
        %v5107 = vadd.f32 %v5094, %v5103
        %v5108 = vld [vmem:[%s3 + $0x13] sm:$0x1]
        %v5109 = vlaneseq
        %v5110 = vshrl.u32 %v5109, 7
        %v5111 = vsub.s32 0, %v5110
        %v5112 = vrot.slane %v5108, %v5111
        %v5113 = vmul.f32 %v5112, %v4550
        %v5114 = vmul.f32 %v5112, %v4551
        %v5115 = vmul.f32 %v5112, %v4552
        %v5116 = vmul.f32 %v5112, %v4553
        %v5117 = vadd.f32 %v5104, %v5113
        %v5118 = vadd.f32 %v5105, %v5114
        %v5119 = vadd.f32 %v5106, %v5115
        %v5120 = vadd.f32 %v5107, %v5116
        %v5121 = vld [vmem:[%s3 + $0x1a] sm:$0x1]
        %v5122 = vlaneseq
        %v5123 = vshrl.u32 %v5122, 7
        %v5124 = vsub.s32 0, %v5123
        %v5125 = vrot.slane %v5121, %v5124
        %v5126 = vmul.f32 %v5125, %v4567
        %v5127 = vmul.f32 %v5125, %v4568
        %v5128 = vmul.f32 %v5125, %v4569
        %v5129 = vmul.f32 %v5125, %v4570
        %v5130 = vadd.f32 %v5117, %v5126
        %v5131 = vadd.f32 %v5118, %v5127
        %v5132 = vadd.f32 %v5119, %v5128
        %v5133 = vadd.f32 %v5120, %v5129
        %v5134 = vld [vmem:[%s3 + $0x21] sm:$0x1]
        %v5135 = vlaneseq
        %v5136 = vshrl.u32 %v5135, 7
        %v5137 = vsub.s32 0, %v5136
        %v5138 = vrot.slane %v5134, %v5137
        %v5139 = vmul.f32 %v5138, %v4584
        %v5140 = vmul.f32 %v5138, %v4585
        %v5141 = vmul.f32 %v5138, %v4586
        %v5142 = vmul.f32 %v5138, %v4587
        %v5143 = vadd.f32 %v5130, %v5139
        %v5144 = vadd.f32 %v5131, %v5140
        %v5145 = vadd.f32 %v5132, %v5141
        %v5146 = vadd.f32 %v5133, %v5142
        %v5147 = vld [vmem:[%s3 + $0x28] sm:$0x1]
        %v5148 = vlaneseq
        %v5149 = vshrl.u32 %v5148, 7
        %v5150 = vsub.s32 0, %v5149
        %v5151 = vrot.slane %v5147, %v5150
        %v5152 = vmul.f32 %v5151, %v4601
        %v5153 = vmul.f32 %v5151, %v4602
        %v5154 = vmul.f32 %v5151, %v4603
        %v5155 = vmul.f32 %v5151, %v4604
        %v5156 = vadd.f32 %v5143, %v5152
        %v5157 = vadd.f32 %v5144, %v5153
        %v5158 = vadd.f32 %v5145, %v5154
        %v5159 = vadd.f32 %v5146, %v5155
        %v5160 = vld [vmem:[%s3 + $0x2f] sm:$0x1]
        %v5161 = vlaneseq
        %v5162 = vshrl.u32 %v5161, 7
        %v5163 = vsub.s32 0, %v5162
        %v5164 = vrot.slane %v5160, %v5163
        %v5165 = vmul.f32 %v5164, %v4618
        %v5166 = vmul.f32 %v5164, %v4619
        %v5167 = vmul.f32 %v5164, %v4620
        %v5168 = vmul.f32 %v5164, %v4621
        %v5169 = vadd.f32 %v5156, %v5165
        %v5170 = vadd.f32 %v5157, %v5166
        %v5171 = vadd.f32 %v5158, %v5167
        %v5172 = vadd.f32 %v5159, %v5168
        %5177 = vrot.lane.b32.xlu0 %v5169, 123
        %v5178 = vpop.permute.xlu0 %5177
        %5179 = vrot.lane.b32.xlu0 %v5170, 123
        %v5180 = vpop.permute.xlu0 %5179
        %5181 = vrot.lane.b32.xlu0 %v5171, 123
        %v5182 = vpop.permute.xlu0 %5181
        %5183 = vrot.lane.b32.xlu0 %v5172, 123
        %v5184 = vpop.permute.xlu0 %5183
        %v5189 = vadd.f32 %v5078, %v5178
        %v5190 = vadd.f32 %v5079, %v5180
        %v5191 = vadd.f32 %v5080, %v5182
        %v5192 = vadd.f32 %v5081, %v5184
        %v5193 = vld [vmem:[%s3 + $0x6] sm:$0x1]
        %v5194 = vlaneseq
        %v5195 = vshrl.u32 %v5194, 7
        %v5196 = vsub.s32 0, %v5195
        %v5197 = vrot.slane %v5193, %v5196
        %v5198 = vmul.f32 %v5197, %v4516
        %v5199 = vmul.f32 %v5197, %v4517
        %v5200 = vmul.f32 %v5197, %v4518
        %v5201 = vmul.f32 %v5197, %v4519
        %v5202 = vadd.f32 %v5198, 0.0
        %v5203 = vadd.f32 %v5199, 0.0
        %v5204 = vadd.f32 %v5200, 0.0
        %v5205 = vadd.f32 %v5201, 0.0
        %v5206 = vld [vmem:[%s3 + $0xd] sm:$0x1]
        %v5207 = vlaneseq
        %v5208 = vshrl.u32 %v5207, 7
        %v5209 = vsub.s32 0, %v5208
        %v5210 = vrot.slane %v5206, %v5209
        %v5211 = vmul.f32 %v5210, %v4533
        %v5212 = vmul.f32 %v5210, %v4534
        %v5213 = vmul.f32 %v5210, %v4535
        %v5214 = vmul.f32 %v5210, %v4536
        %v5215 = vadd.f32 %v5202, %v5211
        %v5216 = vadd.f32 %v5203, %v5212
        %v5217 = vadd.f32 %v5204, %v5213
        %v5218 = vadd.f32 %v5205, %v5214
        %v5219 = vld [vmem:[%s3 + $0x14] sm:$0x1]
        %v5220 = vlaneseq
        %v5221 = vshrl.u32 %v5220, 7
        %v5222 = vsub.s32 0, %v5221
        %v5223 = vrot.slane %v5219, %v5222
        %v5224 = vmul.f32 %v5223, %v4550
        %v5225 = vmul.f32 %v5223, %v4551
        %v5226 = vmul.f32 %v5223, %v4552
        %v5227 = vmul.f32 %v5223, %v4553
        %v5228 = vadd.f32 %v5215, %v5224
        %v5229 = vadd.f32 %v5216, %v5225
        %v5230 = vadd.f32 %v5217, %v5226
        %v5231 = vadd.f32 %v5218, %v5227
        %v5232 = vld [vmem:[%s3 + $0x1b] sm:$0x1]
        %v5233 = vlaneseq
        %v5234 = vshrl.u32 %v5233, 7
        %v5235 = vsub.s32 0, %v5234
        %v5236 = vrot.slane %v5232, %v5235
        %v5237 = vmul.f32 %v5236, %v4567
        %v5238 = vmul.f32 %v5236, %v4568
        %v5239 = vmul.f32 %v5236, %v4569
        %v5240 = vmul.f32 %v5236, %v4570
        %v5241 = vadd.f32 %v5228, %v5237
        %v5242 = vadd.f32 %v5229, %v5238
        %v5243 = vadd.f32 %v5230, %v5239
        %v5244 = vadd.f32 %v5231, %v5240
        %v5245 = vld [vmem:[%s3 + $0x22] sm:$0x1]
        %v5246 = vlaneseq
        %v5247 = vshrl.u32 %v5246, 7
        %v5248 = vsub.s32 0, %v5247
        %v5249 = vrot.slane %v5245, %v5248
        %v5250 = vmul.f32 %v5249, %v4584
        %v5251 = vmul.f32 %v5249, %v4585
        %v5252 = vmul.f32 %v5249, %v4586
        %v5253 = vmul.f32 %v5249, %v4587
        %v5254 = vadd.f32 %v5241, %v5250
        %v5255 = vadd.f32 %v5242, %v5251
        %v5256 = vadd.f32 %v5243, %v5252
        %v5257 = vadd.f32 %v5244, %v5253
        %v5258 = vld [vmem:[%s3 + $0x29] sm:$0x1]
        %v5259 = vlaneseq
        %v5260 = vshrl.u32 %v5259, 7
        %v5261 = vsub.s32 0, %v5260
        %v5262 = vrot.slane %v5258, %v5261
        %v5263 = vmul.f32 %v5262, %v4601
        %v5264 = vmul.f32 %v5262, %v4602
        %v5265 = vmul.f32 %v5262, %v4603
        %v5266 = vmul.f32 %v5262, %v4604
        %v5267 = vadd.f32 %v5254, %v5263
        %v5268 = vadd.f32 %v5255, %v5264
        %v5269 = vadd.f32 %v5256, %v5265
        %v5270 = vadd.f32 %v5257, %v5266
        %v5271 = vld [vmem:[%s3 + $0x30] sm:$0x1]
        %v5272 = vlaneseq
        %v5273 = vshrl.u32 %v5272, 7
        %v5274 = vsub.s32 0, %v5273
        %v5275 = vrot.slane %v5271, %v5274
        %v5276 = vmul.f32 %v5275, %v4618
        %v5277 = vmul.f32 %v5275, %v4619
        %v5278 = vmul.f32 %v5275, %v4620
        %v5279 = vmul.f32 %v5275, %v4621
        %v5280 = vadd.f32 %v5267, %v5276
        %v5281 = vadd.f32 %v5268, %v5277
        %v5282 = vadd.f32 %v5269, %v5278
        %v5283 = vadd.f32 %v5270, %v5279
        %5288 = vrot.lane.b32.xlu0 %v5280, 122
        %v5289 = vpop.permute.xlu0 %5288
        %5290 = vrot.lane.b32.xlu0 %v5281, 122
        %v5291 = vpop.permute.xlu0 %5290
        %5292 = vrot.lane.b32.xlu0 %v5282, 122
        %v5293 = vpop.permute.xlu0 %5292
        %5294 = vrot.lane.b32.xlu0 %v5283, 122
        %v5295 = vpop.permute.xlu0 %5294
        %v5300 = vadd.f32 %v5189, %v5289
        %v5301 = vadd.f32 %v5190, %v5291
        %v5302 = vadd.f32 %v5191, %v5293
        %v5303 = vadd.f32 %v5192, %v5295
        %5308 = vrot.lane.b32.xlu0 %v5300, 64
        %v5309 = vpop.permute.xlu0 %5308
        %5310 = vrot.lane.b32.xlu0 %v5301, 64
        %v5311 = vpop.permute.xlu0 %5310
        %5312 = vrot.lane.b32.xlu0 %v5302, 64
        %v5313 = vpop.permute.xlu0 %5312
        %5314 = vrot.lane.b32.xlu0 %v5303, 64
        %v5315 = vpop.permute.xlu0 %5314
        %v5320 = vadd.f32 %v5300, %v5309
        %v5321 = vadd.f32 %v5301, %v5311
        %v5322 = vadd.f32 %v5302, %v5313
        %v5323 = vadd.f32 %v5303, %v5315
        %v5324 = vxor.u32 %v5320, 2147483648
        %v5325 = vxor.u32 %v5321, 2147483648
        %v5326 = vxor.u32 %v5322, 2147483648
        %v5327 = vxor.u32 %v5323, 2147483648
        %v5328 = vmul.f32 %v5324, 1.442695
        %v5329 = vpow.pop %v5328
        %v5330 = vmul.f32 %v5325, 1.442695
        %v5331 = vpow.pop %v5330
        %v5332 = vmul.f32 %v5326, 1.442695
        %v5333 = vpow.pop %v5332
        %v5334 = vmul.f32 %v5327, 1.442695
        %v5335 = vpow.pop %v5334
        %v5336 = vadd.f32 %v5329, 1.0
        %v5337 = vadd.f32 %v5331, 1.0
        %v5338 = vadd.f32 %v5333, 1.0
        %v5339 = vadd.f32 %v5335, 1.0
        %v5340 = vrcp.pop %v5336
        %v5341 = vmul.f32 1.0, %v5340
        %v5342 = vrcp.pop %v5337
        %v5343 = vmul.f32 1.0, %v5342
        %v5344 = vrcp.pop %v5338
        %v5345 = vmul.f32 1.0, %v5344
        %v5346 = vrcp.pop %v5339
        %v5347 = vmul.f32 1.0, %v5346
        %v5348 = vlaneseq
        %v5349 = vshrl.u32 %v5348, 7
        %v5350 = vsub.s32 0, %v5349
        %v5351 = vrot.slane %v5341, %v5350
        %5353 = vbcast.lane.b32.xlu0 %v5351, 256
        %v5354 = vpop.permute.xlu0 %5353
        %s5356 = sor.u32 256, 8
        %5357 = vbcast.lane.b32.xlu0 %v5351, %s5356
        %v5358 = vpop.permute.xlu0 %5357
        %s5360 = sor.u32 256, 16
        %5361 = vbcast.lane.b32.xlu0 %v5351, %s5360
        %v5362 = vpop.permute.xlu0 %5361
        %s5364 = sor.u32 256, 24
        %5365 = vbcast.lane.b32.xlu0 %v5351, %s5364
        %v5366 = vpop.permute.xlu0 %5365
        %v5367 = vlaneseq
        %v5368 = vshrl.u32 %v5367, 7
        %v5369 = vsub.s32 1, %v5368
        %v5370 = vrot.slane %v5341, %v5369
        %5372 = vbcast.lane.b32.xlu0 %v5370, 256
        %v5373 = vpop.permute.xlu0 %5372
        %s5375 = sor.u32 256, 8
        %5376 = vbcast.lane.b32.xlu0 %v5370, %s5375
        %v5377 = vpop.permute.xlu0 %5376
        %s5379 = sor.u32 256, 16
        %5380 = vbcast.lane.b32.xlu0 %v5370, %s5379
        %v5381 = vpop.permute.xlu0 %5380
        %s5383 = sor.u32 256, 24
        %5384 = vbcast.lane.b32.xlu0 %v5370, %s5383
        %v5385 = vpop.permute.xlu0 %5384
        %v5386 = vlaneseq
        %v5387 = vshrl.u32 %v5386, 7
        %v5388 = vsub.s32 2, %v5387
        %v5389 = vrot.slane %v5341, %v5388
        %5391 = vbcast.lane.b32.xlu0 %v5389, 256
        %v5392 = vpop.permute.xlu0 %5391
        %s5394 = sor.u32 256, 8
        %5395 = vbcast.lane.b32.xlu0 %v5389, %s5394
        %v5396 = vpop.permute.xlu0 %5395
        %s5398 = sor.u32 256, 16
        %5399 = vbcast.lane.b32.xlu0 %v5389, %s5398
        %v5400 = vpop.permute.xlu0 %5399
        %s5402 = sor.u32 256, 24
        %5403 = vbcast.lane.b32.xlu0 %v5389, %s5402
        %v5404 = vpop.permute.xlu0 %5403
        %v5405 = vlaneseq
        %v5406 = vshrl.u32 %v5405, 7
        %v5407 = vsub.s32 3, %v5406
        %v5408 = vrot.slane %v5341, %v5407
        %5410 = vbcast.lane.b32.xlu0 %v5408, 256
        %v5411 = vpop.permute.xlu0 %5410
        %s5413 = sor.u32 256, 8
        %5414 = vbcast.lane.b32.xlu0 %v5408, %s5413
        %v5415 = vpop.permute.xlu0 %5414
        %s5417 = sor.u32 256, 16
        %5418 = vbcast.lane.b32.xlu0 %v5408, %s5417
        %v5419 = vpop.permute.xlu0 %5418
        %s5421 = sor.u32 256, 24
        %5422 = vbcast.lane.b32.xlu0 %v5408, %s5421
        %v5423 = vpop.permute.xlu0 %5422
        %v5424 = vlaneseq
        %v5425 = vshrl.u32 %v5424, 7
        %v5426 = vsub.s32 4, %v5425
        %v5427 = vrot.slane %v5341, %v5426
        %5429 = vbcast.lane.b32.xlu0 %v5427, 256
        %v5430 = vpop.permute.xlu0 %5429
        %s5432 = sor.u32 256, 8
        %5433 = vbcast.lane.b32.xlu0 %v5427, %s5432
        %v5434 = vpop.permute.xlu0 %5433
        %s5436 = sor.u32 256, 16
        %5437 = vbcast.lane.b32.xlu0 %v5427, %s5436
        %v5438 = vpop.permute.xlu0 %5437
        %s5440 = sor.u32 256, 24
        %5441 = vbcast.lane.b32.xlu0 %v5427, %s5440
        %v5442 = vpop.permute.xlu0 %5441
        %v5443 = vlaneseq
        %v5444 = vshrl.u32 %v5443, 7
        %v5445 = vsub.s32 5, %v5444
        %v5446 = vrot.slane %v5341, %v5445
        %5448 = vbcast.lane.b32.xlu0 %v5446, 256
        %v5449 = vpop.permute.xlu0 %5448
        %s5451 = sor.u32 256, 8
        %5452 = vbcast.lane.b32.xlu0 %v5446, %s5451
        %v5453 = vpop.permute.xlu0 %5452
        %s5455 = sor.u32 256, 16
        %5456 = vbcast.lane.b32.xlu0 %v5446, %s5455
        %v5457 = vpop.permute.xlu0 %5456
        %s5459 = sor.u32 256, 24
        %5460 = vbcast.lane.b32.xlu0 %v5446, %s5459
        %v5461 = vpop.permute.xlu0 %5460
        %v5462 = vlaneseq
        %v5463 = vshrl.u32 %v5462, 7
        %v5464 = vsub.s32 6, %v5463
        %v5465 = vrot.slane %v5341, %v5464
        %5467 = vbcast.lane.b32.xlu0 %v5465, 256
        %v5468 = vpop.permute.xlu0 %5467
        %s5470 = sor.u32 256, 8
        %5471 = vbcast.lane.b32.xlu0 %v5465, %s5470
        %v5472 = vpop.permute.xlu0 %5471
        %s5474 = sor.u32 256, 16
        %5475 = vbcast.lane.b32.xlu0 %v5465, %s5474
        %v5476 = vpop.permute.xlu0 %5475
        %s5478 = sor.u32 256, 24
        %5479 = vbcast.lane.b32.xlu0 %v5465, %s5478
        %v5480 = vpop.permute.xlu0 %5479
        %v5481 = vlaneseq
        %v5482 = vshrl.u32 %v5481, 7
        %v5483 = vsub.s32 7, %v5482
        %v5484 = vrot.slane %v5341, %v5483
        %5486 = vbcast.lane.b32.xlu0 %v5484, 256
        %v5487 = vpop.permute.xlu0 %5486
        %s5489 = sor.u32 256, 8
        %5490 = vbcast.lane.b32.xlu0 %v5484, %s5489
        %v5491 = vpop.permute.xlu0 %5490
        %s5493 = sor.u32 256, 16
        %5494 = vbcast.lane.b32.xlu0 %v5484, %s5493
        %v5495 = vpop.permute.xlu0 %5494
        %s5497 = sor.u32 256, 24
        %5498 = vbcast.lane.b32.xlu0 %v5484, %s5497
        %v5499 = vpop.permute.xlu0 %5498
        %v5500 = vlaneseq
        %v5501 = vshrl.u32 %v5500, 7
        %v5502 = vsub.s32 0, %v5501
        %v5503 = vrot.slane %v5343, %v5502
        %5505 = vbcast.lane.b32.xlu0 %v5503, 256
        %v5506 = vpop.permute.xlu0 %5505
        %s5508 = sor.u32 256, 8
        %5509 = vbcast.lane.b32.xlu0 %v5503, %s5508
        %v5510 = vpop.permute.xlu0 %5509
        %s5512 = sor.u32 256, 16
        %5513 = vbcast.lane.b32.xlu0 %v5503, %s5512
        %v5514 = vpop.permute.xlu0 %5513
        %s5516 = sor.u32 256, 24
        %5517 = vbcast.lane.b32.xlu0 %v5503, %s5516
        %v5518 = vpop.permute.xlu0 %5517
        %v5519 = vlaneseq
        %v5520 = vshrl.u32 %v5519, 7
        %v5521 = vsub.s32 1, %v5520
        %v5522 = vrot.slane %v5343, %v5521
        %5524 = vbcast.lane.b32.xlu0 %v5522, 256
        %v5525 = vpop.permute.xlu0 %5524
        %s5527 = sor.u32 256, 8
        %5528 = vbcast.lane.b32.xlu0 %v5522, %s5527
        %v5529 = vpop.permute.xlu0 %5528
        %s5531 = sor.u32 256, 16
        %5532 = vbcast.lane.b32.xlu0 %v5522, %s5531
        %v5533 = vpop.permute.xlu0 %5532
        %s5535 = sor.u32 256, 24
        %5536 = vbcast.lane.b32.xlu0 %v5522, %s5535
        %v5537 = vpop.permute.xlu0 %5536
        %v5538 = vlaneseq
        %v5539 = vshrl.u32 %v5538, 7
        %v5540 = vsub.s32 2, %v5539
        %v5541 = vrot.slane %v5343, %v5540
        %5543 = vbcast.lane.b32.xlu0 %v5541, 256
        %v5544 = vpop.permute.xlu0 %5543
        %s5546 = sor.u32 256, 8
        %5547 = vbcast.lane.b32.xlu0 %v5541, %s5546
        %v5548 = vpop.permute.xlu0 %5547
        %s5550 = sor.u32 256, 16
        %5551 = vbcast.lane.b32.xlu0 %v5541, %s5550
        %v5552 = vpop.permute.xlu0 %5551
        %s5554 = sor.u32 256, 24
        %5555 = vbcast.lane.b32.xlu0 %v5541, %s5554
        %v5556 = vpop.permute.xlu0 %5555
        %v5557 = vlaneseq
        %v5558 = vshrl.u32 %v5557, 7
        %v5559 = vsub.s32 3, %v5558
        %v5560 = vrot.slane %v5343, %v5559
        %5562 = vbcast.lane.b32.xlu0 %v5560, 256
        %v5563 = vpop.permute.xlu0 %5562
        %s5565 = sor.u32 256, 8
        %5566 = vbcast.lane.b32.xlu0 %v5560, %s5565
        %v5567 = vpop.permute.xlu0 %5566
        %s5569 = sor.u32 256, 16
        %5570 = vbcast.lane.b32.xlu0 %v5560, %s5569
        %v5571 = vpop.permute.xlu0 %5570
        %s5573 = sor.u32 256, 24
        %5574 = vbcast.lane.b32.xlu0 %v5560, %s5573
        %v5575 = vpop.permute.xlu0 %5574
        %v5576 = vlaneseq
        %v5577 = vshrl.u32 %v5576, 7
        %v5578 = vsub.s32 4, %v5577
        %v5579 = vrot.slane %v5343, %v5578
        %5581 = vbcast.lane.b32.xlu0 %v5579, 256
        %v5582 = vpop.permute.xlu0 %5581
        %s5584 = sor.u32 256, 8
        %5585 = vbcast.lane.b32.xlu0 %v5579, %s5584
        %v5586 = vpop.permute.xlu0 %5585
        %s5588 = sor.u32 256, 16
        %5589 = vbcast.lane.b32.xlu0 %v5579, %s5588
        %v5590 = vpop.permute.xlu0 %5589
        %s5592 = sor.u32 256, 24
        %5593 = vbcast.lane.b32.xlu0 %v5579, %s5592
        %v5594 = vpop.permute.xlu0 %5593
        %v5595 = vlaneseq
        %v5596 = vshrl.u32 %v5595, 7
        %v5597 = vsub.s32 5, %v5596
        %v5598 = vrot.slane %v5343, %v5597
        %5600 = vbcast.lane.b32.xlu0 %v5598, 256
        %v5601 = vpop.permute.xlu0 %5600
        %s5603 = sor.u32 256, 8
        %5604 = vbcast.lane.b32.xlu0 %v5598, %s5603
        %v5605 = vpop.permute.xlu0 %5604
        %s5607 = sor.u32 256, 16
        %5608 = vbcast.lane.b32.xlu0 %v5598, %s5607
        %v5609 = vpop.permute.xlu0 %5608
        %s5611 = sor.u32 256, 24
        %5612 = vbcast.lane.b32.xlu0 %v5598, %s5611
        %v5613 = vpop.permute.xlu0 %5612
        %v5614 = vlaneseq
        %v5615 = vshrl.u32 %v5614, 7
        %v5616 = vsub.s32 6, %v5615
        %v5617 = vrot.slane %v5343, %v5616
        %5619 = vbcast.lane.b32.xlu0 %v5617, 256
        %v5620 = vpop.permute.xlu0 %5619
        %s5622 = sor.u32 256, 8
        %5623 = vbcast.lane.b32.xlu0 %v5617, %s5622
        %v5624 = vpop.permute.xlu0 %5623
        %s5626 = sor.u32 256, 16
        %5627 = vbcast.lane.b32.xlu0 %v5617, %s5626
        %v5628 = vpop.permute.xlu0 %5627
        %s5630 = sor.u32 256, 24
        %5631 = vbcast.lane.b32.xlu0 %v5617, %s5630
        %v5632 = vpop.permute.xlu0 %5631
        %v5633 = vlaneseq
        %v5634 = vshrl.u32 %v5633, 7
        %v5635 = vsub.s32 7, %v5634
        %v5636 = vrot.slane %v5343, %v5635
        %5638 = vbcast.lane.b32.xlu0 %v5636, 256
        %v5639 = vpop.permute.xlu0 %5638
        %s5641 = sor.u32 256, 8
        %5642 = vbcast.lane.b32.xlu0 %v5636, %s5641
        %v5643 = vpop.permute.xlu0 %5642
        %s5645 = sor.u32 256, 16
        %5646 = vbcast.lane.b32.xlu0 %v5636, %s5645
        %v5647 = vpop.permute.xlu0 %5646
        %s5649 = sor.u32 256, 24
        %5650 = vbcast.lane.b32.xlu0 %v5636, %s5649
        %v5651 = vpop.permute.xlu0 %5650
        %v5652 = vlaneseq
        %v5653 = vshrl.u32 %v5652, 7
        %v5654 = vsub.s32 0, %v5653
        %v5655 = vrot.slane %v5345, %v5654
        %5657 = vbcast.lane.b32.xlu0 %v5655, 256
        %v5658 = vpop.permute.xlu0 %5657
        %s5660 = sor.u32 256, 8
        %5661 = vbcast.lane.b32.xlu0 %v5655, %s5660
        %v5662 = vpop.permute.xlu0 %5661
        %s5664 = sor.u32 256, 16
        %5665 = vbcast.lane.b32.xlu0 %v5655, %s5664
        %v5666 = vpop.permute.xlu0 %5665
        %s5668 = sor.u32 256, 24
        %5669 = vbcast.lane.b32.xlu0 %v5655, %s5668
        %v5670 = vpop.permute.xlu0 %5669
        %v5671 = vlaneseq
        %v5672 = vshrl.u32 %v5671, 7
        %v5673 = vsub.s32 1, %v5672
        %v5674 = vrot.slane %v5345, %v5673
        %5676 = vbcast.lane.b32.xlu0 %v5674, 256
        %v5677 = vpop.permute.xlu0 %5676
        %s5679 = sor.u32 256, 8
        %5680 = vbcast.lane.b32.xlu0 %v5674, %s5679
        %v5681 = vpop.permute.xlu0 %5680
        %s5683 = sor.u32 256, 16
        %5684 = vbcast.lane.b32.xlu0 %v5674, %s5683
        %v5685 = vpop.permute.xlu0 %5684
        %s5687 = sor.u32 256, 24
        %5688 = vbcast.lane.b32.xlu0 %v5674, %s5687
        %v5689 = vpop.permute.xlu0 %5688
        %v5690 = vlaneseq
        %v5691 = vshrl.u32 %v5690, 7
        %v5692 = vsub.s32 2, %v5691
        %v5693 = vrot.slane %v5345, %v5692
        %5695 = vbcast.lane.b32.xlu0 %v5693, 256
        %v5696 = vpop.permute.xlu0 %5695
        %s5698 = sor.u32 256, 8
        %5699 = vbcast.lane.b32.xlu0 %v5693, %s5698
        %v5700 = vpop.permute.xlu0 %5699
        %s5702 = sor.u32 256, 16
        %5703 = vbcast.lane.b32.xlu0 %v5693, %s5702
        %v5704 = vpop.permute.xlu0 %5703
        %s5706 = sor.u32 256, 24
        %5707 = vbcast.lane.b32.xlu0 %v5693, %s5706
        %v5708 = vpop.permute.xlu0 %5707
        %v5709 = vlaneseq
        %v5710 = vshrl.u32 %v5709, 7
        %v5711 = vsub.s32 3, %v5710
        %v5712 = vrot.slane %v5345, %v5711
        %5714 = vbcast.lane.b32.xlu0 %v5712, 256
        %v5715 = vpop.permute.xlu0 %5714
        %s5717 = sor.u32 256, 8
        %5718 = vbcast.lane.b32.xlu0 %v5712, %s5717
        %v5719 = vpop.permute.xlu0 %5718
        %s5721 = sor.u32 256, 16
        %5722 = vbcast.lane.b32.xlu0 %v5712, %s5721
        %v5723 = vpop.permute.xlu0 %5722
        %s5725 = sor.u32 256, 24
        %5726 = vbcast.lane.b32.xlu0 %v5712, %s5725
        %v5727 = vpop.permute.xlu0 %5726
        %v5728 = vlaneseq
        %v5729 = vshrl.u32 %v5728, 7
        %v5730 = vsub.s32 4, %v5729
        %v5731 = vrot.slane %v5345, %v5730
        %5733 = vbcast.lane.b32.xlu0 %v5731, 256
        %v5734 = vpop.permute.xlu0 %5733
        %s5736 = sor.u32 256, 8
        %5737 = vbcast.lane.b32.xlu0 %v5731, %s5736
        %v5738 = vpop.permute.xlu0 %5737
        %s5740 = sor.u32 256, 16
        %5741 = vbcast.lane.b32.xlu0 %v5731, %s5740
        %v5742 = vpop.permute.xlu0 %5741
        %s5744 = sor.u32 256, 24
        %5745 = vbcast.lane.b32.xlu0 %v5731, %s5744
        %v5746 = vpop.permute.xlu0 %5745
        %v5747 = vlaneseq
        %v5748 = vshrl.u32 %v5747, 7
        %v5749 = vsub.s32 5, %v5748
        %v5750 = vrot.slane %v5345, %v5749
        %5752 = vbcast.lane.b32.xlu0 %v5750, 256
        %v5753 = vpop.permute.xlu0 %5752
        %s5755 = sor.u32 256, 8
        %5756 = vbcast.lane.b32.xlu0 %v5750, %s5755
        %v5757 = vpop.permute.xlu0 %5756
        %s5759 = sor.u32 256, 16
        %5760 = vbcast.lane.b32.xlu0 %v5750, %s5759
        %v5761 = vpop.permute.xlu0 %5760
        %s5763 = sor.u32 256, 24
        %5764 = vbcast.lane.b32.xlu0 %v5750, %s5763
        %v5765 = vpop.permute.xlu0 %5764
        %v5766 = vlaneseq
        %v5767 = vshrl.u32 %v5766, 7
        %v5768 = vsub.s32 6, %v5767
        %v5769 = vrot.slane %v5345, %v5768
        %5771 = vbcast.lane.b32.xlu0 %v5769, 256
        %v5772 = vpop.permute.xlu0 %5771
        %s5774 = sor.u32 256, 8
        %5775 = vbcast.lane.b32.xlu0 %v5769, %s5774
        %v5776 = vpop.permute.xlu0 %5775
        %s5778 = sor.u32 256, 16
        %5779 = vbcast.lane.b32.xlu0 %v5769, %s5778
        %v5780 = vpop.permute.xlu0 %5779
        %s5782 = sor.u32 256, 24
        %5783 = vbcast.lane.b32.xlu0 %v5769, %s5782
        %v5784 = vpop.permute.xlu0 %5783
        %v5785 = vlaneseq
        %v5786 = vshrl.u32 %v5785, 7
        %v5787 = vsub.s32 7, %v5786
        %v5788 = vrot.slane %v5345, %v5787
        %5790 = vbcast.lane.b32.xlu0 %v5788, 256
        %v5791 = vpop.permute.xlu0 %5790
        %s5793 = sor.u32 256, 8
        %5794 = vbcast.lane.b32.xlu0 %v5788, %s5793
        %v5795 = vpop.permute.xlu0 %5794
        %s5797 = sor.u32 256, 16
        %5798 = vbcast.lane.b32.xlu0 %v5788, %s5797
        %v5799 = vpop.permute.xlu0 %5798
        %s5801 = sor.u32 256, 24
        %5802 = vbcast.lane.b32.xlu0 %v5788, %s5801
        %v5803 = vpop.permute.xlu0 %5802
        %v5804 = vlaneseq
        %v5805 = vshrl.u32 %v5804, 7
        %v5806 = vsub.s32 0, %v5805
        %v5807 = vrot.slane %v5347, %v5806
        %5809 = vbcast.lane.b32.xlu0 %v5807, 256
        %v5810 = vpop.permute.xlu0 %5809
        %s5812 = sor.u32 256, 8
        %5813 = vbcast.lane.b32.xlu0 %v5807, %s5812
        %v5814 = vpop.permute.xlu0 %5813
        %s5816 = sor.u32 256, 16
        %5817 = vbcast.lane.b32.xlu0 %v5807, %s5816
        %v5818 = vpop.permute.xlu0 %5817
        %s5820 = sor.u32 256, 24
        %5821 = vbcast.lane.b32.xlu0 %v5807, %s5820
        %v5822 = vpop.permute.xlu0 %5821
        %v5823 = vlaneseq
        %v5824 = vshrl.u32 %v5823, 7
        %v5825 = vsub.s32 1, %v5824
        %v5826 = vrot.slane %v5347, %v5825
        %5828 = vbcast.lane.b32.xlu0 %v5826, 256
        %v5829 = vpop.permute.xlu0 %5828
        %s5831 = sor.u32 256, 8
        %5832 = vbcast.lane.b32.xlu0 %v5826, %s5831
        %v5833 = vpop.permute.xlu0 %5832
        %s5835 = sor.u32 256, 16
        %5836 = vbcast.lane.b32.xlu0 %v5826, %s5835
        %v5837 = vpop.permute.xlu0 %5836
        %s5839 = sor.u32 256, 24
        %5840 = vbcast.lane.b32.xlu0 %v5826, %s5839
        %v5841 = vpop.permute.xlu0 %5840
        %v5842 = vlaneseq
        %v5843 = vshrl.u32 %v5842, 7
        %v5844 = vsub.s32 2, %v5843
        %v5845 = vrot.slane %v5347, %v5844
        %5847 = vbcast.lane.b32.xlu0 %v5845, 256
        %v5848 = vpop.permute.xlu0 %5847
        %s5850 = sor.u32 256, 8
        %5851 = vbcast.lane.b32.xlu0 %v5845, %s5850
        %v5852 = vpop.permute.xlu0 %5851
        %s5854 = sor.u32 256, 16
        %5855 = vbcast.lane.b32.xlu0 %v5845, %s5854
        %v5856 = vpop.permute.xlu0 %5855
        %s5858 = sor.u32 256, 24
        %5859 = vbcast.lane.b32.xlu0 %v5845, %s5858
        %v5860 = vpop.permute.xlu0 %5859
        %v5861 = vlaneseq
        %v5862 = vshrl.u32 %v5861, 7
        %v5863 = vsub.s32 3, %v5862
        %v5864 = vrot.slane %v5347, %v5863
        %5866 = vbcast.lane.b32.xlu0 %v5864, 256
        %v5867 = vpop.permute.xlu0 %5866
        %s5869 = sor.u32 256, 8
        %5870 = vbcast.lane.b32.xlu0 %v5864, %s5869
        %v5871 = vpop.permute.xlu0 %5870
        %s5873 = sor.u32 256, 16
        %5874 = vbcast.lane.b32.xlu0 %v5864, %s5873
        %v5875 = vpop.permute.xlu0 %5874
        %s5877 = sor.u32 256, 24
        %5878 = vbcast.lane.b32.xlu0 %v5864, %s5877
        %v5879 = vpop.permute.xlu0 %5878
        %v5880 = vlaneseq
        %v5881 = vshrl.u32 %v5880, 7
        %v5882 = vsub.s32 4, %v5881
        %v5883 = vrot.slane %v5347, %v5882
        %5885 = vbcast.lane.b32.xlu0 %v5883, 256
        %v5886 = vpop.permute.xlu0 %5885
        %s5888 = sor.u32 256, 8
        %5889 = vbcast.lane.b32.xlu0 %v5883, %s5888
        %v5890 = vpop.permute.xlu0 %5889
        %s5892 = sor.u32 256, 16
        %5893 = vbcast.lane.b32.xlu0 %v5883, %s5892
        %v5894 = vpop.permute.xlu0 %5893
        %s5896 = sor.u32 256, 24
        %5897 = vbcast.lane.b32.xlu0 %v5883, %s5896
        %v5898 = vpop.permute.xlu0 %5897
        %v5899 = vlaneseq
        %v5900 = vshrl.u32 %v5899, 7
        %v5901 = vsub.s32 5, %v5900
        %v5902 = vrot.slane %v5347, %v5901
        %5904 = vbcast.lane.b32.xlu0 %v5902, 256
        %v5905 = vpop.permute.xlu0 %5904
        %s5907 = sor.u32 256, 8
        %5908 = vbcast.lane.b32.xlu0 %v5902, %s5907
        %v5909 = vpop.permute.xlu0 %5908
        %s5911 = sor.u32 256, 16
        %5912 = vbcast.lane.b32.xlu0 %v5902, %s5911
        %v5913 = vpop.permute.xlu0 %5912
        %s5915 = sor.u32 256, 24
        %5916 = vbcast.lane.b32.xlu0 %v5902, %s5915
        %v5917 = vpop.permute.xlu0 %5916
        %v5918 = vlaneseq
        %v5919 = vshrl.u32 %v5918, 7
        %v5920 = vsub.s32 6, %v5919
        %v5921 = vrot.slane %v5347, %v5920
        %5923 = vbcast.lane.b32.xlu0 %v5921, 256
        %v5924 = vpop.permute.xlu0 %5923
        %s5926 = sor.u32 256, 8
        %5927 = vbcast.lane.b32.xlu0 %v5921, %s5926
        %v5928 = vpop.permute.xlu0 %5927
        %s5930 = sor.u32 256, 16
        %5931 = vbcast.lane.b32.xlu0 %v5921, %s5930
        %v5932 = vpop.permute.xlu0 %5931
        %s5934 = sor.u32 256, 24
        %5935 = vbcast.lane.b32.xlu0 %v5921, %s5934
        %v5936 = vpop.permute.xlu0 %5935
        %v5937 = vlaneseq
        %v5938 = vshrl.u32 %v5937, 7
        %v5939 = vsub.s32 7, %v5938
        %v5940 = vrot.slane %v5347, %v5939
        %5942 = vbcast.lane.b32.xlu0 %v5940, 256
        %v5943 = vpop.permute.xlu0 %5942
        %s5945 = sor.u32 256, 8
        %5946 = vbcast.lane.b32.xlu0 %v5940, %s5945
        %v5947 = vpop.permute.xlu0 %5946
        %s5949 = sor.u32 256, 16
        %5950 = vbcast.lane.b32.xlu0 %v5940, %s5949
        %v5951 = vpop.permute.xlu0 %5950
        %s5953 = sor.u32 256, 24
        %5954 = vbcast.lane.b32.xlu0 %v5940, %s5953
        %v5955 = vpop.permute.xlu0 %5954
        %v5956 = vmul.f32 %v1884, %v5354
        %v5957 = vmul.f32 %v1885, %v5358
        %v5958 = vmul.f32 %v1886, %v5362
        %v5959 = vmul.f32 %v1887, %v5366
        %v5960 = vmul.f32 %v1888, %v5373
        %v5961 = vmul.f32 %v1889, %v5377
        %v5962 = vmul.f32 %v1890, %v5381
        %v5963 = vmul.f32 %v1891, %v5385
        %v5964 = vmul.f32 %v1892, %v5392
        %v5965 = vmul.f32 %v1893, %v5396
        %v5966 = vmul.f32 %v1894, %v5400
        %v5967 = vmul.f32 %v1895, %v5404
        %v5968 = vmul.f32 %v1896, %v5411
        %v5969 = vmul.f32 %v1897, %v5415
        %v5970 = vmul.f32 %v1898, %v5419
        %v5971 = vmul.f32 %v1899, %v5423
        %v5972 = vmul.f32 %v1900, %v5430
        %v5973 = vmul.f32 %v1901, %v5434
        %v5974 = vmul.f32 %v1902, %v5438
        %v5975 = vmul.f32 %v1903, %v5442
        %v5976 = vmul.f32 %v1904, %v5449
        %v5977 = vmul.f32 %v1905, %v5453
        %v5978 = vmul.f32 %v1906, %v5457
        %v5979 = vmul.f32 %v1907, %v5461
        %v5980 = vmul.f32 %v1908, %v5468
        %v5981 = vmul.f32 %v1909, %v5472
        %v5982 = vmul.f32 %v1910, %v5476
        %v5983 = vmul.f32 %v1911, %v5480
        %v5984 = vmul.f32 %v1912, %v5487
        %v5985 = vmul.f32 %v1913, %v5491
        %v5986 = vmul.f32 %v1914, %v5495
        %v5987 = vmul.f32 %v1915, %v5499
        %v5988 = vmul.f32 %v1916, %v5506
        %v5989 = vmul.f32 %v1917, %v5510
        %v5990 = vmul.f32 %v1918, %v5514
        %v5991 = vmul.f32 %v1919, %v5518
        %v5992 = vmul.f32 %v1920, %v5525
        %v5993 = vmul.f32 %v1921, %v5529
        %v5994 = vmul.f32 %v1922, %v5533
        %v5995 = vmul.f32 %v1923, %v5537
        %v5996 = vmul.f32 %v1924, %v5544
        %v5997 = vmul.f32 %v1925, %v5548
        %v5998 = vmul.f32 %v1926, %v5552
        %v5999 = vmul.f32 %v1927, %v5556
        %v6000 = vmul.f32 %v1928, %v5563
        %v6001 = vmul.f32 %v1929, %v5567
        %v6002 = vmul.f32 %v1930, %v5571
        %v6003 = vmul.f32 %v1931, %v5575
        %v6004 = vmul.f32 %v1932, %v5582
        %v6005 = vmul.f32 %v1933, %v5586
        %v6006 = vmul.f32 %v1934, %v5590
        %v6007 = vmul.f32 %v1935, %v5594
        %v6008 = vmul.f32 %v1936, %v5601
        %v6009 = vmul.f32 %v1937, %v5605
        %v6010 = vmul.f32 %v1938, %v5609
        %v6011 = vmul.f32 %v1939, %v5613
        %v6012 = vmul.f32 %v1940, %v5620
        %v6013 = vmul.f32 %v1941, %v5624
        %v6014 = vmul.f32 %v1942, %v5628
        %v6015 = vmul.f32 %v1943, %v5632
        %v6016 = vmul.f32 %v1944, %v5639
        %v6017 = vmul.f32 %v1945, %v5643
        %v6018 = vmul.f32 %v1946, %v5647
        %v6019 = vmul.f32 %v1947, %v5651
        %v6020 = vmul.f32 %v1948, %v5658
        %v6021 = vmul.f32 %v1949, %v5662
        %v6022 = vmul.f32 %v1950, %v5666
        %v6023 = vmul.f32 %v1951, %v5670
        %v6024 = vmul.f32 %v1952, %v5677
        %v6025 = vmul.f32 %v1953, %v5681
        %v6026 = vmul.f32 %v1954, %v5685
        %v6027 = vmul.f32 %v1955, %v5689
        %v6028 = vmul.f32 %v1956, %v5696
        %v6029 = vmul.f32 %v1957, %v5700
        %v6030 = vmul.f32 %v1958, %v5704
        %v6031 = vmul.f32 %v1959, %v5708
        %v6032 = vmul.f32 %v1960, %v5715
        %v6033 = vmul.f32 %v1961, %v5719
        %v6034 = vmul.f32 %v1962, %v5723
        %v6035 = vmul.f32 %v1963, %v5727
        %v6036 = vmul.f32 %v1964, %v5734
        %v6037 = vmul.f32 %v1965, %v5738
        %v6038 = vmul.f32 %v1966, %v5742
        %v6039 = vmul.f32 %v1967, %v5746
        %v6040 = vmul.f32 %v1968, %v5753
        %v6041 = vmul.f32 %v1969, %v5757
        %v6042 = vmul.f32 %v1970, %v5761
        %v6043 = vmul.f32 %v1971, %v5765
        %v6044 = vmul.f32 %v1972, %v5772
        %v6045 = vmul.f32 %v1973, %v5776
        %v6046 = vmul.f32 %v1974, %v5780
        %v6047 = vmul.f32 %v1975, %v5784
        %v6048 = vmul.f32 %v1976, %v5791
        %v6049 = vmul.f32 %v1977, %v5795
        %v6050 = vmul.f32 %v1978, %v5799
        %v6051 = vmul.f32 %v1979, %v5803
        %v6052 = vmul.f32 %v1980, %v5810
        %v6053 = vmul.f32 %v1981, %v5814
        %v6054 = vmul.f32 %v1982, %v5818
        %v6055 = vmul.f32 %v1983, %v5822
        %v6056 = vmul.f32 %v1984, %v5829
        %v6057 = vmul.f32 %v1985, %v5833
        %v6058 = vmul.f32 %v1986, %v5837
        %v6059 = vmul.f32 %v1987, %v5841
        %v6060 = vmul.f32 %v1988, %v5848
        %v6061 = vmul.f32 %v1989, %v5852
        %v6062 = vmul.f32 %v1990, %v5856
        %v6063 = vmul.f32 %v1991, %v5860
        %v6064 = vmul.f32 %v1992, %v5867
        %v6065 = vmul.f32 %v1993, %v5871
        %v6066 = vmul.f32 %v1994, %v5875
        %v6067 = vmul.f32 %v1995, %v5879
        %v6068 = vmul.f32 %v1996, %v5886
        %v6069 = vmul.f32 %v1997, %v5890
        %v6070 = vmul.f32 %v1998, %v5894
        %v6071 = vmul.f32 %v1999, %v5898
        %v6072 = vmul.f32 %v2000, %v5905
        %v6073 = vmul.f32 %v2001, %v5909
        %v6074 = vmul.f32 %v2002, %v5913
        %v6075 = vmul.f32 %v2003, %v5917
        %v6076 = vmul.f32 %v2004, %v5924
        %v6077 = vmul.f32 %v2005, %v5928
        %v6078 = vmul.f32 %v2006, %v5932
        %v6079 = vmul.f32 %v2007, %v5936
        %v6080 = vmul.f32 %v2008, %v5943
        %v6081 = vmul.f32 %v2009, %v5947
        %v6082 = vmul.f32 %v2010, %v5951
        %v6083 = vmul.f32 %v2011, %v5955
        %6084 = vst.msk [vmem:[%s215] sm:$0xff] %vm344, %v5956
        %6085 = vst.msk [vmem:[%s215 + $0x8] sm:$0xff] %vm344, %v5957
        %6086 = vst.msk [vmem:[%s215 + $0x10] sm:$0xff] %vm344, %v5958
        %6087 = vst.msk [vmem:[%s215 + $0x18] sm:$0xff] %vm344, %v5959
        %6088 = vst.msk [vmem:[%s215 + $0x20] sm:$0xff] %vm344, %v5960
        %6089 = vst.msk [vmem:[%s215 + $0x28] sm:$0xff] %vm344, %v5961
        %6090 = vst.msk [vmem:[%s215 + $0x30] sm:$0xff] %vm344, %v5962
        %6091 = vst.msk [vmem:[%s215 + $0x38] sm:$0xff] %vm344, %v5963
        %6092 = vst.msk [vmem:[%s215 + $0x40] sm:$0xff] %vm344, %v5964
        %6093 = vst.msk [vmem:[%s215 + $0x48] sm:$0xff] %vm344, %v5965
        %6094 = vst.msk [vmem:[%s215 + $0x50] sm:$0xff] %vm344, %v5966
        %6095 = vst.msk [vmem:[%s215 + $0x58] sm:$0xff] %vm344, %v5967
        %6096 = vst.msk [vmem:[%s215 + $0x60] sm:$0xff] %vm344, %v5968
        %6097 = vst.msk [vmem:[%s215 + $0x68] sm:$0xff] %vm344, %v5969
        %6098 = vst.msk [vmem:[%s215 + $0x70] sm:$0xff] %vm344, %v5970
        %6099 = vst.msk [vmem:[%s215 + $0x78] sm:$0xff] %vm344, %v5971
        %6100 = vst.msk [vmem:[%s215 + $0x80] sm:$0xff] %vm344, %v5972
        %6101 = vst.msk [vmem:[%s215 + $0x88] sm:$0xff] %vm344, %v5973
        %6102 = vst.msk [vmem:[%s215 + $0x90] sm:$0xff] %vm344, %v5974
        %6103 = vst.msk [vmem:[%s215 + $0x98] sm:$0xff] %vm344, %v5975
        %6104 = vst.msk [vmem:[%s215 + $0xa0] sm:$0xff] %vm344, %v5976
        %6105 = vst.msk [vmem:[%s215 + $0xa8] sm:$0xff] %vm344, %v5977
        %6106 = vst.msk [vmem:[%s215 + $0xb0] sm:$0xff] %vm344, %v5978
        %6107 = vst.msk [vmem:[%s215 + $0xb8] sm:$0xff] %vm344, %v5979
        %6108 = vst.msk [vmem:[%s215 + $0xc0] sm:$0xff] %vm344, %v5980
        %6109 = vst.msk [vmem:[%s215 + $0xc8] sm:$0xff] %vm344, %v5981
        %6110 = vst.msk [vmem:[%s215 + $0xd0] sm:$0xff] %vm344, %v5982
        %6111 = vst.msk [vmem:[%s215 + $0xd8] sm:$0xff] %vm344, %v5983
        %6112 = vst.msk [vmem:[%s215 + $0xe0] sm:$0xff] %vm344, %v5984
        %6113 = vst.msk [vmem:[%s215 + $0xe8] sm:$0xff] %vm344, %v5985
        %6114 = vst.msk [vmem:[%s215 + $0xf0] sm:$0xff] %vm344, %v5986
        %6115 = vst.msk [vmem:[%s215 + $0xf8] sm:$0xff] %vm344, %v5987
        %6116 = vst.msk [vmem:[%s215 + $0x100] sm:$0xff] %vm344, %v5988
        %6117 = vst.msk [vmem:[%s215 + $0x108] sm:$0xff] %vm344, %v5989
        %6118 = vst.msk [vmem:[%s215 + $0x110] sm:$0xff] %vm344, %v5990
        %6119 = vst.msk [vmem:[%s215 + $0x118] sm:$0xff] %vm344, %v5991
        %6120 = vst.msk [vmem:[%s215 + $0x120] sm:$0xff] %vm344, %v5992
        %6121 = vst.msk [vmem:[%s215 + $0x128] sm:$0xff] %vm344, %v5993
        %6122 = vst.msk [vmem:[%s215 + $0x130] sm:$0xff] %vm344, %v5994
        %6123 = vst.msk [vmem:[%s215 + $0x138] sm:$0xff] %vm344, %v5995
        %6124 = vst.msk [vmem:[%s215 + $0x140] sm:$0xff] %vm344, %v5996
        %6125 = vst.msk [vmem:[%s215 + $0x148] sm:$0xff] %vm344, %v5997
        %6126 = vst.msk [vmem:[%s215 + $0x150] sm:$0xff] %vm344, %v5998
        %6127 = vst.msk [vmem:[%s215 + $0x158] sm:$0xff] %vm344, %v5999
        %6128 = vst.msk [vmem:[%s215 + $0x160] sm:$0xff] %vm344, %v6000
        %6129 = vst.msk [vmem:[%s215 + $0x168] sm:$0xff] %vm344, %v6001
        %6130 = vst.msk [vmem:[%s215 + $0x170] sm:$0xff] %vm344, %v6002
        %6131 = vst.msk [vmem:[%s215 + $0x178] sm:$0xff] %vm344, %v6003
        %6132 = vst.msk [vmem:[%s215 + $0x180] sm:$0xff] %vm344, %v6004
        %6133 = vst.msk [vmem:[%s215 + $0x188] sm:$0xff] %vm344, %v6005
        %6134 = vst.msk [vmem:[%s215 + $0x190] sm:$0xff] %vm344, %v6006
        %6135 = vst.msk [vmem:[%s215 + $0x198] sm:$0xff] %vm344, %v6007
        %6136 = vst.msk [vmem:[%s215 + $0x1a0] sm:$0xff] %vm344, %v6008
        %6137 = vst.msk [vmem:[%s215 + $0x1a8] sm:$0xff] %vm344, %v6009
        %6138 = vst.msk [vmem:[%s215 + $0x1b0] sm:$0xff] %vm344, %v6010
        %6139 = vst.msk [vmem:[%s215 + $0x1b8] sm:$0xff] %vm344, %v6011
        %6140 = vst.msk [vmem:[%s215 + $0x1c0] sm:$0xff] %vm344, %v6012
        %6141 = vst.msk [vmem:[%s215 + $0x1c8] sm:$0xff] %vm344, %v6013
        %6142 = vst.msk [vmem:[%s215 + $0x1d0] sm:$0xff] %vm344, %v6014
        %6143 = vst.msk [vmem:[%s215 + $0x1d8] sm:$0xff] %vm344, %v6015
        %6144 = vst.msk [vmem:[%s215 + $0x1e0] sm:$0xff] %vm344, %v6016
        %6145 = vst.msk [vmem:[%s215 + $0x1e8] sm:$0xff] %vm344, %v6017
        %6146 = vst.msk [vmem:[%s215 + $0x1f0] sm:$0xff] %vm344, %v6018
        %6147 = vst.msk [vmem:[%s215 + $0x1f8] sm:$0xff] %vm344, %v6019
        %6148 = vst.msk [vmem:[%s215 + $0x200] sm:$0xff] %vm344, %v6020
        %6149 = vst.msk [vmem:[%s215 + $0x208] sm:$0xff] %vm344, %v6021
        %6150 = vst.msk [vmem:[%s215 + $0x210] sm:$0xff] %vm344, %v6022
        %6151 = vst.msk [vmem:[%s215 + $0x218] sm:$0xff] %vm344, %v6023
        %6152 = vst.msk [vmem:[%s215 + $0x220] sm:$0xff] %vm344, %v6024
        %6153 = vst.msk [vmem:[%s215 + $0x228] sm:$0xff] %vm344, %v6025
        %6154 = vst.msk [vmem:[%s215 + $0x230] sm:$0xff] %vm344, %v6026
        %6155 = vst.msk [vmem:[%s215 + $0x238] sm:$0xff] %vm344, %v6027
        %6156 = vst.msk [vmem:[%s215 + $0x240] sm:$0xff] %vm344, %v6028
        %6157 = vst.msk [vmem:[%s215 + $0x248] sm:$0xff] %vm344, %v6029
        %6158 = vst.msk [vmem:[%s215 + $0x250] sm:$0xff] %vm344, %v6030
        %6159 = vst.msk [vmem:[%s215 + $0x258] sm:$0xff] %vm344, %v6031
        %6160 = vst.msk [vmem:[%s215 + $0x260] sm:$0xff] %vm344, %v6032
        %6161 = vst.msk [vmem:[%s215 + $0x268] sm:$0xff] %vm344, %v6033
        %6162 = vst.msk [vmem:[%s215 + $0x270] sm:$0xff] %vm344, %v6034
        %6163 = vst.msk [vmem:[%s215 + $0x278] sm:$0xff] %vm344, %v6035
        %6164 = vst.msk [vmem:[%s215 + $0x280] sm:$0xff] %vm344, %v6036
        %6165 = vst.msk [vmem:[%s215 + $0x288] sm:$0xff] %vm344, %v6037
        %6166 = vst.msk [vmem:[%s215 + $0x290] sm:$0xff] %vm344, %v6038
        %6167 = vst.msk [vmem:[%s215 + $0x298] sm:$0xff] %vm344, %v6039
        %6168 = vst.msk [vmem:[%s215 + $0x2a0] sm:$0xff] %vm344, %v6040
        %6169 = vst.msk [vmem:[%s215 + $0x2a8] sm:$0xff] %vm344, %v6041
        %6170 = vst.msk [vmem:[%s215 + $0x2b0] sm:$0xff] %vm344, %v6042
        %6171 = vst.msk [vmem:[%s215 + $0x2b8] sm:$0xff] %vm344, %v6043
        %6172 = vst.msk [vmem:[%s215 + $0x2c0] sm:$0xff] %vm344, %v6044
        %6173 = vst.msk [vmem:[%s215 + $0x2c8] sm:$0xff] %vm344, %v6045
        %6174 = vst.msk [vmem:[%s215 + $0x2d0] sm:$0xff] %vm344, %v6046
        %6175 = vst.msk [vmem:[%s215 + $0x2d8] sm:$0xff] %vm344, %v6047
        %6176 = vst.msk [vmem:[%s215 + $0x2e0] sm:$0xff] %vm344, %v6048
        %6177 = vst.msk [vmem:[%s215 + $0x2e8] sm:$0xff] %vm344, %v6049
        %6178 = vst.msk [vmem:[%s215 + $0x2f0] sm:$0xff] %vm344, %v6050
        %6179 = vst.msk [vmem:[%s215 + $0x2f8] sm:$0xff] %vm344, %v6051
        %6180 = vst.msk [vmem:[%s215 + $0x300] sm:$0xff] %vm344, %v6052
        %6181 = vst.msk [vmem:[%s215 + $0x308] sm:$0xff] %vm344, %v6053
        %6182 = vst.msk [vmem:[%s215 + $0x310] sm:$0xff] %vm344, %v6054
        %6183 = vst.msk [vmem:[%s215 + $0x318] sm:$0xff] %vm344, %v6055
        %6184 = vst.msk [vmem:[%s215 + $0x320] sm:$0xff] %vm344, %v6056
        %6185 = vst.msk [vmem:[%s215 + $0x328] sm:$0xff] %vm344, %v6057
        %6186 = vst.msk [vmem:[%s215 + $0x330] sm:$0xff] %vm344, %v6058
        %6187 = vst.msk [vmem:[%s215 + $0x338] sm:$0xff] %vm344, %v6059
        %6188 = vst.msk [vmem:[%s215 + $0x340] sm:$0xff] %vm344, %v6060
        %6189 = vst.msk [vmem:[%s215 + $0x348] sm:$0xff] %vm344, %v6061
        %6190 = vst.msk [vmem:[%s215 + $0x350] sm:$0xff] %vm344, %v6062
        %6191 = vst.msk [vmem:[%s215 + $0x358] sm:$0xff] %vm344, %v6063
        %6192 = vst.msk [vmem:[%s215 + $0x360] sm:$0xff] %vm344, %v6064
        %6193 = vst.msk [vmem:[%s215 + $0x368] sm:$0xff] %vm344, %v6065
        %6194 = vst.msk [vmem:[%s215 + $0x370] sm:$0xff] %vm344, %v6066
        %6195 = vst.msk [vmem:[%s215 + $0x378] sm:$0xff] %vm344, %v6067
        %6196 = vst.msk [vmem:[%s215 + $0x380] sm:$0xff] %vm344, %v6068
        %6197 = vst.msk [vmem:[%s215 + $0x388] sm:$0xff] %vm344, %v6069
        %6198 = vst.msk [vmem:[%s215 + $0x390] sm:$0xff] %vm344, %v6070
        %6199 = vst.msk [vmem:[%s215 + $0x398] sm:$0xff] %vm344, %v6071
        %6200 = vst.msk [vmem:[%s215 + $0x3a0] sm:$0xff] %vm344, %v6072
        %6201 = vst.msk [vmem:[%s215 + $0x3a8] sm:$0xff] %vm344, %v6073
        %6202 = vst.msk [vmem:[%s215 + $0x3b0] sm:$0xff] %vm344, %v6074
        %6203 = vst.msk [vmem:[%s215 + $0x3b8] sm:$0xff] %vm344, %v6075
        %6204 = vst.msk [vmem:[%s215 + $0x3c0] sm:$0xff] %vm344, %v6076
        %6205 = vst.msk [vmem:[%s215 + $0x3c8] sm:$0xff] %vm344, %v6077
        %6206 = vst.msk [vmem:[%s215 + $0x3d0] sm:$0xff] %vm344, %v6078
        %6207 = vst.msk [vmem:[%s215 + $0x3d8] sm:$0xff] %vm344, %v6079
        %6208 = vst.msk [vmem:[%s215 + $0x3e0] sm:$0xff] %vm344, %v6080
        %6209 = vst.msk [vmem:[%s215 + $0x3e8] sm:$0xff] %vm344, %v6081
        %6210 = vst.msk [vmem:[%s215 + $0x3f0] sm:$0xff] %vm344, %v6082
        %6211 = vst.msk [vmem:[%s215 + $0x3f8] sm:$0xff] %vm344, %v6083
        %s6212 = sand.u32 %s118, 1
        %s6213 = scalar_lea.sflag [#allocation5], %s6212
        %s6214 = sand.u32 %s118, 1
        %s6215 = smul.addr %s6214, 1024
        %s6216 = scalar_lea.vmem [#allocation6], %s6215
        // Predicated region
        $region41: #{cbam.1} parent=35 // pred_check
          %p6217 = pneg %p128
        $region42: #{cbam.1} parent=35 // pred_check_branch
          %6219 = sbr.rel (%p6217) target = $region44
        $region43: #{cbam.1} parent=35 // pred_region
          %s6221 = ssub.s32 16384, 16384
          %6222 = vsyncadd %s6213, %s6221
          %s6223 = smul.addr %s21, 128
          %s6224 = smul.addr %s6223, 128
          %s6225 = scalar_lea.hbm %s4, %s6224
          %s6226 = sshll.u32 %s6216, 4
          %s6227 = int_to_ptr.vmem [resolvable:$true] %s6226
          %6232 = dma.vmem_to_hbm [thread:$0]  %s6227, 16384, %s6225, %s6213, 128, 128, 8
        $region44: #{cbam.1} parent=35 // pred_fallthru
          _
      $region36: #{cbam.1} parent=5 // pred_fallthru
        _
      %p6233 = scmp.le.s32.totalorder 2, %s16
      // Predicated region
      $region45: #{cbam.1} parent=5 // pred_check
        %p6234 = pneg %p6233
      $region46: #{cbam.1} parent=5 // pred_check_branch
        %6236 = sbr.rel (%p6234) target = $region48
      $region47: #{cbam.1} parent=5 // pred_region
        %s6237 = ssub.s32 %s16, 2
        // Predicated region
        $region49: #{cbam.1} parent=47 // pred_check
          %p6238 = pneg %p134
        $region50: #{cbam.1} parent=47 // pred_check_branch
          %6240 = sbr.rel (%p6238) target = $region52
        $region51: #{cbam.1} parent=47 // pred_region
          %s6241 = sand.u32 %s119, 1
          %s6242 = scalar_lea.sflag [#allocation5], %s6241
          %s6243 = sand.u32 %s119, 1
          %s6244 = smul.addr %s6243, 1024
          %s6245 = scalar_lea.vmem [#allocation6], %s6244
          %6246 = dma.done %s6242, 16384
        $region52: #{cbam.1} parent=47 // pred_fallthru
          _
      $region48: #{cbam.1} parent=5 // pred_fallthru
        _
    $region6: #{cbam.1} parent=1 // loop_footer
      %s20 = sadd.s32 1, %s16
    $region7: #{cbam.1} parent=1 // loop_footer_branch
      %15 = sbr.rel target = $region3
    $region8: #{cbam.1} parent=1 // loop_exit
      _
    %6247 = vsyncpa [#allocation4], 1
    %s6248 = scalar_lea.sflag [#allocation4], 1
    %6249 = vsyncpa %s6248, 1
    %6250 = vsyncpa [#allocation5], 1
    %s6251 = scalar_lea.sflag [#allocation5], 1
    %6252 = vsyncpa %s6251, 1

</llo_original>
